<compile_context>
chip_gen: v7x
topology: tpu7x:2x2x1
jax: 0.10.0
libtpu: 0.0.40
codegen_flags: <defaults>
</compile_context>

<pallas_src>
import jax
import jax.numpy as jnp
from jax.experimental import pallas as pl
from jax.experimental.pallas import tpu as pltpu


def mlp_kernel(x_ref,
               w1_ref, b1_ref,
               w2_ref, b2_ref,
               w3_ref, b3_ref,
               w4_ref, b4_ref,
               w5_ref, b5_ref,
               o_ref):
    """Fused forward pass of the 5-layer MLP on one (tile_b, F) batch tile."""
    cdtype = w2_ref.dtype  # MXU operand dtype (bf16 by default, f32 accumulate)

    # Input arrives in f32 and is cast to the compute dtype in-kernel.
    h = x_ref[...].astype(cdtype)

    # Layers 1-4: Linear + ReLU.  MXU matmul with f32 accumulation; bias add
    # and ReLU on the VPU in f32, then repack straight to the operand dtype so
    # the (tile_b, 256) inter-layer activation is stored once, in cdtype.
    for w_ref, b_ref in ((w1_ref, b1_ref), (w2_ref, b2_ref),
                         (w3_ref, b3_ref), (w4_ref, b4_ref)):
        z = jnp.dot(h, w_ref[...], preferred_element_type=jnp.float32)
        h = jnp.maximum(z + b_ref[...], 0.0).astype(cdtype)

    # Layer 5: Linear(H -> 1).  An N=1 matmul wastes the MXU, so do it as a
    # VPU multiply + lane (XLU) reduction.  w5 arrives as a (1, H) row.
    w5 = w5_ref[...].astype(jnp.float32)                           # (1, H)
    y = jnp.sum(h.astype(jnp.float32) * w5, axis=-1, keepdims=True)
    y = y + b5_ref[...]                                            # (tile_b, 1)
    o_ref[...] = y.astype(o_ref.dtype)


def _round_up(v, m):
    return ((int(v) + m - 1) // m) * m


def _estimate_vmem_bytes(tile_b, in_features, hidden, compute_dtype):
    """Rough per-kernel VMEM footprint (double-buffered windows + intermediates)."""
    cbytes = jnp.dtype(compute_dtype).itemsize
    lane = 128
    x_win = tile_b * _round_up(in_features, lane) * 4 * 2        # f32 input window
    out_win = tile_b * lane * 4 * 2                              # lane-padded (tile_b,1) out
    w_bytes = (_round_up(in_features, 8) * hidden
               + 3 * hidden * hidden + hidden) * cbytes
    b_bytes = (4 * 8 * hidden + 8 * lane) * 4
    const = (w_bytes + b_bytes) * 2                              # resident, double-buffered
    interm = tile_b * hidden * (4 + cbytes) * 2                  # f32 accum + cdtype act
    return x_win + out_win + const + interm


def sequence_net_forward(x, params, *, tile_b=2048, compute_dtype=jnp.bfloat16):
    """Run the fused SequenceNet MLP over the batch with a Pallas TPU kernel.

    x:       (B, F) array (any float dtype; cast to compute_dtype in-kernel).
    params:  list of (W, b) with W shaped (in, out), b shaped (1, out).
    tile_b:  batch rows per grid step (sweepable; clamped to keep >=2 tiles).
    compute_dtype: MXU operand dtype; accumulation is always f32.
    """
    B, F = x.shape
    (w1, b1), (w2, b2), (w3, b3), (w4, b4), (w5, b5) = params
    hidden = w2.shape[0]
    out_features = w5.shape[1]

    # --- batch tiling -------------------------------------------------------
    if B <= 8:
        tile_b = B                     # single full block (block == array dims)
    else:
        tile_b = max(8, _round_up(tile_b, 8))
        # v7x megacore: keep at least 2 batch tiles so the "parallel" axis can
        # shard across both TensorCores (no-op for large B where B/2 >= tile_b).
        tile_b = min(tile_b, max(8, _round_up(pl.cdiv(B, 2), 8)))
    num_tiles = pl.cdiv(B, tile_b)
    grid = (num_tiles,)

    # Cast matmul operands once at the boundary; biases stay f32 (VPU adds).
    w1c, w2c, w3c, w4c = (w.astype(compute_dtype) for w in (w1, w2, w3, w4))
    w5_row = w5.reshape(1, -1).astype(compute_dtype)          # (1, H)
    b1f, b2f, b3f, b4f = (b.astype(jnp.float32) for b in (b1, b2, b3, b4))
    b5f = b5.reshape(1, 1).astype(jnp.float32)

    def const_spec(arr):
        # Block index is constant across the grid: the operand stays resident
        # in VMEM and is not re-fetched per batch tile.
        return pl.BlockSpec(arr.shape, lambda i: (0, 0))

    # Raise the scoped-VMEM limit only when a large tile_b sweep needs it
    # (v5e's default is 16 MiB; v6e/v7x default to 32 MiB).
    est = _estimate_vmem_bytes(tile_b, F, hidden, compute_dtype)
    vmem_limit = None
    if est > 14 * (1 << 20):
        vmem_limit = int(min(max(est * 3 // 2, 16 << 20), 32 << 20))

    out = pl.pallas_call(
        mlp_kernel,
        out_shape=jax.ShapeDtypeStruct((B, out_features), jnp.float32),
        grid=grid,
        in_specs=[
            pl.BlockSpec((tile_b, F), lambda i: (i, 0)),
            const_spec(w1c), const_spec(b1f),
            const_spec(w2c), const_spec(b2f),
            const_spec(w3c), const_spec(b3f),
            const_spec(w4c), const_spec(b4f),
            const_spec(w5_row), const_spec(b5f),
        ],
        out_specs=pl.BlockSpec((tile_b, out_features), lambda i: (i, 0)),
        compiler_params=pltpu.CompilerParams(
            dimension_semantics=("parallel",),   # batch tiles are independent
            vmem_limit_bytes=vmem_limit,
        ),
    )(x.astype(jnp.float32), w1c, b1f, w2c, b2f, w3c, b3f, w4c, b4f, w5_row, b5f)

    return out


def init_params(key, input_features=10, intermediate_features=256):
    """Deterministic init matching PyTorch nn.Linear (stored transposed)."""
    dims = [input_features,
            intermediate_features, intermediate_features,
            intermediate_features, intermediate_features,
            1]
    params = []
    for i in range(5):
        fan_in, fan_out = dims[i], dims[i + 1]
        key, kw, kb = jax.random.split(key, 3)
        bound = 1.0 / jnp.sqrt(fan_in)
        w = jax.random.uniform(kw, (fan_in, fan_out), jnp.float32, -bound, bound)
        b = jax.random.uniform(kb, (1, fan_out), jnp.float32, -bound, bound)
        params.append((w, b))
    return params


def reference_forward(x, params, compute_dtype=jnp.float32):
    """Plain-JAX reference mirroring the kernel's dtype staging exactly."""
    (w1, b1), (w2, b2), (w3, b3), (w4, b4), (w5, b5) = params
    h = x.astype(jnp.float32).astype(compute_dtype)
    for w, b in ((w1, b1), (w2, b2), (w3, b3), (w4, b4)):
        z = jnp.dot(h, w.astype(compute_dtype), preferred_element_type=jnp.float32)
        h = jnp.maximum(z + b.astype(jnp.float32), 0.0).astype(compute_dtype)
    w5r = w5.reshape(1, -1).astype(compute_dtype).astype(jnp.float32)
    return (jnp.sum(h.astype(jnp.float32) * w5r, axis=-1, keepdims=True)
            + b5.reshape(1, 1).astype(jnp.float32))


if __name__ == "__main__":
    key = jax.random.PRNGKey(0)
    key, kx = jax.random.split(key)

    batch = 1000            # not a multiple of tile_b -> exercises the partial-block path
    input_features = 10
    intermediate_features = 256

    x = jax.random.normal(kx, (batch, input_features), jnp.float32)
    params = init_params(key, input_features, intermediate_features)

    def check(out, ref, rel_tol):
        assert out.shape == (batch, 1), out.shape
        err = float(jnp.max(jnp.abs(out.astype(jnp.float32) - ref)))
        scale = float(jnp.max(jnp.abs(ref))) + 1.0
        assert err < rel_tol * scale, f"max err {err} (scale {scale})"

    # Default bf16-operand path (f32 accumulation); tile_b caps to ~B/2 so the
    # grid has 2 parallel tiles (both TCs busy on v7x), last tile is partial.
    out_bf16 = jax.block_until_ready(sequence_net_forward(x, params))
    check(out_bf16, reference_forward(x, params, jnp.bfloat16), 1e-2)

    # Full f32 path sanity check (looser tolerance: multi-pass bf16 MXU on v5e/v6e).
    out_f32 = jax.block_until_ready(
        sequence_net_forward(x, params, compute_dtype=jnp.float32))
    check(out_f32, reference_forward(x, params, jnp.float32), 2e-2)

    print("KERNEL_OK")
</pallas_src>

<mosaic_0001>
module attributes {stable_mosaic.version = 11 : i64} {
  func.func @mlp_kernel(%arg0: i32, %arg1: memref<504x10xf32, #tpu.memory_space<vmem>>, %arg2: memref<10x256xbf16, #tpu.memory_space<vmem>>, %arg3: memref<1x256xf32, #tpu.memory_space<vmem>>, %arg4: memref<256x256xbf16, #tpu.memory_space<vmem>>, %arg5: memref<1x256xf32, #tpu.memory_space<vmem>>, %arg6: memref<256x256xbf16, #tpu.memory_space<vmem>>, %arg7: memref<1x256xf32, #tpu.memory_space<vmem>>, %arg8: memref<256x256xbf16, #tpu.memory_space<vmem>>, %arg9: memref<1x256xf32, #tpu.memory_space<vmem>>, %arg10: memref<1x256xbf16, #tpu.memory_space<vmem>>, %arg11: memref<1x1xf32, #tpu.memory_space<vmem>>, %arg12: memref<504x1xf32, #tpu.memory_space<vmem>>) attributes {dimension_semantics = [#tpu.dimension_semantics<parallel>], iteration_bounds = array<i64: 2>, scalar_prefetch = 0 : i64, scratch_operands = 0 : i64, tpu.core_type = #tpu.core_type<tc>, window_params = [{transform_indices = @transform_0, window_bounds = array<i64: 504, 10>}, {pipeline_mode = #tpu.pipeline_mode<synchronous>, transform_indices = @transform_1, window_bounds = array<i64: 10, 256>}, {pipeline_mode = #tpu.pipeline_mode<synchronous>, transform_indices = @transform_2, window_bounds = array<i64: 1, 256>}, {pipeline_mode = #tpu.pipeline_mode<synchronous>, transform_indices = @transform_3, window_bounds = array<i64: 256, 256>}, {pipeline_mode = #tpu.pipeline_mode<synchronous>, transform_indices = @transform_4, window_bounds = array<i64: 1, 256>}, {pipeline_mode = #tpu.pipeline_mode<synchronous>, transform_indices = @transform_5, window_bounds = array<i64: 256, 256>}, {pipeline_mode = #tpu.pipeline_mode<synchronous>, transform_indices = @transform_6, window_bounds = array<i64: 1, 256>}, {pipeline_mode = #tpu.pipeline_mode<synchronous>, transform_indices = @transform_7, window_bounds = array<i64: 256, 256>}, {pipeline_mode = #tpu.pipeline_mode<synchronous>, transform_indices = @transform_8, window_bounds = array<i64: 1, 256>}, {pipeline_mode = #tpu.pipeline_mode<synchronous>, transform_indices = @transform_9, window_bounds = array<i64: 1, 256>}, {pipeline_mode = #tpu.pipeline_mode<synchronous>, transform_indices = @transform_10, window_bounds = array<i64: 1, 1>}, {transform_indices = @transform_11, window_bounds = array<i64: 504, 1>}]} {
    %c0 = arith.constant 0 : index
    %c0_0 = arith.constant 0 : index
    %0 = vector.load %arg1[%c0, %c0_0] : memref<504x10xf32, #tpu.memory_space<vmem>>, vector<504x10xf32>
    %1 = arith.truncf %0 : vector<504x10xf32> to vector<504x10xbf16>
    %c0_1 = arith.constant 0 : index
    %c0_2 = arith.constant 0 : index
    %2 = vector.load %arg2[%c0_1, %c0_2] : memref<10x256xbf16, #tpu.memory_space<vmem>>, vector<10x256xbf16>
    %cst = arith.constant dense<0.000000e+00> : vector<504x256xf32>
    %3 = tpu.matmul %1, %2, %cst {dimension_numbers = #tpu.dot_dimension_numbers<[1], [0], [0], [1], [0, 0, 1, 1], [], []>} : vector<504x10xbf16>, vector<10x256xbf16>, vector<504x256xf32> -> vector<504x256xf32>
    %c0_3 = arith.constant 0 : index
    %c0_4 = arith.constant 0 : index
    %4 = vector.load %arg3[%c0_3, %c0_4] : memref<1x256xf32, #tpu.memory_space<vmem>>, vector<1x256xf32>
    %5 = vector.broadcast %4 : vector<1x256xf32> to vector<504x256xf32>
    %6 = arith.addf %3, %5 : vector<504x256xf32>
    %cst_5 = arith.constant 0.000000e+00 : f32
    %7 = vector.broadcast %cst_5 : f32 to vector<504x256xf32>
    %8 = arith.maximumf %6, %7 : vector<504x256xf32>
    %9 = arith.truncf %8 : vector<504x256xf32> to vector<504x256xbf16>
    %c0_6 = arith.constant 0 : index
    %c0_7 = arith.constant 0 : index
    %10 = vector.load %arg4[%c0_6, %c0_7] : memref<256x256xbf16, #tpu.memory_space<vmem>>, vector<256x256xbf16>
    %cst_8 = arith.constant dense<0.000000e+00> : vector<504x256xf32>
    %11 = tpu.matmul %9, %10, %cst_8 {dimension_numbers = #tpu.dot_dimension_numbers<[1], [0], [0], [1], [0, 0, 1, 1], [], []>} : vector<504x256xbf16>, vector<256x256xbf16>, vector<504x256xf32> -> vector<504x256xf32>
    %c0_9 = arith.constant 0 : index
    %c0_10 = arith.constant 0 : index
    %12 = vector.load %arg5[%c0_9, %c0_10] : memref<1x256xf32, #tpu.memory_space<vmem>>, vector<1x256xf32>
    %13 = vector.broadcast %12 : vector<1x256xf32> to vector<504x256xf32>
    %14 = arith.addf %11, %13 : vector<504x256xf32>
    %cst_11 = arith.constant 0.000000e+00 : f32
    %15 = vector.broadcast %cst_11 : f32 to vector<504x256xf32>
    %16 = arith.maximumf %14, %15 : vector<504x256xf32>
    %17 = arith.truncf %16 : vector<504x256xf32> to vector<504x256xbf16>
    %c0_12 = arith.constant 0 : index
    %c0_13 = arith.constant 0 : index
    %18 = vector.load %arg6[%c0_12, %c0_13] : memref<256x256xbf16, #tpu.memory_space<vmem>>, vector<256x256xbf16>
    %cst_14 = arith.constant dense<0.000000e+00> : vector<504x256xf32>
    %19 = tpu.matmul %17, %18, %cst_14 {dimension_numbers = #tpu.dot_dimension_numbers<[1], [0], [0], [1], [0, 0, 1, 1], [], []>} : vector<504x256xbf16>, vector<256x256xbf16>, vector<504x256xf32> -> vector<504x256xf32>
    %c0_15 = arith.constant 0 : index
    %c0_16 = arith.constant 0 : index
    %20 = vector.load %arg7[%c0_15, %c0_16] : memref<1x256xf32, #tpu.memory_space<vmem>>, vector<1x256xf32>
    %21 = vector.broadcast %20 : vector<1x256xf32> to vector<504x256xf32>
    %22 = arith.addf %19, %21 : vector<504x256xf32>
    %cst_17 = arith.constant 0.000000e+00 : f32
    %23 = vector.broadcast %cst_17 : f32 to vector<504x256xf32>
    %24 = arith.maximumf %22, %23 : vector<504x256xf32>
    %25 = arith.truncf %24 : vector<504x256xf32> to vector<504x256xbf16>
    %c0_18 = arith.constant 0 : index
    %c0_19 = arith.constant 0 : index
    %26 = vector.load %arg8[%c0_18, %c0_19] : memref<256x256xbf16, #tpu.memory_space<vmem>>, vector<256x256xbf16>
    %cst_20 = arith.constant dense<0.000000e+00> : vector<504x256xf32>
    %27 = tpu.matmul %25, %26, %cst_20 {dimension_numbers = #tpu.dot_dimension_numbers<[1], [0], [0], [1], [0, 0, 1, 1], [], []>} : vector<504x256xbf16>, vector<256x256xbf16>, vector<504x256xf32> -> vector<504x256xf32>
    %c0_21 = arith.constant 0 : index
    %c0_22 = arith.constant 0 : index
    %28 = vector.load %arg9[%c0_21, %c0_22] : memref<1x256xf32, #tpu.memory_space<vmem>>, vector<1x256xf32>
    %29 = vector.broadcast %28 : vector<1x256xf32> to vector<504x256xf32>
    %30 = arith.addf %27, %29 : vector<504x256xf32>
    %cst_23 = arith.constant 0.000000e+00 : f32
    %31 = vector.broadcast %cst_23 : f32 to vector<504x256xf32>
    %32 = arith.maximumf %30, %31 : vector<504x256xf32>
    %33 = arith.truncf %32 : vector<504x256xf32> to vector<504x256xbf16>
    %c0_24 = arith.constant 0 : index
    %c0_25 = arith.constant 0 : index
    %34 = vector.load %arg10[%c0_24, %c0_25] : memref<1x256xbf16, #tpu.memory_space<vmem>>, vector<1x256xbf16>
    %35 = arith.extf %34 : vector<1x256xbf16> to vector<1x256xf32>
    %36 = arith.extf %33 : vector<504x256xbf16> to vector<504x256xf32>
    %37 = vector.broadcast %35 : vector<1x256xf32> to vector<504x256xf32>
    %38 = arith.mulf %36, %37 : vector<504x256xf32>
    %cst_26 = arith.constant dense<0.000000e+00> : vector<504xf32>
    %39 = vector.multi_reduction <add>, %38, %cst_26 [1] : vector<504x256xf32> to vector<504xf32>
    %40 = vector.shape_cast %39 : vector<504xf32> to vector<504x1xf32>
    %c0_27 = arith.constant 0 : index
    %c0_28 = arith.constant 0 : index
    %41 = vector.load %arg11[%c0_27, %c0_28] : memref<1x1xf32, #tpu.memory_space<vmem>>, vector<1x1xf32>
    %42 = vector.broadcast %41 : vector<1x1xf32> to vector<504x1xf32>
    %43 = arith.addf %40, %42 : vector<504x1xf32>
    %c0_29 = arith.constant 0 : index
    %c0_30 = arith.constant 0 : index
    %44 = vector.load %arg12[%c0_29, %c0_30] : memref<504x1xf32, #tpu.memory_space<vmem>>, vector<504x1xf32>
    tpu.vector_store %arg12[%c0_29, %c0_30], %43 {strides = array<i32>} : memref<504x1xf32, #tpu.memory_space<vmem>>, vector<504x1xf32>,
    return
  }
  func.func @transform_0(%arg0: i32) -> (i32, i32) {
    %c0_i32 = arith.constant 0 : i32
    %c0_i32_0 = arith.constant 0 : i32
    return %arg0, %c0_i32 : i32, i32
  }
  func.func @transform_1(%arg0: i32) -> (i32, i32) {
    %c0_i32 = arith.constant 0 : i32
    %c0_i32_0 = arith.constant 0 : i32
    %c0_i32_1 = arith.constant 0 : i32
    return %c0_i32, %c0_i32_0 : i32, i32
  }
  func.func @transform_2(%arg0: i32) -> (i32, i32) {
    %c0_i32 = arith.constant 0 : i32
    %c0_i32_0 = arith.constant 0 : i32
    %c0_i32_1 = arith.constant 0 : i32
    return %c0_i32, %c0_i32_0 : i32, i32
  }
  func.func @transform_3(%arg0: i32) -> (i32, i32) {
    %c0_i32 = arith.constant 0 : i32
    %c0_i32_0 = arith.constant 0 : i32
    %c0_i32_1 = arith.constant 0 : i32
    return %c0_i32, %c0_i32_0 : i32, i32
  }
  func.func @transform_4(%arg0: i32) -> (i32, i32) {
    %c0_i32 = arith.constant 0 : i32
    %c0_i32_0 = arith.constant 0 : i32
    %c0_i32_1 = arith.constant 0 : i32
    return %c0_i32, %c0_i32_0 : i32, i32
  }
  func.func @transform_5(%arg0: i32) -> (i32, i32) {
    %c0_i32 = arith.constant 0 : i32
    %c0_i32_0 = arith.constant 0 : i32
    %c0_i32_1 = arith.constant 0 : i32
    return %c0_i32, %c0_i32_0 : i32, i32
  }
  func.func @transform_6(%arg0: i32) -> (i32, i32) {
    %c0_i32 = arith.constant 0 : i32
    %c0_i32_0 = arith.constant 0 : i32
    %c0_i32_1 = arith.constant 0 : i32
    return %c0_i32, %c0_i32_0 : i32, i32
  }
  func.func @transform_7(%arg0: i32) -> (i32, i32) {
    %c0_i32 = arith.constant 0 : i32
    %c0_i32_0 = arith.constant 0 : i32
    %c0_i32_1 = arith.constant 0 : i32
    return %c0_i32, %c0_i32_0 : i32, i32
  }
  func.func @transform_8(%arg0: i32) -> (i32, i32) {
    %c0_i32 = arith.constant 0 : i32
    %c0_i32_0 = arith.constant 0 : i32
    %c0_i32_1 = arith.constant 0 : i32
    return %c0_i32, %c0_i32_0 : i32, i32
  }
  func.func @transform_9(%arg0: i32) -> (i32, i32) {
    %c0_i32 = arith.constant 0 : i32
    %c0_i32_0 = arith.constant 0 : i32
    %c0_i32_1 = arith.constant 0 : i32
    return %c0_i32, %c0_i32_0 : i32, i32
  }
  func.func @transform_10(%arg0: i32) -> (i32, i32) {
    %c0_i32 = arith.constant 0 : i32
    %c0_i32_0 = arith.constant 0 : i32
    %c0_i32_1 = arith.constant 0 : i32
    return %c0_i32, %c0_i32_0 : i32, i32
  }
  func.func @transform_11(%arg0: i32) -> (i32, i32) {
    %c0_i32 = arith.constant 0 : i32
    %c0_i32_0 = arith.constant 0 : i32
    return %arg0, %c0_i32 : i32, i32
  }
}

</mosaic_0001>

<llo_original>
// kernel: tpu_custom_call.1
$region0: #{tpu_custom_call.1}
  #allocation0 [shape = 'u32[]', space=smem, size = 0x4, offset = 0x4, fixed_abs, tag = 'smem constant byte address 0x4 - core index']
  #allocation1 [shape = 'u32[144,128]{1,0:T(1,128)}', space=vmem, size = 0x12000, scoped, tag = 'internal scratch']
  #allocation2 [shape = 'f32[1,1]{1,0:T(1,128)S(1)}', space=vmem, size = 0x200, scoped, tag = 'scoped memory for tpu_custom_call.1']
  %s0 = inlined_call_operand.vmem [shape: f32[1000,10], index: 0, kind: input, shape index: {}]
  %s1 = inlined_call_operand.vmem [shape: bf16[10,256], index: 1, kind: input, shape index: {}]
  %s2 = inlined_call_operand.vmem [shape: f32[1,256], index: 2, kind: input, shape index: {}]
  %s3 = inlined_call_operand.vmem [shape: bf16[256,256], index: 3, kind: input, shape index: {}]
  %s4 = inlined_call_operand.vmem [shape: f32[1,256], index: 4, kind: input, shape index: {}]
  %s5 = inlined_call_operand.vmem [shape: bf16[256,256], index: 5, kind: input, shape index: {}]
  %s6 = inlined_call_operand.vmem [shape: f32[1,256], index: 6, kind: input, shape index: {}]
  %s7 = inlined_call_operand.vmem [shape: bf16[256,256], index: 7, kind: input, shape index: {}]
  %s8 = inlined_call_operand.vmem [shape: f32[1,256], index: 8, kind: input, shape index: {}]
  %s9 = inlined_call_operand.vmem [shape: bf16[1,256], index: 9, kind: input, shape index: {}]
  %s10 = inlined_call_operand.<no memory space> [shape: f32[1,1], index: 10, kind: input, shape index: {}]
  %s11 = inlined_call_operand.vmem [shape: f32[1000,1], index: 11, kind: output, shape index: {}]
  %s12 = sld [smem:[#allocation0]]
  $region125: #{tpu_custom_call.1} parent=0
    _
  %s14 = ssub.s32 1, %s12
  %s15 = scalar_select 0, %s14, %s12
  %v16 = vstv %s10
  %17 = vst [vmem:[#allocation2] sm:$0x1] %v16
  $region1: #{tpu_custom_call.1} parent=0
    #allocation3 [shape = 'u8[516096]{0}', space=vmem, size = 0x7e000, scoped, tag = 'output window, operand 0']
    loop: start=0, step=1, limit=4
    $region2: #{tpu_custom_call.1} parent=1 // loop_pre_header
      _
    $region3: #{tpu_custom_call.1} parent=1 // loop_header
      %s19 = sphi 0, %s23
      %p20 = scmp.ge.s32.totalorder %s19, 4
      %s29 = sphi 0, %s31
      %s32 = sphi 0, %s29
      %s33 = sphi 0, %s32
      %s49 = sphi 0, %s33
      %s53 = sphi 0, %s53
      %s55 = sphi 0, %s53
      %s56 = sphi 0, %s55
      %s70 = sphi 0, %s56
      %s74 = sphi 0, %s74
      %s76 = sphi 0, %s74
      %s77 = sphi 0, %s76
      %s91 = sphi 0, %s77
      %s95 = sphi 0, %s95
      %s97 = sphi 0, %s95
      %s98 = sphi 0, %s97
      %s112 = sphi 0, %s98
      %s116 = sphi 0, %s116
      %s118 = sphi 0, %s116
      %s119 = sphi 0, %s118
      %s133 = sphi 0, %s119
      %s137 = sphi 0, %s137
      %s139 = sphi 0, %s137
      %s140 = sphi 0, %s139
      %s154 = sphi 0, %s140
      %s158 = sphi 0, %s158
      %s160 = sphi 0, %s158
      %s161 = sphi 0, %s160
      %s175 = sphi 0, %s161
      %s179 = sphi 0, %s179
      %s181 = sphi 0, %s179
      %s182 = sphi 0, %s181
      %s196 = sphi 0, %s182
      %s200 = sphi 0, %s200
      %s202 = sphi 0, %s200
      %s203 = sphi 0, %s202
      %s217 = sphi 0, %s203
      %s221 = sphi 0, %s221
      %s223 = sphi 0, %s221
      %s224 = sphi 0, %s223
      %s238 = sphi 0, %s224
      %s242 = sphi 0, %s242
      %s244 = sphi 0, %s242
      %s245 = sphi 0, %s244
      %s259 = sphi 0, %s245
      %s265 = sphi 0, %s267
      %s268 = sphi 0, %s265
      %s269 = sphi 0, %s268
      %s285 = sphi 0, %s269
    $region4: #{tpu_custom_call.1} parent=1 // loop_header_branch
      %22 = sbr.rel (%p20) target = $region8
    $region5: #{tpu_custom_call.1} parent=1 // loop_body
      %s24 = ssub.s32 %s19, 1
      %s25 = ssub.s32 %s19, 2
      %s26 = sadd.s32 %s19, 1
      %s27 = ssub.s32 %s19, %s26
      %p28 = scmp.eq.s32.totalorder %s27, 0
      %s30 = sadd.s32 %s29, 1
      %s31 = scalar_select %p28, %s29, %s30
      %p34 = pneg %p28
      %p35 = scmp.eq.s32.totalorder %s19, 1
      %p36 = por %p34, %p35
      %p37 = scmp.ne.s32.totalorder %s29, %s32
      %p38 = scmp.eq.s32.totalorder %s19, 0
      %p39 = por %p37, %p38
      %p40 = scmp.ne.s32.totalorder %s29, %s32
      %p41 = scmp.eq.s32.totalorder %s24, 1
      %p42 = por %p40, %p41
      %p43 = scmp.ne.s32.totalorder %s32, %s33
      %p44 = scmp.eq.s32.totalorder %s24, 0
      %p45 = por %p43, %p44
      %p46 = scmp.ne.s32.totalorder %s32, %s33
      %p47 = scmp.eq.s32.totalorder %s25, 1
      %p48 = por %p46, %p47
      %p50 = scmp.ne.s32.totalorder %s33, %s49
      %p51 = scmp.eq.s32.totalorder %s25, 0
      %p52 = por %p50, %p51
      %s54 = sadd.s32 %s53, 1
      %p57 = scmp.eq.s32.totalorder %s19, 1
      %p58 = scmp.ne.s32.totalorder %s53, %s55
      %p59 = scmp.eq.s32.totalorder %s19, 0
      %p60 = por %p58, %p59
      %p61 = scmp.ne.s32.totalorder %s53, %s55
      %p62 = scmp.eq.s32.totalorder %s24, 1
      %p63 = por %p61, %p62
      %p64 = scmp.ne.s32.totalorder %s55, %s56
      %p65 = scmp.eq.s32.totalorder %s24, 0
      %p66 = por %p64, %p65
      %p67 = scmp.ne.s32.totalorder %s55, %s56
      %p68 = scmp.eq.s32.totalorder %s25, 1
      %p69 = por %p67, %p68
      %p71 = scmp.ne.s32.totalorder %s56, %s70
      %p72 = scmp.eq.s32.totalorder %s25, 0
      %p73 = por %p71, %p72
      %s75 = sadd.s32 %s74, 1
      %p78 = scmp.eq.s32.totalorder %s19, 1
      %p79 = scmp.ne.s32.totalorder %s74, %s76
      %p80 = scmp.eq.s32.totalorder %s19, 0
      %p81 = por %p79, %p80
      %p82 = scmp.ne.s32.totalorder %s74, %s76
      %p83 = scmp.eq.s32.totalorder %s24, 1
      %p84 = por %p82, %p83
      %p85 = scmp.ne.s32.totalorder %s76, %s77
      %p86 = scmp.eq.s32.totalorder %s24, 0
      %p87 = por %p85, %p86
      %p88 = scmp.ne.s32.totalorder %s76, %s77
      %p89 = scmp.eq.s32.totalorder %s25, 1
      %p90 = por %p88, %p89
      %p92 = scmp.ne.s32.totalorder %s77, %s91
      %p93 = scmp.eq.s32.totalorder %s25, 0
      %p94 = por %p92, %p93
      %s96 = sadd.s32 %s95, 1
      %p99 = scmp.eq.s32.totalorder %s19, 1
      %p100 = scmp.ne.s32.totalorder %s95, %s97
      %p101 = scmp.eq.s32.totalorder %s19, 0
      %p102 = por %p100, %p101
      %p103 = scmp.ne.s32.totalorder %s95, %s97
      %p104 = scmp.eq.s32.totalorder %s24, 1
      %p105 = por %p103, %p104
      %p106 = scmp.ne.s32.totalorder %s97, %s98
      %p107 = scmp.eq.s32.totalorder %s24, 0
      %p108 = por %p106, %p107
      %p109 = scmp.ne.s32.totalorder %s97, %s98
      %p110 = scmp.eq.s32.totalorder %s25, 1
      %p111 = por %p109, %p110
      %p113 = scmp.ne.s32.totalorder %s98, %s112
      %p114 = scmp.eq.s32.totalorder %s25, 0
      %p115 = por %p113, %p114
      %s117 = sadd.s32 %s116, 1
      %p120 = scmp.eq.s32.totalorder %s19, 1
      %p121 = scmp.ne.s32.totalorder %s116, %s118
      %p122 = scmp.eq.s32.totalorder %s19, 0
      %p123 = por %p121, %p122
      %p124 = scmp.ne.s32.totalorder %s116, %s118
      %p125 = scmp.eq.s32.totalorder %s24, 1
      %p126 = por %p124, %p125
      %p127 = scmp.ne.s32.totalorder %s118, %s119
      %p128 = scmp.eq.s32.totalorder %s24, 0
      %p129 = por %p127, %p128
      %p130 = scmp.ne.s32.totalorder %s118, %s119
      %p131 = scmp.eq.s32.totalorder %s25, 1
      %p132 = por %p130, %p131
      %p134 = scmp.ne.s32.totalorder %s119, %s133
      %p135 = scmp.eq.s32.totalorder %s25, 0
      %p136 = por %p134, %p135
      %s138 = sadd.s32 %s137, 1
      %p141 = scmp.eq.s32.totalorder %s19, 1
      %p142 = scmp.ne.s32.totalorder %s137, %s139
      %p143 = scmp.eq.s32.totalorder %s19, 0
      %p144 = por %p142, %p143
      %p145 = scmp.ne.s32.totalorder %s137, %s139
      %p146 = scmp.eq.s32.totalorder %s24, 1
      %p147 = por %p145, %p146
      %p148 = scmp.ne.s32.totalorder %s139, %s140
      %p149 = scmp.eq.s32.totalorder %s24, 0
      %p150 = por %p148, %p149
      %p151 = scmp.ne.s32.totalorder %s139, %s140
      %p152 = scmp.eq.s32.totalorder %s25, 1
      %p153 = por %p151, %p152
      %p155 = scmp.ne.s32.totalorder %s140, %s154
      %p156 = scmp.eq.s32.totalorder %s25, 0
      %p157 = por %p155, %p156
      %s159 = sadd.s32 %s158, 1
      %p162 = scmp.eq.s32.totalorder %s19, 1
      %p163 = scmp.ne.s32.totalorder %s158, %s160
      %p164 = scmp.eq.s32.totalorder %s19, 0
      %p165 = por %p163, %p164
      %p166 = scmp.ne.s32.totalorder %s158, %s160
      %p167 = scmp.eq.s32.totalorder %s24, 1
      %p168 = por %p166, %p167
      %p169 = scmp.ne.s32.totalorder %s160, %s161
      %p170 = scmp.eq.s32.totalorder %s24, 0
      %p171 = por %p169, %p170
      %p172 = scmp.ne.s32.totalorder %s160, %s161
      %p173 = scmp.eq.s32.totalorder %s25, 1
      %p174 = por %p172, %p173
      %p176 = scmp.ne.s32.totalorder %s161, %s175
      %p177 = scmp.eq.s32.totalorder %s25, 0
      %p178 = por %p176, %p177
      %s180 = sadd.s32 %s179, 1
      %p183 = scmp.eq.s32.totalorder %s19, 1
      %p184 = scmp.ne.s32.totalorder %s179, %s181
      %p185 = scmp.eq.s32.totalorder %s19, 0
      %p186 = por %p184, %p185
      %p187 = scmp.ne.s32.totalorder %s179, %s181
      %p188 = scmp.eq.s32.totalorder %s24, 1
      %p189 = por %p187, %p188
      %p190 = scmp.ne.s32.totalorder %s181, %s182
      %p191 = scmp.eq.s32.totalorder %s24, 0
      %p192 = por %p190, %p191
      %p193 = scmp.ne.s32.totalorder %s181, %s182
      %p194 = scmp.eq.s32.totalorder %s25, 1
      %p195 = por %p193, %p194
      %p197 = scmp.ne.s32.totalorder %s182, %s196
      %p198 = scmp.eq.s32.totalorder %s25, 0
      %p199 = por %p197, %p198
      %s201 = sadd.s32 %s200, 1
      %p204 = scmp.eq.s32.totalorder %s19, 1
      %p205 = scmp.ne.s32.totalorder %s200, %s202
      %p206 = scmp.eq.s32.totalorder %s19, 0
      %p207 = por %p205, %p206
      %p208 = scmp.ne.s32.totalorder %s200, %s202
      %p209 = scmp.eq.s32.totalorder %s24, 1
      %p210 = por %p208, %p209
      %p211 = scmp.ne.s32.totalorder %s202, %s203
      %p212 = scmp.eq.s32.totalorder %s24, 0
      %p213 = por %p211, %p212
      %p214 = scmp.ne.s32.totalorder %s202, %s203
      %p215 = scmp.eq.s32.totalorder %s25, 1
      %p216 = por %p214, %p215
      %p218 = scmp.ne.s32.totalorder %s203, %s217
      %p219 = scmp.eq.s32.totalorder %s25, 0
      %p220 = por %p218, %p219
      %s222 = sadd.s32 %s221, 1
      %p225 = scmp.eq.s32.totalorder %s19, 1
      %p226 = scmp.ne.s32.totalorder %s221, %s223
      %p227 = scmp.eq.s32.totalorder %s19, 0
      %p228 = por %p226, %p227
      %p229 = scmp.ne.s32.totalorder %s221, %s223
      %p230 = scmp.eq.s32.totalorder %s24, 1
      %p231 = por %p229, %p230
      %p232 = scmp.ne.s32.totalorder %s223, %s224
      %p233 = scmp.eq.s32.totalorder %s24, 0
      %p234 = por %p232, %p233
      %p235 = scmp.ne.s32.totalorder %s223, %s224
      %p236 = scmp.eq.s32.totalorder %s25, 1
      %p237 = por %p235, %p236
      %p239 = scmp.ne.s32.totalorder %s224, %s238
      %p240 = scmp.eq.s32.totalorder %s25, 0
      %p241 = por %p239, %p240
      %s243 = sadd.s32 %s242, 1
      %p246 = scmp.eq.s32.totalorder %s19, 1
      %p247 = scmp.ne.s32.totalorder %s242, %s244
      %p248 = scmp.eq.s32.totalorder %s19, 0
      %p249 = por %p247, %p248
      %p250 = scmp.ne.s32.totalorder %s242, %s244
      %p251 = scmp.eq.s32.totalorder %s24, 1
      %p252 = por %p250, %p251
      %p253 = scmp.ne.s32.totalorder %s244, %s245
      %p254 = scmp.eq.s32.totalorder %s24, 0
      %p255 = por %p253, %p254
      %p256 = scmp.ne.s32.totalorder %s244, %s245
      %p257 = scmp.eq.s32.totalorder %s25, 1
      %p258 = por %p256, %p257
      %p260 = scmp.ne.s32.totalorder %s245, %s259
      %p261 = scmp.eq.s32.totalorder %s25, 0
      %p262 = por %p260, %p261
      %s263 = ssub.s32 %s19, %s26
      %p264 = scmp.eq.s32.totalorder %s263, 0
      %s266 = sadd.s32 %s265, 1
      %s267 = scalar_select %p264, %s265, %s266
      %p270 = pneg %p264
      %p271 = scmp.eq.s32.totalorder %s19, 1
      %p272 = por %p270, %p271
      %p273 = scmp.ne.s32.totalorder %s265, %s268
      %p274 = scmp.eq.s32.totalorder %s19, 0
      %p275 = por %p273, %p274
      %p276 = scmp.ne.s32.totalorder %s265, %s268
      %p277 = scmp.eq.s32.totalorder %s24, 1
      %p278 = por %p276, %p277
      %p279 = scmp.ne.s32.totalorder %s268, %s269
      %p280 = scmp.eq.s32.totalorder %s24, 0
      %p281 = por %p279, %p280
      %p282 = scmp.ne.s32.totalorder %s268, %s269
      %p283 = scmp.eq.s32.totalorder %s25, 1
      %p284 = por %p282, %p283
      %p286 = scmp.ne.s32.totalorder %s269, %s285
      %p287 = scmp.eq.s32.totalorder %s25, 0
      %p288 = por %p286, %p287
      %p289 = scmp.le.s32.totalorder 1, %s19
      %p290 = scmp.lt.s32.totalorder %s19, 3
      %p291 = pnand %p289, %p290
      %p292 = pneg %p291
      // Predicated region
      $region9: #{tpu_custom_call.1} parent=5 // pred_check
        _
      $region10: #{tpu_custom_call.1} parent=5 // pred_check_branch
        %294 = sbr.rel (%p291) target = $region12
      $region11: #{tpu_custom_call.1} parent=5 // pred_region
        %s295 = ssub.s32 %s19, 1
        // Predicated region
        $region13: #{tpu_custom_call.1} parent=11 // pred_check
          %p296 = pneg %p66
        $region14: #{tpu_custom_call.1} parent=11 // pred_check_branch
          %298 = sbr.rel (%p296) target = $region16
        $region15: #{tpu_custom_call.1} parent=11 // pred_region
          _
        $region16: #{tpu_custom_call.1} parent=11 // pred_fallthru
          _
        // Predicated region
        $region17: #{tpu_custom_call.1} parent=11 // pred_check
          %p299 = pneg %p87
        $region18: #{tpu_custom_call.1} parent=11 // pred_check_branch
          %301 = sbr.rel (%p299) target = $region20
        $region19: #{tpu_custom_call.1} parent=11 // pred_region
          _
        $region20: #{tpu_custom_call.1} parent=11 // pred_fallthru
          _
        // Predicated region
        $region21: #{tpu_custom_call.1} parent=11 // pred_check
          %p302 = pneg %p108
        $region22: #{tpu_custom_call.1} parent=11 // pred_check_branch
          %304 = sbr.rel (%p302) target = $region24
        $region23: #{tpu_custom_call.1} parent=11 // pred_region
          _
        $region24: #{tpu_custom_call.1} parent=11 // pred_fallthru
          _
        // Predicated region
        $region25: #{tpu_custom_call.1} parent=11 // pred_check
          %p305 = pneg %p129
        $region26: #{tpu_custom_call.1} parent=11 // pred_check_branch
          %307 = sbr.rel (%p305) target = $region28
        $region27: #{tpu_custom_call.1} parent=11 // pred_region
          _
        $region28: #{tpu_custom_call.1} parent=11 // pred_fallthru
          _
        // Predicated region
        $region29: #{tpu_custom_call.1} parent=11 // pred_check
          %p308 = pneg %p150
        $region30: #{tpu_custom_call.1} parent=11 // pred_check_branch
          %310 = sbr.rel (%p308) target = $region32
        $region31: #{tpu_custom_call.1} parent=11 // pred_region
          _
        $region32: #{tpu_custom_call.1} parent=11 // pred_fallthru
          _
        // Predicated region
        $region33: #{tpu_custom_call.1} parent=11 // pred_check
          %p311 = pneg %p171
        $region34: #{tpu_custom_call.1} parent=11 // pred_check_branch
          %313 = sbr.rel (%p311) target = $region36
        $region35: #{tpu_custom_call.1} parent=11 // pred_region
          _
        $region36: #{tpu_custom_call.1} parent=11 // pred_fallthru
          _
        // Predicated region
        $region37: #{tpu_custom_call.1} parent=11 // pred_check
          %p314 = pneg %p192
        $region38: #{tpu_custom_call.1} parent=11 // pred_check_branch
          %316 = sbr.rel (%p314) target = $region40
        $region39: #{tpu_custom_call.1} parent=11 // pred_region
          _
        $region40: #{tpu_custom_call.1} parent=11 // pred_fallthru
          _
        // Predicated region
        $region41: #{tpu_custom_call.1} parent=11 // pred_check
          %p317 = pneg %p213
        $region42: #{tpu_custom_call.1} parent=11 // pred_check_branch
          %319 = sbr.rel (%p317) target = $region44
        $region43: #{tpu_custom_call.1} parent=11 // pred_region
          _
        $region44: #{tpu_custom_call.1} parent=11 // pred_fallthru
          _
        // Predicated region
        $region45: #{tpu_custom_call.1} parent=11 // pred_check
          %p320 = pneg %p234
        $region46: #{tpu_custom_call.1} parent=11 // pred_check_branch
          %322 = sbr.rel (%p320) target = $region48
        $region47: #{tpu_custom_call.1} parent=11 // pred_region
          _
        $region48: #{tpu_custom_call.1} parent=11 // pred_fallthru
          _
        // Predicated region
        $region49: #{tpu_custom_call.1} parent=11 // pred_check
          %p323 = pneg %p255
        $region50: #{tpu_custom_call.1} parent=11 // pred_check_branch
          %325 = sbr.rel (%p323) target = $region52
        $region51: #{tpu_custom_call.1} parent=11 // pred_region
          _
        $region52: #{tpu_custom_call.1} parent=11 // pred_fallthru
          _
      $region12: #{tpu_custom_call.1} parent=5 // pred_fallthru
        _
      %p326 = scmp.lt.s32.totalorder %s19, 2
      // Predicated region
      $region53: #{tpu_custom_call.1} parent=5 // pred_check
        %p327 = pneg %p326
      $region54: #{tpu_custom_call.1} parent=5 // pred_check_branch
        %329 = sbr.rel (%p327) target = $region56
      $region55: #{tpu_custom_call.1} parent=5 // pred_region
        // Predicated region
        $region57: #{tpu_custom_call.1} parent=55 // pred_check
          %p330 = pneg %p39
        $region58: #{tpu_custom_call.1} parent=55 // pred_check_branch
          %332 = sbr.rel (%p330) target = $region60
        $region59: #{tpu_custom_call.1} parent=55 // pred_region
          %s333 = smul.u32 63, %s19
          %s334 = ssub.s32 125, %s333
          %p335 = scmp.lt.s32.totalorder %s334, 63
          %s336 = scalar_select %p335, %s334, 63
          %s337 = smul.u32 128, %s336
          %p338 = scmp.lt.s32.totalorder %s333, 124
          %s339 = scalar_select %p338, %s333, 124
          %s340 = smul.addr %s339, 8
          %s341 = scalar_lea.vmem %s0, %s340
          %s342 = smul.u32 63, %s19
          %s343 = ssub.s32 125, %s342
          %p344 = scmp.lt.s32.totalorder %s343, 63
          %s345 = scalar_select %p344, %s343, 63
          %s346 = smul.u32 128, %s345
        $region60: #{tpu_custom_call.1} parent=55 // pred_fallthru
          _
      $region56: #{tpu_custom_call.1} parent=5 // pred_fallthru
        _
      %p347 = scmp.le.s32.totalorder 1, %s19
      %p348 = scmp.lt.s32.totalorder %s19, 3
      %p349 = pnand %p347, %p348
      %p350 = pneg %p349
      // Predicated region
      $region61: #{tpu_custom_call.1} parent=5 // pred_check
        _
      $region62: #{tpu_custom_call.1} parent=5 // pred_check_branch
        %352 = sbr.rel (%p349) target = $region64
      $region63: #{tpu_custom_call.1} parent=5 // pred_region
        %s353 = ssub.s32 %s19, 1
        %s354 = smul.u32 63, %s24
        %s355 = ssub.s32 125, %s354
        %p356 = scmp.lt.s32.totalorder %s355, 63
        %s357 = scalar_select %p356, %s355, 63
        %s358 = smul.u32 128, %s357
        %p359 = scmp.lt.s32.totalorder %s354, 124
        %s360 = scalar_select %p359, %s354, 124
        %s361 = smul.addr %s360, 8
        %s362 = scalar_lea.vmem %s0, %s361
        %p363 = pneg %p45
        %p364 = pneg %p42
        %p365 = pneg %p66
        %p366 = pneg %p63
        %p367 = pneg %p87
        %p368 = pneg %p84
        %p369 = pneg %p108
        %p370 = pneg %p105
        %p371 = pneg %p129
        %p372 = pneg %p126
        %p373 = pneg %p150
        %p374 = pneg %p147
        %p375 = pneg %p171
        %p376 = pneg %p168
        %p377 = pneg %p192
        %p378 = pneg %p189
        %p379 = pneg %p213
        %p380 = pneg %p210
        %p381 = pneg %p234
        %p382 = pneg %p231
        %p383 = pneg %p255
        %p384 = pneg %p252
        %p385 = pneg %p281
        %p386 = pneg %p278
        %s387 = sand.u32 %s268, 1
        %s388 = sand.u32 %s268, 1
        %s389 = smul.addr %s388, 504
        %s390 = scalar_lea.vmem [#allocation3], %s389
        %s391 = smul.u32 63, %s24
        %s392 = ssub.s32 125, %s391
        %p393 = scmp.lt.s32.totalorder %s392, 63
        %s394 = scalar_select %p393, %s392, 63
        %s395 = smul.u32 128, %s394
        %p396 = scmp.lt.s32.totalorder %s391, 124
        %s397 = scalar_select %p396, %s391, 124
        %s398 = smul.addr %s397, 8
        %s399 = scalar_lea.vmem %s0, %s398
        %s400 = smul.u32 63, %s24
        %s401 = ssub.s32 125, %s400
        %p402 = scmp.lt.s32.totalorder %s401, 63
        %s403 = scalar_select %p402, %s401, 63
        %s404 = smul.u32 128, %s403
        %s405 = smul.u32 63, %s24
        %s406 = ssub.s32 125, %s405
        %p407 = scmp.lt.s32.totalorder %s406, 63
        %s408 = scalar_select %p407, %s406, 63
        %s409 = smul.u32 128, %s408
        %v411 = vld [vmem:[%s399] sm:$0xff]
        %v412 = vld [vmem:[%s399 + $0x8] sm:$0xff]
        %v413 = vld [vmem:[%s399 + $0x10] sm:$0xff]
        %v414 = vld [vmem:[%s399 + $0x18] sm:$0xff]
        %v415 = vld [vmem:[%s399 + $0x20] sm:$0xff]
        %v416 = vld [vmem:[%s399 + $0x28] sm:$0xff]
        %v417 = vld [vmem:[%s399 + $0x30] sm:$0xff]
        %v418 = vld [vmem:[%s399 + $0x38] sm:$0xff]
        %v419 = vld [vmem:[%s399 + $0x40] sm:$0xff]
        %v420 = vld [vmem:[%s399 + $0x48] sm:$0xff]
        %v421 = vld [vmem:[%s399 + $0x50] sm:$0xff]
        %v422 = vld [vmem:[%s399 + $0x58] sm:$0xff]
        %v423 = vld [vmem:[%s399 + $0x60] sm:$0xff]
        %v424 = vld [vmem:[%s399 + $0x68] sm:$0xff]
        %v425 = vld [vmem:[%s399 + $0x70] sm:$0xff]
        %v426 = vld [vmem:[%s399 + $0x78] sm:$0xff]
        %v427 = vld [vmem:[%s399 + $0x80] sm:$0xff]
        %v428 = vld [vmem:[%s399 + $0x88] sm:$0xff]
        %v429 = vld [vmem:[%s399 + $0x90] sm:$0xff]
        %v430 = vld [vmem:[%s399 + $0x98] sm:$0xff]
        %v431 = vld [vmem:[%s399 + $0xa0] sm:$0xff]
        %v432 = vld [vmem:[%s399 + $0xa8] sm:$0xff]
        %v433 = vld [vmem:[%s399 + $0xb0] sm:$0xff]
        %v434 = vld [vmem:[%s399 + $0xb8] sm:$0xff]
        %v435 = vld [vmem:[%s399 + $0xc0] sm:$0xff]
        %v436 = vld [vmem:[%s399 + $0xc8] sm:$0xff]
        %v437 = vld [vmem:[%s399 + $0xd0] sm:$0xff]
        %v438 = vld [vmem:[%s399 + $0xd8] sm:$0xff]
        %v439 = vld [vmem:[%s399 + $0xe0] sm:$0xff]
        %v440 = vld [vmem:[%s399 + $0xe8] sm:$0xff]
        %v441 = vld [vmem:[%s399 + $0xf0] sm:$0xff]
        %v442 = vld [vmem:[%s399 + $0xf8] sm:$0xff]
        %v443 = vld [vmem:[%s399 + $0x100] sm:$0xff]
        %v444 = vld [vmem:[%s399 + $0x108] sm:$0xff]
        %v445 = vld [vmem:[%s399 + $0x110] sm:$0xff]
        %v446 = vld [vmem:[%s399 + $0x118] sm:$0xff]
        %v447 = vld [vmem:[%s399 + $0x120] sm:$0xff]
        %v448 = vld [vmem:[%s399 + $0x128] sm:$0xff]
        %v449 = vld [vmem:[%s399 + $0x130] sm:$0xff]
        %v450 = vld [vmem:[%s399 + $0x138] sm:$0xff]
        %v451 = vld [vmem:[%s399 + $0x140] sm:$0xff]
        %v452 = vld [vmem:[%s399 + $0x148] sm:$0xff]
        %v453 = vld [vmem:[%s399 + $0x150] sm:$0xff]
        %v454 = vld [vmem:[%s399 + $0x158] sm:$0xff]
        %v455 = vld [vmem:[%s399 + $0x160] sm:$0xff]
        %v456 = vld [vmem:[%s399 + $0x168] sm:$0xff]
        %v457 = vld [vmem:[%s399 + $0x170] sm:$0xff]
        %v458 = vld [vmem:[%s399 + $0x178] sm:$0xff]
        %v459 = vld [vmem:[%s399 + $0x180] sm:$0xff]
        %v460 = vld [vmem:[%s399 + $0x188] sm:$0xff]
        %v461 = vld [vmem:[%s399 + $0x190] sm:$0xff]
        %v462 = vld [vmem:[%s399 + $0x198] sm:$0xff]
        %v463 = vld [vmem:[%s399 + $0x1a0] sm:$0xff]
        %v464 = vld [vmem:[%s399 + $0x1a8] sm:$0xff]
        %v465 = vld [vmem:[%s399 + $0x1b0] sm:$0xff]
        %v466 = vld [vmem:[%s399 + $0x1b8] sm:$0xff]
        %v467 = vld [vmem:[%s399 + $0x1c0] sm:$0xff]
        %v468 = vld [vmem:[%s399 + $0x1c8] sm:$0xff]
        %v469 = vld [vmem:[%s399 + $0x1d0] sm:$0xff]
        %v470 = vld [vmem:[%s399 + $0x1d8] sm:$0xff]
        %v471 = vld [vmem:[%s399 + $0x1e0] sm:$0xff]
        %v472 = vld [vmem:[%s399 + $0x1e8] sm:$0xff]
        %v473 = vld [vmem:[%s399 + $0x1f0] sm:$0xff]
        %v474 = vpack.c.bf16 %v412, %v411
        %v475 = vpack.c.bf16 %v414, %v413
        %v476 = vpack.c.bf16 %v416, %v415
        %v477 = vpack.c.bf16 %v418, %v417
        %v478 = vpack.c.bf16 %v420, %v419
        %v479 = vpack.c.bf16 %v422, %v421
        %v480 = vpack.c.bf16 %v424, %v423
        %v481 = vpack.c.bf16 %v426, %v425
        %v482 = vpack.c.bf16 %v428, %v427
        %v483 = vpack.c.bf16 %v430, %v429
        %v484 = vpack.c.bf16 %v432, %v431
        %v485 = vpack.c.bf16 %v434, %v433
        %v486 = vpack.c.bf16 %v436, %v435
        %v487 = vpack.c.bf16 %v438, %v437
        %v488 = vpack.c.bf16 %v440, %v439
        %v489 = vpack.c.bf16 %v442, %v441
        %v490 = vpack.c.bf16 %v444, %v443
        %v491 = vpack.c.bf16 %v446, %v445
        %v492 = vpack.c.bf16 %v448, %v447
        %v493 = vpack.c.bf16 %v450, %v449
        %v494 = vpack.c.bf16 %v452, %v451
        %v495 = vpack.c.bf16 %v454, %v453
        %v496 = vpack.c.bf16 %v456, %v455
        %v497 = vpack.c.bf16 %v458, %v457
        %v498 = vpack.c.bf16 %v460, %v459
        %v499 = vpack.c.bf16 %v462, %v461
        %v500 = vpack.c.bf16 %v464, %v463
        %v501 = vpack.c.bf16 %v466, %v465
        %v502 = vpack.c.bf16 %v468, %v467
        %v503 = vpack.c.bf16 %v470, %v469
        %v504 = vpack.c.bf16 %v472, %v471
        %v505 = vpack.c.bf16 %v473, %v473
        %v506 = vld [vmem:[%s1] sm:$0xff]
        %v507 = vld [vmem:[%s1 + $0x8] sm:$0x11]
        %v508 = vld [vmem:[%s2] sm:$0x3]
        %v510 = vlaneseq
        %v511 = vshrl.u32 %v510, 7
        %v512 = vsub.s32 0, %v511
        %v513 = vrot.slane %v508, %v512
        %v514 = vlaneseq
        %v515 = vshrl.u32 %v514, 7
        %v516 = vsub.s32 1, %v515
        %v517 = vrot.slane %v508, %v516
        %v522 = vunpack.c.l.b16 %v506
        %v523 = vunpack.c.h.b16 %v506
        %v524 = vunpack.c.l.b16 %v507
        %v525 = vunpack.c.h.b16 %v507
        %v526 = vpack.c.b16 %v524, %v522
        %v527 = vpack.c.b16 %v525, %v523
        %vm528 = vcmask 80896
        %v530 = vsel %vm528, %v474, 0
        %v533 = vsel %vm528, %v475, 0
        %v536 = vsel %vm528, %v476, 0
        %v539 = vsel %vm528, %v477, 0
        %v542 = vsel %vm528, %v478, 0
        %v545 = vsel %vm528, %v479, 0
        %v548 = vsel %vm528, %v480, 0
        %v551 = vsel %vm528, %v481, 0
        %v554 = vsel %vm528, %v482, 0
        %v557 = vsel %vm528, %v483, 0
        %v560 = vsel %vm528, %v484, 0
        %v563 = vsel %vm528, %v485, 0
        %v566 = vsel %vm528, %v486, 0
        %v569 = vsel %vm528, %v487, 0
        %v572 = vsel %vm528, %v488, 0
        %v575 = vsel %vm528, %v489, 0
        %v578 = vsel %vm528, %v490, 0
        %v581 = vsel %vm528, %v491, 0
        %v584 = vsel %vm528, %v492, 0
        %v587 = vsel %vm528, %v493, 0
        %v590 = vsel %vm528, %v494, 0
        %v593 = vsel %vm528, %v495, 0
        %v596 = vsel %vm528, %v496, 0
        %v599 = vsel %vm528, %v497, 0
        %v602 = vsel %vm528, %v498, 0
        %v605 = vsel %vm528, %v499, 0
        %v608 = vsel %vm528, %v500, 0
        %v611 = vsel %vm528, %v501, 0
        %v614 = vsel %vm528, %v502, 0
        %v617 = vsel %vm528, %v503, 0
        %v620 = vsel %vm528, %v504, 0
        %v623 = vsel %vm528, %v505, 0
        %vm625 = vcmask 1044480
        %v627 = vsel %vm625, %v526, 0
        %v630 = vsel %vm625, %v527, 0
        %632 = vmatprep.subr.bf16.mxu0 %v630
        %633 = vmatpush1.bf16.msra.mxu0 %v627
        %634 = vmatprep.subr.bf16.mxu0 0
        %635 = vmatpush1.bf16.msra.mxu0 0
        %636 = vmatprep.subr.bf16.mxu0 0
        %637 = vmatpush1.bf16.msra.mxu0 0
        %638 = vmatprep.subr.bf16.mxu0 0
        %639 = vmatpush1.bf16.msra.mxu0 0
        %640 = vmatprep.subr.bf16.mxu0 0
        %641 = vmatpush1.bf16.msra.mxu0 0
        %642 = vmatprep.subr.bf16.mxu0 0
        %643 = vmatpush1.bf16.msra.mxu0 0
        %644 = vmatprep.subr.bf16.mxu0 0
        %645 = vmatpush1.bf16.msra.mxu0 0
        %646 = vmatprep.subr.bf16.mxu0 0
        %647 = vmatpush1.bf16.msra.mxu0 0
        %648 = vmatprep.subr.bf16.mxu0 0
        %649 = vmatpush1.bf16.msra.mxu0 0
        %650 = vmatprep.subr.bf16.mxu0 0
        %651 = vmatpush1.bf16.msra.mxu0 0
        %652 = vmatprep.subr.bf16.mxu0 0
        %653 = vmatpush1.bf16.msra.mxu0 0
        %654 = vmatprep.subr.bf16.mxu0 0
        %655 = vmatpush1.bf16.msra.mxu0 0
        %656 = vmatprep.subr.bf16.mxu0 0
        %657 = vmatpush1.bf16.msra.mxu0 0
        %658 = vmatprep.subr.bf16.mxu0 0
        %659 = vmatpush1.bf16.msra.mxu0 0
        %660 = vmatprep.subr.bf16.mxu0 0
        %661 = vmatpush1.bf16.msra.mxu0 0
        %662 = vmatprep.subr.bf16.mxu0 0
        %663 = vmatpush1.bf16.msra.mxu0 0
        %664 = vmatprep.mubr.bf16.mxu0 0
        %665 = vmatmul.mubr.bf16.gmra.mrb[0].mxu0 %v530
        %v666 = vpop.f32.mrb[0].mxu0
        %v667 = vadd.f32 %v513, %v666
        %v668 = vpop.f32.mrb[0].mxu0
        %v669 = vadd.f32 %v517, %v668
        %v670 = vpop.f32.mrb[0].mxu0
        %v671 = vadd.f32 %v513, %v670
        %v672 = vpop.f32.mrb[0].mxu0
        %v673 = vadd.f32 %v517, %v672
        %674 = vmatprep.mubr.bf16.mxu0 0
        %675 = vmatmul.mubr.bf16.gmra.mrb[0].mxu0 %v533
        %v676 = vpop.f32.mrb[0].mxu0
        %v677 = vadd.f32 %v513, %v676
        %v678 = vpop.f32.mrb[0].mxu0
        %v679 = vadd.f32 %v517, %v678
        %v680 = vpop.f32.mrb[0].mxu0
        %v681 = vadd.f32 %v513, %v680
        %v682 = vpop.f32.mrb[0].mxu0
        %v683 = vadd.f32 %v517, %v682
        %684 = vmatprep.mubr.bf16.mxu0 0
        %685 = vmatmul.mubr.bf16.gmra.mrb[0].mxu0 %v536
        %v686 = vpop.f32.mrb[0].mxu0
        %v687 = vadd.f32 %v513, %v686
        %v688 = vpop.f32.mrb[0].mxu0
        %v689 = vadd.f32 %v517, %v688
        %v690 = vpop.f32.mrb[0].mxu0
        %v691 = vadd.f32 %v513, %v690
        %v692 = vpop.f32.mrb[0].mxu0
        %v693 = vadd.f32 %v517, %v692
        %694 = vmatprep.mubr.bf16.mxu0 0
        %695 = vmatmul.mubr.bf16.gmra.mrb[0].mxu0 %v539
        %v696 = vpop.f32.mrb[0].mxu0
        %v697 = vadd.f32 %v513, %v696
        %v698 = vpop.f32.mrb[0].mxu0
        %v699 = vadd.f32 %v517, %v698
        %v700 = vpop.f32.mrb[0].mxu0
        %v701 = vadd.f32 %v513, %v700
        %v702 = vpop.f32.mrb[0].mxu0
        %v703 = vadd.f32 %v517, %v702
        %704 = vmatprep.mubr.bf16.mxu0 0
        %705 = vmatmul.mubr.bf16.gmra.mrb[0].mxu0 %v542
        %v706 = vpop.f32.mrb[0].mxu0
        %v707 = vadd.f32 %v513, %v706
        %v708 = vpop.f32.mrb[0].mxu0
        %v709 = vadd.f32 %v517, %v708
        %v710 = vpop.f32.mrb[0].mxu0
        %v711 = vadd.f32 %v513, %v710
        %v712 = vpop.f32.mrb[0].mxu0
        %v713 = vadd.f32 %v517, %v712
        %714 = vmatprep.mubr.bf16.mxu0 0
        %715 = vmatmul.mubr.bf16.gmra.mrb[0].mxu0 %v545
        %v716 = vpop.f32.mrb[0].mxu0
        %v717 = vadd.f32 %v513, %v716
        %v718 = vpop.f32.mrb[0].mxu0
        %v719 = vadd.f32 %v517, %v718
        %v720 = vpop.f32.mrb[0].mxu0
        %v721 = vadd.f32 %v513, %v720
        %v722 = vpop.f32.mrb[0].mxu0
        %v723 = vadd.f32 %v517, %v722
        %724 = vmatprep.mubr.bf16.mxu0 0
        %725 = vmatmul.mubr.bf16.gmra.mrb[0].mxu0 %v548
        %v726 = vpop.f32.mrb[0].mxu0
        %v727 = vadd.f32 %v513, %v726
        %v728 = vpop.f32.mrb[0].mxu0
        %v729 = vadd.f32 %v517, %v728
        %v730 = vpop.f32.mrb[0].mxu0
        %v731 = vadd.f32 %v513, %v730
        %v732 = vpop.f32.mrb[0].mxu0
        %v733 = vadd.f32 %v517, %v732
        %734 = vmatprep.mubr.bf16.mxu0 0
        %735 = vmatmul.mubr.bf16.gmra.mrb[0].mxu0 %v551
        %v736 = vpop.f32.mrb[0].mxu0
        %v737 = vadd.f32 %v513, %v736
        %v738 = vpop.f32.mrb[0].mxu0
        %v739 = vadd.f32 %v517, %v738
        %v740 = vpop.f32.mrb[0].mxu0
        %v741 = vadd.f32 %v513, %v740
        %v742 = vpop.f32.mrb[0].mxu0
        %v743 = vadd.f32 %v517, %v742
        %744 = vmatprep.mubr.bf16.mxu0 0
        %745 = vmatmul.mubr.bf16.gmra.mrb[0].mxu0 %v554
        %v746 = vpop.f32.mrb[0].mxu0
        %v747 = vadd.f32 %v513, %v746
        %v748 = vpop.f32.mrb[0].mxu0
        %v749 = vadd.f32 %v517, %v748
        %v750 = vpop.f32.mrb[0].mxu0
        %v751 = vadd.f32 %v513, %v750
        %v752 = vpop.f32.mrb[0].mxu0
        %v753 = vadd.f32 %v517, %v752
        %754 = vmatprep.mubr.bf16.mxu0 0
        %755 = vmatmul.mubr.bf16.gmra.mrb[0].mxu0 %v557
        %v756 = vpop.f32.mrb[0].mxu0
        %v757 = vadd.f32 %v513, %v756
        %v758 = vpop.f32.mrb[0].mxu0
        %v759 = vadd.f32 %v517, %v758
        %v760 = vpop.f32.mrb[0].mxu0
        %v761 = vadd.f32 %v513, %v760
        %v762 = vpop.f32.mrb[0].mxu0
        %v763 = vadd.f32 %v517, %v762
        %764 = vmatprep.mubr.bf16.mxu0 0
        %765 = vmatmul.mubr.bf16.gmra.mrb[0].mxu0 %v560
        %v766 = vpop.f32.mrb[0].mxu0
        %v767 = vadd.f32 %v513, %v766
        %v768 = vpop.f32.mrb[0].mxu0
        %v769 = vadd.f32 %v517, %v768
        %v770 = vpop.f32.mrb[0].mxu0
        %v771 = vadd.f32 %v513, %v770
        %v772 = vpop.f32.mrb[0].mxu0
        %v773 = vadd.f32 %v517, %v772
        %774 = vmatprep.mubr.bf16.mxu0 0
        %775 = vmatmul.mubr.bf16.gmra.mrb[0].mxu0 %v563
        %v776 = vpop.f32.mrb[0].mxu0
        %v777 = vadd.f32 %v513, %v776
        %v778 = vpop.f32.mrb[0].mxu0
        %v779 = vadd.f32 %v517, %v778
        %v780 = vpop.f32.mrb[0].mxu0
        %v781 = vadd.f32 %v513, %v780
        %v782 = vpop.f32.mrb[0].mxu0
        %v783 = vadd.f32 %v517, %v782
        %784 = vmatprep.mubr.bf16.mxu0 0
        %785 = vmatmul.mubr.bf16.gmra.mrb[0].mxu0 %v566
        %v786 = vpop.f32.mrb[0].mxu0
        %v787 = vadd.f32 %v513, %v786
        %v788 = vpop.f32.mrb[0].mxu0
        %v789 = vadd.f32 %v517, %v788
        %v790 = vpop.f32.mrb[0].mxu0
        %v791 = vadd.f32 %v513, %v790
        %v792 = vpop.f32.mrb[0].mxu0
        %v793 = vadd.f32 %v517, %v792
        %794 = vmatprep.mubr.bf16.mxu0 0
        %795 = vmatmul.mubr.bf16.gmra.mrb[0].mxu0 %v569
        %v796 = vpop.f32.mrb[0].mxu0
        %v797 = vadd.f32 %v513, %v796
        %v798 = vpop.f32.mrb[0].mxu0
        %v799 = vadd.f32 %v517, %v798
        %v800 = vpop.f32.mrb[0].mxu0
        %v801 = vadd.f32 %v513, %v800
        %v802 = vpop.f32.mrb[0].mxu0
        %v803 = vadd.f32 %v517, %v802
        %804 = vmatprep.mubr.bf16.mxu0 0
        %805 = vmatmul.mubr.bf16.gmra.mrb[0].mxu0 %v572
        %v806 = vpop.f32.mrb[0].mxu0
        %v807 = vadd.f32 %v513, %v806
        %v808 = vpop.f32.mrb[0].mxu0
        %v809 = vadd.f32 %v517, %v808
        %v810 = vpop.f32.mrb[0].mxu0
        %v811 = vadd.f32 %v513, %v810
        %v812 = vpop.f32.mrb[0].mxu0
        %v813 = vadd.f32 %v517, %v812
        %814 = vmatprep.mubr.bf16.mxu0 0
        %815 = vmatmul.mubr.bf16.gmra.mrb[0].mxu0 %v575
        %v816 = vpop.f32.mrb[0].mxu0
        %v817 = vadd.f32 %v513, %v816
        %v818 = vpop.f32.mrb[0].mxu0
        %v819 = vadd.f32 %v517, %v818
        %v820 = vpop.f32.mrb[0].mxu0
        %v821 = vadd.f32 %v513, %v820
        %v822 = vpop.f32.mrb[0].mxu0
        %v823 = vadd.f32 %v517, %v822
        %824 = vmatprep.mubr.bf16.mxu0 0
        %825 = vmatmul.mubr.bf16.gmra.mrb[0].mxu0 %v578
        %v826 = vpop.f32.mrb[0].mxu0
        %v827 = vadd.f32 %v513, %v826
        %v828 = vpop.f32.mrb[0].mxu0
        %v829 = vadd.f32 %v517, %v828
        %v830 = vpop.f32.mrb[0].mxu0
        %v831 = vadd.f32 %v513, %v830
        %v832 = vpop.f32.mrb[0].mxu0
        %v833 = vadd.f32 %v517, %v832
        %834 = vmatprep.mubr.bf16.mxu0 0
        %835 = vmatmul.mubr.bf16.gmra.mrb[0].mxu0 %v581
        %v836 = vpop.f32.mrb[0].mxu0
        %v837 = vadd.f32 %v513, %v836
        %v838 = vpop.f32.mrb[0].mxu0
        %v839 = vadd.f32 %v517, %v838
        %v840 = vpop.f32.mrb[0].mxu0
        %v841 = vadd.f32 %v513, %v840
        %v842 = vpop.f32.mrb[0].mxu0
        %v843 = vadd.f32 %v517, %v842
        %844 = vmatprep.mubr.bf16.mxu0 0
        %845 = vmatmul.mubr.bf16.gmra.mrb[0].mxu0 %v584
        %v846 = vpop.f32.mrb[0].mxu0
        %v847 = vadd.f32 %v513, %v846
        %v848 = vpop.f32.mrb[0].mxu0
        %v849 = vadd.f32 %v517, %v848
        %v850 = vpop.f32.mrb[0].mxu0
        %v851 = vadd.f32 %v513, %v850
        %v852 = vpop.f32.mrb[0].mxu0
        %v853 = vadd.f32 %v517, %v852
        %854 = vmatprep.mubr.bf16.mxu0 0
        %855 = vmatmul.mubr.bf16.gmra.mrb[0].mxu0 %v587
        %v856 = vpop.f32.mrb[0].mxu0
        %v857 = vadd.f32 %v513, %v856
        %v858 = vpop.f32.mrb[0].mxu0
        %v859 = vadd.f32 %v517, %v858
        %v860 = vpop.f32.mrb[0].mxu0
        %v861 = vadd.f32 %v513, %v860
        %v862 = vpop.f32.mrb[0].mxu0
        %v863 = vadd.f32 %v517, %v862
        %864 = vmatprep.mubr.bf16.mxu0 0
        %865 = vmatmul.mubr.bf16.gmra.mrb[0].mxu0 %v590
        %v866 = vpop.f32.mrb[0].mxu0
        %v867 = vadd.f32 %v513, %v866
        %v868 = vpop.f32.mrb[0].mxu0
        %v869 = vadd.f32 %v517, %v868
        %v870 = vpop.f32.mrb[0].mxu0
        %v871 = vadd.f32 %v513, %v870
        %v872 = vpop.f32.mrb[0].mxu0
        %v873 = vadd.f32 %v517, %v872
        %874 = vmatprep.mubr.bf16.mxu0 0
        %875 = vmatmul.mubr.bf16.gmra.mrb[0].mxu0 %v593
        %v876 = vpop.f32.mrb[0].mxu0
        %v877 = vadd.f32 %v513, %v876
        %v878 = vpop.f32.mrb[0].mxu0
        %v879 = vadd.f32 %v517, %v878
        %v880 = vpop.f32.mrb[0].mxu0
        %v881 = vadd.f32 %v513, %v880
        %v882 = vpop.f32.mrb[0].mxu0
        %v883 = vadd.f32 %v517, %v882
        %884 = vmatprep.mubr.bf16.mxu0 0
        %885 = vmatmul.mubr.bf16.gmra.mrb[0].mxu0 %v596
        %v886 = vpop.f32.mrb[0].mxu0
        %v887 = vadd.f32 %v513, %v886
        %v888 = vpop.f32.mrb[0].mxu0
        %v889 = vadd.f32 %v517, %v888
        %v890 = vpop.f32.mrb[0].mxu0
        %v891 = vadd.f32 %v513, %v890
        %v892 = vpop.f32.mrb[0].mxu0
        %v893 = vadd.f32 %v517, %v892
        %894 = vmatprep.mubr.bf16.mxu0 0
        %895 = vmatmul.mubr.bf16.gmra.mrb[0].mxu0 %v599
        %v896 = vpop.f32.mrb[0].mxu0
        %v897 = vadd.f32 %v513, %v896
        %v898 = vpop.f32.mrb[0].mxu0
        %v899 = vadd.f32 %v517, %v898
        %v900 = vpop.f32.mrb[0].mxu0
        %v901 = vadd.f32 %v513, %v900
        %v902 = vpop.f32.mrb[0].mxu0
        %v903 = vadd.f32 %v517, %v902
        %904 = vmatprep.mubr.bf16.mxu0 0
        %905 = vmatmul.mubr.bf16.gmra.mrb[0].mxu0 %v602
        %v906 = vpop.f32.mrb[0].mxu0
        %v907 = vadd.f32 %v513, %v906
        %v908 = vpop.f32.mrb[0].mxu0
        %v909 = vadd.f32 %v517, %v908
        %v910 = vpop.f32.mrb[0].mxu0
        %v911 = vadd.f32 %v513, %v910
        %v912 = vpop.f32.mrb[0].mxu0
        %v913 = vadd.f32 %v517, %v912
        %914 = vmatprep.mubr.bf16.mxu0 0
        %915 = vmatmul.mubr.bf16.gmra.mrb[0].mxu0 %v605
        %v916 = vpop.f32.mrb[0].mxu0
        %v917 = vadd.f32 %v513, %v916
        %v918 = vpop.f32.mrb[0].mxu0
        %v919 = vadd.f32 %v517, %v918
        %v920 = vpop.f32.mrb[0].mxu0
        %v921 = vadd.f32 %v513, %v920
        %v922 = vpop.f32.mrb[0].mxu0
        %v923 = vadd.f32 %v517, %v922
        %924 = vmatprep.mubr.bf16.mxu0 0
        %925 = vmatmul.mubr.bf16.gmra.mrb[0].mxu0 %v608
        %v926 = vpop.f32.mrb[0].mxu0
        %v927 = vadd.f32 %v513, %v926
        %v928 = vpop.f32.mrb[0].mxu0
        %v929 = vadd.f32 %v517, %v928
        %v930 = vpop.f32.mrb[0].mxu0
        %v931 = vadd.f32 %v513, %v930
        %v932 = vpop.f32.mrb[0].mxu0
        %v933 = vadd.f32 %v517, %v932
        %934 = vmatprep.mubr.bf16.mxu0 0
        %935 = vmatmul.mubr.bf16.gmra.mrb[0].mxu0 %v611
        %v936 = vpop.f32.mrb[0].mxu0
        %v937 = vadd.f32 %v513, %v936
        %v938 = vpop.f32.mrb[0].mxu0
        %v939 = vadd.f32 %v517, %v938
        %v940 = vpop.f32.mrb[0].mxu0
        %v941 = vadd.f32 %v513, %v940
        %v942 = vpop.f32.mrb[0].mxu0
        %v943 = vadd.f32 %v517, %v942
        %944 = vmatprep.mubr.bf16.mxu0 0
        %945 = vmatmul.mubr.bf16.gmra.mrb[0].mxu0 %v614
        %v946 = vpop.f32.mrb[0].mxu0
        %v947 = vadd.f32 %v513, %v946
        %v948 = vpop.f32.mrb[0].mxu0
        %v949 = vadd.f32 %v517, %v948
        %v950 = vpop.f32.mrb[0].mxu0
        %v951 = vadd.f32 %v513, %v950
        %v952 = vpop.f32.mrb[0].mxu0
        %v953 = vadd.f32 %v517, %v952
        %954 = vmatprep.mubr.bf16.mxu0 0
        %955 = vmatmul.mubr.bf16.gmra.mrb[0].mxu0 %v617
        %v956 = vpop.f32.mrb[0].mxu0
        %v957 = vadd.f32 %v513, %v956
        %v958 = vpop.f32.mrb[0].mxu0
        %v959 = vadd.f32 %v517, %v958
        %v960 = vpop.f32.mrb[0].mxu0
        %v961 = vadd.f32 %v513, %v960
        %v962 = vpop.f32.mrb[0].mxu0
        %v963 = vadd.f32 %v517, %v962
        %964 = vmatprep.mubr.bf16.mxu0 0
        %965 = vmatmul.mubr.bf16.gmra.mrb[0].mxu0 %v620
        %v966 = vpop.f32.mrb[0].mxu0
        %v967 = vadd.f32 %v513, %v966
        %v968 = vpop.f32.mrb[0].mxu0
        %v969 = vadd.f32 %v517, %v968
        %v970 = vpop.f32.mrb[0].mxu0
        %v971 = vadd.f32 %v513, %v970
        %v972 = vpop.f32.mrb[0].mxu0
        %v973 = vadd.f32 %v517, %v972
        %974 = vmatprep.mubr.bf16.mxu0 0
        %975 = vmatmul.mubr.bf16.gmra.mrb[0].mxu0 %v623
        %v976 = vpop.f32.mrb[0].mxu0
        %v977 = vadd.f32 %v513, %v976
        %v978 = vpop.f32.mrb[0].mxu0
        %v979 = vadd.f32 %v517, %v978
        %v980 = vpop.f32.mrb[0].mxu0
        %v981 = vpop.f32.mrb[0].mxu0
        %982 = vdwg.mxu0
        %v983 = vmax.f32 %v667, 0.0
        %v984 = vmax.f32 %v669, 0.0
        %v985 = vmax.f32 %v671, 0.0
        %v986 = vmax.f32 %v673, 0.0
        %v987 = vmax.f32 %v677, 0.0
        %v988 = vmax.f32 %v679, 0.0
        %v989 = vmax.f32 %v681, 0.0
        %v990 = vmax.f32 %v683, 0.0
        %v991 = vmax.f32 %v687, 0.0
        %v992 = vmax.f32 %v689, 0.0
        %v993 = vmax.f32 %v691, 0.0
        %v994 = vmax.f32 %v693, 0.0
        %v995 = vmax.f32 %v697, 0.0
        %v996 = vmax.f32 %v699, 0.0
        %v997 = vmax.f32 %v701, 0.0
        %v998 = vmax.f32 %v703, 0.0
        %v999 = vmax.f32 %v707, 0.0
        %v1000 = vmax.f32 %v709, 0.0
        %v1001 = vmax.f32 %v711, 0.0
        %v1002 = vmax.f32 %v713, 0.0
        %v1003 = vmax.f32 %v717, 0.0
        %v1004 = vmax.f32 %v719, 0.0
        %v1005 = vmax.f32 %v721, 0.0
        %v1006 = vmax.f32 %v723, 0.0
        %v1007 = vmax.f32 %v727, 0.0
        %v1008 = vmax.f32 %v729, 0.0
        %v1009 = vmax.f32 %v731, 0.0
        %v1010 = vmax.f32 %v733, 0.0
        %v1011 = vmax.f32 %v737, 0.0
        %v1012 = vmax.f32 %v739, 0.0
        %v1013 = vmax.f32 %v741, 0.0
        %v1014 = vmax.f32 %v743, 0.0
        %v1015 = vmax.f32 %v747, 0.0
        %v1016 = vmax.f32 %v749, 0.0
        %v1017 = vmax.f32 %v751, 0.0
        %v1018 = vmax.f32 %v753, 0.0
        %v1019 = vmax.f32 %v757, 0.0
        %v1020 = vmax.f32 %v759, 0.0
        %v1021 = vmax.f32 %v761, 0.0
        %v1022 = vmax.f32 %v763, 0.0
        %v1023 = vmax.f32 %v767, 0.0
        %v1024 = vmax.f32 %v769, 0.0
        %v1025 = vmax.f32 %v771, 0.0
        %v1026 = vmax.f32 %v773, 0.0
        %v1027 = vmax.f32 %v777, 0.0
        %v1028 = vmax.f32 %v779, 0.0
        %v1029 = vmax.f32 %v781, 0.0
        %v1030 = vmax.f32 %v783, 0.0
        %v1031 = vmax.f32 %v787, 0.0
        %v1032 = vmax.f32 %v789, 0.0
        %v1033 = vmax.f32 %v791, 0.0
        %v1034 = vmax.f32 %v793, 0.0
        %v1035 = vmax.f32 %v797, 0.0
        %v1036 = vmax.f32 %v799, 0.0
        %v1037 = vmax.f32 %v801, 0.0
        %v1038 = vmax.f32 %v803, 0.0
        %v1039 = vmax.f32 %v807, 0.0
        %v1040 = vmax.f32 %v809, 0.0
        %v1041 = vmax.f32 %v811, 0.0
        %v1042 = vmax.f32 %v813, 0.0
        %v1043 = vmax.f32 %v817, 0.0
        %v1044 = vmax.f32 %v819, 0.0
        %v1045 = vmax.f32 %v821, 0.0
        %v1046 = vmax.f32 %v823, 0.0
        %v1047 = vmax.f32 %v827, 0.0
        %v1048 = vmax.f32 %v829, 0.0
        %v1049 = vmax.f32 %v831, 0.0
        %v1050 = vmax.f32 %v833, 0.0
        %v1051 = vmax.f32 %v837, 0.0
        %v1052 = vmax.f32 %v839, 0.0
        %v1053 = vmax.f32 %v841, 0.0
        %v1054 = vmax.f32 %v843, 0.0
        %v1055 = vmax.f32 %v847, 0.0
        %v1056 = vmax.f32 %v849, 0.0
        %v1057 = vmax.f32 %v851, 0.0
        %v1058 = vmax.f32 %v853, 0.0
        %v1059 = vmax.f32 %v857, 0.0
        %v1060 = vmax.f32 %v859, 0.0
        %v1061 = vmax.f32 %v861, 0.0
        %v1062 = vmax.f32 %v863, 0.0
        %v1063 = vmax.f32 %v867, 0.0
        %v1064 = vmax.f32 %v869, 0.0
        %v1065 = vmax.f32 %v871, 0.0
        %v1066 = vmax.f32 %v873, 0.0
        %v1067 = vmax.f32 %v877, 0.0
        %v1068 = vmax.f32 %v879, 0.0
        %v1069 = vmax.f32 %v881, 0.0
        %v1070 = vmax.f32 %v883, 0.0
        %v1071 = vmax.f32 %v887, 0.0
        %v1072 = vmax.f32 %v889, 0.0
        %v1073 = vmax.f32 %v891, 0.0
        %v1074 = vmax.f32 %v893, 0.0
        %v1075 = vmax.f32 %v897, 0.0
        %v1076 = vmax.f32 %v899, 0.0
        %v1077 = vmax.f32 %v901, 0.0
        %v1078 = vmax.f32 %v903, 0.0
        %v1079 = vmax.f32 %v907, 0.0
        %v1080 = vmax.f32 %v909, 0.0
        %v1081 = vmax.f32 %v911, 0.0
        %v1082 = vmax.f32 %v913, 0.0
        %v1083 = vmax.f32 %v917, 0.0
        %v1084 = vmax.f32 %v919, 0.0
        %v1085 = vmax.f32 %v921, 0.0
        %v1086 = vmax.f32 %v923, 0.0
        %v1087 = vmax.f32 %v927, 0.0
        %v1088 = vmax.f32 %v929, 0.0
        %v1089 = vmax.f32 %v931, 0.0
        %v1090 = vmax.f32 %v933, 0.0
        %v1091 = vmax.f32 %v937, 0.0
        %v1092 = vmax.f32 %v939, 0.0
        %v1093 = vmax.f32 %v941, 0.0
        %v1094 = vmax.f32 %v943, 0.0
        %v1095 = vmax.f32 %v947, 0.0
        %v1096 = vmax.f32 %v949, 0.0
        %v1097 = vmax.f32 %v951, 0.0
        %v1098 = vmax.f32 %v953, 0.0
        %v1099 = vmax.f32 %v957, 0.0
        %v1100 = vmax.f32 %v959, 0.0
        %v1101 = vmax.f32 %v961, 0.0
        %v1102 = vmax.f32 %v963, 0.0
        %v1103 = vmax.f32 %v967, 0.0
        %v1104 = vmax.f32 %v969, 0.0
        %v1105 = vmax.f32 %v971, 0.0
        %v1106 = vmax.f32 %v973, 0.0
        %v1107 = vmax.f32 %v977, 0.0
        %v1108 = vmax.f32 %v979, 0.0
        %v1109 = vpack.c.bf16 %v985, %v983
        %v1110 = vpack.c.bf16 %v986, %v984
        %v1111 = vpack.c.bf16 %v989, %v987
        %v1112 = vpack.c.bf16 %v990, %v988
        %v1113 = vpack.c.bf16 %v993, %v991
        %v1114 = vpack.c.bf16 %v994, %v992
        %v1115 = vpack.c.bf16 %v997, %v995
        %v1116 = vpack.c.bf16 %v998, %v996
        %v1117 = vpack.c.bf16 %v1001, %v999
        %v1118 = vpack.c.bf16 %v1002, %v1000
        %v1119 = vpack.c.bf16 %v1005, %v1003
        %v1120 = vpack.c.bf16 %v1006, %v1004
        %v1121 = vpack.c.bf16 %v1009, %v1007
        %v1122 = vpack.c.bf16 %v1010, %v1008
        %v1123 = vpack.c.bf16 %v1013, %v1011
        %v1124 = vpack.c.bf16 %v1014, %v1012
        %v1125 = vpack.c.bf16 %v1017, %v1015
        %v1126 = vpack.c.bf16 %v1018, %v1016
        %v1127 = vpack.c.bf16 %v1021, %v1019
        %v1128 = vpack.c.bf16 %v1022, %v1020
        %v1129 = vpack.c.bf16 %v1025, %v1023
        %v1130 = vpack.c.bf16 %v1026, %v1024
        %v1131 = vpack.c.bf16 %v1029, %v1027
        %v1132 = vpack.c.bf16 %v1030, %v1028
        %v1133 = vpack.c.bf16 %v1033, %v1031
        %v1134 = vpack.c.bf16 %v1034, %v1032
        %v1135 = vpack.c.bf16 %v1037, %v1035
        %v1136 = vpack.c.bf16 %v1038, %v1036
        %v1137 = vpack.c.bf16 %v1041, %v1039
        %v1138 = vpack.c.bf16 %v1042, %v1040
        %v1139 = vpack.c.bf16 %v1045, %v1043
        %v1140 = vpack.c.bf16 %v1046, %v1044
        %v1141 = vpack.c.bf16 %v1049, %v1047
        %v1142 = vpack.c.bf16 %v1050, %v1048
        %v1143 = vpack.c.bf16 %v1053, %v1051
        %v1144 = vpack.c.bf16 %v1054, %v1052
        %v1145 = vpack.c.bf16 %v1057, %v1055
        %v1146 = vpack.c.bf16 %v1058, %v1056
        %v1147 = vpack.c.bf16 %v1061, %v1059
        %v1148 = vpack.c.bf16 %v1062, %v1060
        %v1149 = vpack.c.bf16 %v1065, %v1063
        %v1150 = vpack.c.bf16 %v1066, %v1064
        %v1151 = vpack.c.bf16 %v1069, %v1067
        %v1152 = vpack.c.bf16 %v1070, %v1068
        %v1153 = vpack.c.bf16 %v1073, %v1071
        %v1154 = vpack.c.bf16 %v1074, %v1072
        %v1155 = vpack.c.bf16 %v1077, %v1075
        %v1156 = vpack.c.bf16 %v1078, %v1076
        %v1157 = vpack.c.bf16 %v1081, %v1079
        %v1158 = vpack.c.bf16 %v1082, %v1080
        %v1159 = vpack.c.bf16 %v1085, %v1083
        %v1160 = vpack.c.bf16 %v1086, %v1084
        %v1161 = vpack.c.bf16 %v1089, %v1087
        %v1162 = vpack.c.bf16 %v1090, %v1088
        %v1163 = vpack.c.bf16 %v1093, %v1091
        %v1164 = vpack.c.bf16 %v1094, %v1092
        %v1165 = vpack.c.bf16 %v1097, %v1095
        %v1166 = vpack.c.bf16 %v1098, %v1096
        %v1167 = vpack.c.bf16 %v1101, %v1099
        %v1168 = vpack.c.bf16 %v1102, %v1100
        %v1169 = vpack.c.bf16 %v1105, %v1103
        %v1170 = vpack.c.bf16 %v1106, %v1104
        %v1171 = vpack.c.bf16 %v1107, %v1107
        %v1172 = vpack.c.bf16 %v1108, %v1108
        %v1173 = vld [vmem:[%s3] sm:$0xff]
        %v1174 = vld [vmem:[%s3 + $0x8] sm:$0xff]
        %v1175 = vld [vmem:[%s3 + $0x10] sm:$0xff]
        %v1176 = vld [vmem:[%s3 + $0x18] sm:$0xff]
        %v1177 = vld [vmem:[%s3 + $0x20] sm:$0xff]
        %v1178 = vld [vmem:[%s3 + $0x28] sm:$0xff]
        %v1179 = vld [vmem:[%s3 + $0x30] sm:$0xff]
        %v1180 = vld [vmem:[%s3 + $0x38] sm:$0xff]
        %v1181 = vld [vmem:[%s3 + $0x40] sm:$0xff]
        %v1182 = vld [vmem:[%s3 + $0x48] sm:$0xff]
        %v1183 = vld [vmem:[%s3 + $0x50] sm:$0xff]
        %v1184 = vld [vmem:[%s3 + $0x58] sm:$0xff]
        %v1185 = vld [vmem:[%s3 + $0x60] sm:$0xff]
        %v1186 = vld [vmem:[%s3 + $0x68] sm:$0xff]
        %v1187 = vld [vmem:[%s3 + $0x70] sm:$0xff]
        %v1188 = vld [vmem:[%s3 + $0x78] sm:$0xff]
        %v1189 = vld [vmem:[%s3 + $0x80] sm:$0xff]
        %v1190 = vld [vmem:[%s3 + $0x88] sm:$0xff]
        %v1191 = vld [vmem:[%s3 + $0x90] sm:$0xff]
        %v1192 = vld [vmem:[%s3 + $0x98] sm:$0xff]
        %v1193 = vld [vmem:[%s3 + $0xa0] sm:$0xff]
        %v1194 = vld [vmem:[%s3 + $0xa8] sm:$0xff]
        %v1195 = vld [vmem:[%s3 + $0xb0] sm:$0xff]
        %v1196 = vld [vmem:[%s3 + $0xb8] sm:$0xff]
        %v1197 = vld [vmem:[%s3 + $0xc0] sm:$0xff]
        %v1198 = vld [vmem:[%s3 + $0xc8] sm:$0xff]
        %v1199 = vld [vmem:[%s3 + $0xd0] sm:$0xff]
        %v1200 = vld [vmem:[%s3 + $0xd8] sm:$0xff]
        %v1201 = vld [vmem:[%s3 + $0xe0] sm:$0xff]
        %v1202 = vld [vmem:[%s3 + $0xe8] sm:$0xff]
        %v1203 = vld [vmem:[%s3 + $0xf0] sm:$0xff]
        %v1204 = vld [vmem:[%s3 + $0xf8] sm:$0xff]
        %v1205 = vld [vmem:[%s4] sm:$0x3]
        %v1207 = vlaneseq
        %v1208 = vshrl.u32 %v1207, 7
        %v1209 = vsub.s32 0, %v1208
        %v1210 = vrot.slane %v1205, %v1209
        %v1211 = vlaneseq
        %v1212 = vshrl.u32 %v1211, 7
        %v1213 = vsub.s32 1, %v1212
        %v1214 = vrot.slane %v1205, %v1213
        %v1249 = vunpack.c.l.b16 %v1173
        %v1250 = vunpack.c.h.b16 %v1173
        %v1251 = vunpack.c.l.b16 %v1174
        %v1252 = vunpack.c.h.b16 %v1174
        %v1253 = vunpack.c.l.b16 %v1175
        %v1254 = vunpack.c.h.b16 %v1175
        %v1255 = vunpack.c.l.b16 %v1176
        %v1256 = vunpack.c.h.b16 %v1176
        %v1257 = vunpack.c.l.b16 %v1177
        %v1258 = vunpack.c.h.b16 %v1177
        %v1259 = vunpack.c.l.b16 %v1178
        %v1260 = vunpack.c.h.b16 %v1178
        %v1261 = vunpack.c.l.b16 %v1179
        %v1262 = vunpack.c.h.b16 %v1179
        %v1263 = vunpack.c.l.b16 %v1180
        %v1264 = vunpack.c.h.b16 %v1180
        %v1265 = vunpack.c.l.b16 %v1181
        %v1266 = vunpack.c.h.b16 %v1181
        %v1267 = vunpack.c.l.b16 %v1182
        %v1268 = vunpack.c.h.b16 %v1182
        %v1269 = vunpack.c.l.b16 %v1183
        %v1270 = vunpack.c.h.b16 %v1183
        %v1271 = vunpack.c.l.b16 %v1184
        %v1272 = vunpack.c.h.b16 %v1184
        %v1273 = vunpack.c.l.b16 %v1185
        %v1274 = vunpack.c.h.b16 %v1185
        %v1275 = vunpack.c.l.b16 %v1186
        %v1276 = vunpack.c.h.b16 %v1186
        %v1277 = vunpack.c.l.b16 %v1187
        %v1278 = vunpack.c.h.b16 %v1187
        %v1279 = vunpack.c.l.b16 %v1188
        %v1280 = vunpack.c.h.b16 %v1188
        %v1281 = vunpack.c.l.b16 %v1189
        %v1282 = vunpack.c.h.b16 %v1189
        %v1283 = vunpack.c.l.b16 %v1190
        %v1284 = vunpack.c.h.b16 %v1190
        %v1285 = vunpack.c.l.b16 %v1191
        %v1286 = vunpack.c.h.b16 %v1191
        %v1287 = vunpack.c.l.b16 %v1192
        %v1288 = vunpack.c.h.b16 %v1192
        %v1289 = vunpack.c.l.b16 %v1193
        %v1290 = vunpack.c.h.b16 %v1193
        %v1291 = vunpack.c.l.b16 %v1194
        %v1292 = vunpack.c.h.b16 %v1194
        %v1293 = vunpack.c.l.b16 %v1195
        %v1294 = vunpack.c.h.b16 %v1195
        %v1295 = vunpack.c.l.b16 %v1196
        %v1296 = vunpack.c.h.b16 %v1196
        %v1297 = vunpack.c.l.b16 %v1197
        %v1298 = vunpack.c.h.b16 %v1197
        %v1299 = vunpack.c.l.b16 %v1198
        %v1300 = vunpack.c.h.b16 %v1198
        %v1301 = vunpack.c.l.b16 %v1199
        %v1302 = vunpack.c.h.b16 %v1199
        %v1303 = vunpack.c.l.b16 %v1200
        %v1304 = vunpack.c.h.b16 %v1200
        %v1305 = vunpack.c.l.b16 %v1201
        %v1306 = vunpack.c.h.b16 %v1201
        %v1307 = vunpack.c.l.b16 %v1202
        %v1308 = vunpack.c.h.b16 %v1202
        %v1309 = vunpack.c.l.b16 %v1203
        %v1310 = vunpack.c.h.b16 %v1203
        %v1311 = vunpack.c.l.b16 %v1204
        %v1312 = vunpack.c.h.b16 %v1204
        %v1313 = vpack.c.b16 %v1251, %v1249
        %v1314 = vpack.c.b16 %v1252, %v1250
        %v1315 = vpack.c.b16 %v1255, %v1253
        %v1316 = vpack.c.b16 %v1256, %v1254
        %v1317 = vpack.c.b16 %v1259, %v1257
        %v1318 = vpack.c.b16 %v1260, %v1258
        %v1319 = vpack.c.b16 %v1263, %v1261
        %v1320 = vpack.c.b16 %v1264, %v1262
        %v1321 = vpack.c.b16 %v1267, %v1265
        %v1322 = vpack.c.b16 %v1268, %v1266
        %v1323 = vpack.c.b16 %v1271, %v1269
        %v1324 = vpack.c.b16 %v1272, %v1270
        %v1325 = vpack.c.b16 %v1275, %v1273
        %v1326 = vpack.c.b16 %v1276, %v1274
        %v1327 = vpack.c.b16 %v1279, %v1277
        %v1328 = vpack.c.b16 %v1280, %v1278
        %v1329 = vpack.c.b16 %v1283, %v1281
        %v1330 = vpack.c.b16 %v1284, %v1282
        %v1331 = vpack.c.b16 %v1287, %v1285
        %v1332 = vpack.c.b16 %v1288, %v1286
        %v1333 = vpack.c.b16 %v1291, %v1289
        %v1334 = vpack.c.b16 %v1292, %v1290
        %v1335 = vpack.c.b16 %v1295, %v1293
        %v1336 = vpack.c.b16 %v1296, %v1294
        %v1337 = vpack.c.b16 %v1299, %v1297
        %v1338 = vpack.c.b16 %v1300, %v1298
        %v1339 = vpack.c.b16 %v1303, %v1301
        %v1340 = vpack.c.b16 %v1304, %v1302
        %v1341 = vpack.c.b16 %v1307, %v1305
        %v1342 = vpack.c.b16 %v1308, %v1306
        %v1343 = vpack.c.b16 %v1311, %v1309
        %v1344 = vpack.c.b16 %v1312, %v1310
        %1377 = vmatprep.subr.bf16.mxu0 %v1314
        %1378 = vmatpush1.bf16.msra.mxu0 %v1313
        %1379 = vmatprep.subr.bf16.mxu0 %v1316
        %1380 = vmatpush1.bf16.msra.mxu0 %v1315
        %1381 = vmatprep.subr.bf16.mxu0 %v1318
        %1382 = vmatpush1.bf16.msra.mxu0 %v1317
        %1383 = vmatprep.subr.bf16.mxu0 %v1320
        %1384 = vmatpush1.bf16.msra.mxu0 %v1319
        %1385 = vmatprep.subr.bf16.mxu0 %v1322
        %1386 = vmatpush1.bf16.msra.mxu0 %v1321
        %1387 = vmatprep.subr.bf16.mxu0 %v1324
        %1388 = vmatpush1.bf16.msra.mxu0 %v1323
        %1389 = vmatprep.subr.bf16.mxu0 %v1326
        %1390 = vmatpush1.bf16.msra.mxu0 %v1325
        %1391 = vmatprep.subr.bf16.mxu0 %v1328
        %1392 = vmatpush1.bf16.msra.mxu0 %v1327
        %1393 = vmatprep.subr.bf16.mxu0 %v1330
        %1394 = vmatpush1.bf16.msra.mxu0 %v1329
        %1395 = vmatprep.subr.bf16.mxu0 %v1332
        %1396 = vmatpush1.bf16.msra.mxu0 %v1331
        %1397 = vmatprep.subr.bf16.mxu0 %v1334
        %1398 = vmatpush1.bf16.msra.mxu0 %v1333
        %1399 = vmatprep.subr.bf16.mxu0 %v1336
        %1400 = vmatpush1.bf16.msra.mxu0 %v1335
        %1401 = vmatprep.subr.bf16.mxu0 %v1338
        %1402 = vmatpush1.bf16.msra.mxu0 %v1337
        %1403 = vmatprep.subr.bf16.mxu0 %v1340
        %1404 = vmatpush1.bf16.msra.mxu0 %v1339
        %1405 = vmatprep.subr.bf16.mxu0 %v1342
        %1406 = vmatpush1.bf16.msra.mxu0 %v1341
        %1407 = vmatprep.subr.bf16.mxu0 %v1344
        %1408 = vmatpush1.bf16.msra.mxu0 %v1343
        %1409 = vmatprep.mubr.bf16.mxu0 %v1110
        %1410 = vmatmul.mubr.bf16.gmra.mrb[0].mxu0 %v1109
        %v1411 = vpop.f32.mrb[0].mxu0
        %v1412 = vadd.f32 %v1210, %v1411
        %v1413 = vpop.f32.mrb[0].mxu0
        %v1414 = vadd.f32 %v1214, %v1413
        %v1415 = vpop.f32.mrb[0].mxu0
        %v1416 = vadd.f32 %v1210, %v1415
        %v1417 = vpop.f32.mrb[0].mxu0
        %v1418 = vadd.f32 %v1214, %v1417
        %1419 = vmatprep.mubr.bf16.mxu0 %v1112
        %1420 = vmatmul.mubr.bf16.gmra.mrb[0].mxu0 %v1111
        %v1421 = vpop.f32.mrb[0].mxu0
        %v1422 = vadd.f32 %v1210, %v1421
        %v1423 = vpop.f32.mrb[0].mxu0
        %v1424 = vadd.f32 %v1214, %v1423
        %v1425 = vpop.f32.mrb[0].mxu0
        %v1426 = vadd.f32 %v1210, %v1425
        %v1427 = vpop.f32.mrb[0].mxu0
        %v1428 = vadd.f32 %v1214, %v1427
        %1429 = vmatprep.mubr.bf16.mxu0 %v1114
        %1430 = vmatmul.mubr.bf16.gmra.mrb[0].mxu0 %v1113
        %v1431 = vpop.f32.mrb[0].mxu0
        %v1432 = vadd.f32 %v1210, %v1431
        %v1433 = vpop.f32.mrb[0].mxu0
        %v1434 = vadd.f32 %v1214, %v1433
        %v1435 = vpop.f32.mrb[0].mxu0
        %v1436 = vadd.f32 %v1210, %v1435
        %v1437 = vpop.f32.mrb[0].mxu0
        %v1438 = vadd.f32 %v1214, %v1437
        %1439 = vmatprep.mubr.bf16.mxu0 %v1116
        %1440 = vmatmul.mubr.bf16.gmra.mrb[0].mxu0 %v1115
        %v1441 = vpop.f32.mrb[0].mxu0
        %v1442 = vadd.f32 %v1210, %v1441
        %v1443 = vpop.f32.mrb[0].mxu0
        %v1444 = vadd.f32 %v1214, %v1443
        %v1445 = vpop.f32.mrb[0].mxu0
        %v1446 = vadd.f32 %v1210, %v1445
        %v1447 = vpop.f32.mrb[0].mxu0
        %v1448 = vadd.f32 %v1214, %v1447
        %1449 = vmatprep.mubr.bf16.mxu0 %v1118
        %1450 = vmatmul.mubr.bf16.gmra.mrb[0].mxu0 %v1117
        %v1451 = vpop.f32.mrb[0].mxu0
        %v1452 = vadd.f32 %v1210, %v1451
        %v1453 = vpop.f32.mrb[0].mxu0
        %v1454 = vadd.f32 %v1214, %v1453
        %v1455 = vpop.f32.mrb[0].mxu0
        %v1456 = vadd.f32 %v1210, %v1455
        %v1457 = vpop.f32.mrb[0].mxu0
        %v1458 = vadd.f32 %v1214, %v1457
        %1459 = vmatprep.mubr.bf16.mxu0 %v1120
        %1460 = vmatmul.mubr.bf16.gmra.mrb[0].mxu0 %v1119
        %v1461 = vpop.f32.mrb[0].mxu0
        %v1462 = vadd.f32 %v1210, %v1461
        %v1463 = vpop.f32.mrb[0].mxu0
        %v1464 = vadd.f32 %v1214, %v1463
        %v1465 = vpop.f32.mrb[0].mxu0
        %v1466 = vadd.f32 %v1210, %v1465
        %v1467 = vpop.f32.mrb[0].mxu0
        %v1468 = vadd.f32 %v1214, %v1467
        %1469 = vmatprep.mubr.bf16.mxu0 %v1122
        %1470 = vmatmul.mubr.bf16.gmra.mrb[0].mxu0 %v1121
        %v1471 = vpop.f32.mrb[0].mxu0
        %v1472 = vadd.f32 %v1210, %v1471
        %v1473 = vpop.f32.mrb[0].mxu0
        %v1474 = vadd.f32 %v1214, %v1473
        %v1475 = vpop.f32.mrb[0].mxu0
        %v1476 = vadd.f32 %v1210, %v1475
        %v1477 = vpop.f32.mrb[0].mxu0
        %v1478 = vadd.f32 %v1214, %v1477
        %1479 = vmatprep.mubr.bf16.mxu0 %v1124
        %1480 = vmatmul.mubr.bf16.gmra.mrb[0].mxu0 %v1123
        %v1481 = vpop.f32.mrb[0].mxu0
        %v1482 = vadd.f32 %v1210, %v1481
        %v1483 = vpop.f32.mrb[0].mxu0
        %v1484 = vadd.f32 %v1214, %v1483
        %v1485 = vpop.f32.mrb[0].mxu0
        %v1486 = vadd.f32 %v1210, %v1485
        %v1487 = vpop.f32.mrb[0].mxu0
        %v1488 = vadd.f32 %v1214, %v1487
        %1489 = vmatprep.mubr.bf16.mxu0 %v1126
        %1490 = vmatmul.mubr.bf16.gmra.mrb[0].mxu0 %v1125
        %v1491 = vpop.f32.mrb[0].mxu0
        %v1492 = vadd.f32 %v1210, %v1491
        %v1493 = vpop.f32.mrb[0].mxu0
        %v1494 = vadd.f32 %v1214, %v1493
        %v1495 = vpop.f32.mrb[0].mxu0
        %v1496 = vadd.f32 %v1210, %v1495
        %v1497 = vpop.f32.mrb[0].mxu0
        %v1498 = vadd.f32 %v1214, %v1497
        %1499 = vmatprep.mubr.bf16.mxu0 %v1128
        %1500 = vmatmul.mubr.bf16.gmra.mrb[0].mxu0 %v1127
        %v1501 = vpop.f32.mrb[0].mxu0
        %v1502 = vadd.f32 %v1210, %v1501
        %v1503 = vpop.f32.mrb[0].mxu0
        %v1504 = vadd.f32 %v1214, %v1503
        %v1505 = vpop.f32.mrb[0].mxu0
        %v1506 = vadd.f32 %v1210, %v1505
        %v1507 = vpop.f32.mrb[0].mxu0
        %v1508 = vadd.f32 %v1214, %v1507
        %1509 = vmatprep.mubr.bf16.mxu0 %v1130
        %1510 = vmatmul.mubr.bf16.gmra.mrb[0].mxu0 %v1129
        %v1511 = vpop.f32.mrb[0].mxu0
        %v1512 = vadd.f32 %v1210, %v1511
        %v1513 = vpop.f32.mrb[0].mxu0
        %v1514 = vadd.f32 %v1214, %v1513
        %v1515 = vpop.f32.mrb[0].mxu0
        %v1516 = vadd.f32 %v1210, %v1515
        %v1517 = vpop.f32.mrb[0].mxu0
        %v1518 = vadd.f32 %v1214, %v1517
        %1519 = vmatprep.mubr.bf16.mxu0 %v1132
        %1520 = vmatmul.mubr.bf16.gmra.mrb[0].mxu0 %v1131
        %v1521 = vpop.f32.mrb[0].mxu0
        %v1522 = vadd.f32 %v1210, %v1521
        %v1523 = vpop.f32.mrb[0].mxu0
        %v1524 = vadd.f32 %v1214, %v1523
        %v1525 = vpop.f32.mrb[0].mxu0
        %v1526 = vadd.f32 %v1210, %v1525
        %v1527 = vpop.f32.mrb[0].mxu0
        %v1528 = vadd.f32 %v1214, %v1527
        %1529 = vmatprep.mubr.bf16.mxu0 %v1134
        %1530 = vmatmul.mubr.bf16.gmra.mrb[0].mxu0 %v1133
        %v1531 = vpop.f32.mrb[0].mxu0
        %v1532 = vadd.f32 %v1210, %v1531
        %v1533 = vpop.f32.mrb[0].mxu0
        %v1534 = vadd.f32 %v1214, %v1533
        %v1535 = vpop.f32.mrb[0].mxu0
        %v1536 = vadd.f32 %v1210, %v1535
        %v1537 = vpop.f32.mrb[0].mxu0
        %v1538 = vadd.f32 %v1214, %v1537
        %1539 = vmatprep.mubr.bf16.mxu0 %v1136
        %1540 = vmatmul.mubr.bf16.gmra.mrb[0].mxu0 %v1135
        %v1541 = vpop.f32.mrb[0].mxu0
        %v1542 = vadd.f32 %v1210, %v1541
        %v1543 = vpop.f32.mrb[0].mxu0
        %v1544 = vadd.f32 %v1214, %v1543
        %v1545 = vpop.f32.mrb[0].mxu0
        %v1546 = vadd.f32 %v1210, %v1545
        %v1547 = vpop.f32.mrb[0].mxu0
        %v1548 = vadd.f32 %v1214, %v1547
        %1549 = vmatprep.mubr.bf16.mxu0 %v1138
        %1550 = vmatmul.mubr.bf16.gmra.mrb[0].mxu0 %v1137
        %v1551 = vpop.f32.mrb[0].mxu0
        %v1552 = vadd.f32 %v1210, %v1551
        %v1553 = vpop.f32.mrb[0].mxu0
        %v1554 = vadd.f32 %v1214, %v1553
        %v1555 = vpop.f32.mrb[0].mxu0
        %v1556 = vadd.f32 %v1210, %v1555
        %v1557 = vpop.f32.mrb[0].mxu0
        %v1558 = vadd.f32 %v1214, %v1557
        %1559 = vmatprep.mubr.bf16.mxu0 %v1140
        %1560 = vmatmul.mubr.bf16.gmra.mrb[0].mxu0 %v1139
        %v1561 = vpop.f32.mrb[0].mxu0
        %v1562 = vadd.f32 %v1210, %v1561
        %v1563 = vpop.f32.mrb[0].mxu0
        %v1564 = vadd.f32 %v1214, %v1563
        %v1565 = vpop.f32.mrb[0].mxu0
        %v1566 = vadd.f32 %v1210, %v1565
        %v1567 = vpop.f32.mrb[0].mxu0
        %v1568 = vadd.f32 %v1214, %v1567
        %1569 = vmatprep.mubr.bf16.mxu0 %v1142
        %1570 = vmatmul.mubr.bf16.gmra.mrb[0].mxu0 %v1141
        %v1571 = vpop.f32.mrb[0].mxu0
        %v1572 = vadd.f32 %v1210, %v1571
        %v1573 = vpop.f32.mrb[0].mxu0
        %v1574 = vadd.f32 %v1214, %v1573
        %v1575 = vpop.f32.mrb[0].mxu0
        %v1576 = vadd.f32 %v1210, %v1575
        %v1577 = vpop.f32.mrb[0].mxu0
        %v1578 = vadd.f32 %v1214, %v1577
        %1579 = vmatprep.mubr.bf16.mxu0 %v1144
        %1580 = vmatmul.mubr.bf16.gmra.mrb[0].mxu0 %v1143
        %v1581 = vpop.f32.mrb[0].mxu0
        %v1582 = vadd.f32 %v1210, %v1581
        %v1583 = vpop.f32.mrb[0].mxu0
        %v1584 = vadd.f32 %v1214, %v1583
        %v1585 = vpop.f32.mrb[0].mxu0
        %v1586 = vadd.f32 %v1210, %v1585
        %v1587 = vpop.f32.mrb[0].mxu0
        %v1588 = vadd.f32 %v1214, %v1587
        %1589 = vmatprep.mubr.bf16.mxu0 %v1146
        %1590 = vmatmul.mubr.bf16.gmra.mrb[0].mxu0 %v1145
        %v1591 = vpop.f32.mrb[0].mxu0
        %v1592 = vadd.f32 %v1210, %v1591
        %v1593 = vpop.f32.mrb[0].mxu0
        %v1594 = vadd.f32 %v1214, %v1593
        %v1595 = vpop.f32.mrb[0].mxu0
        %v1596 = vadd.f32 %v1210, %v1595
        %v1597 = vpop.f32.mrb[0].mxu0
        %v1598 = vadd.f32 %v1214, %v1597
        %1599 = vmatprep.mubr.bf16.mxu0 %v1148
        %1600 = vmatmul.mubr.bf16.gmra.mrb[0].mxu0 %v1147
        %v1601 = vpop.f32.mrb[0].mxu0
        %v1602 = vadd.f32 %v1210, %v1601
        %v1603 = vpop.f32.mrb[0].mxu0
        %v1604 = vadd.f32 %v1214, %v1603
        %v1605 = vpop.f32.mrb[0].mxu0
        %v1606 = vadd.f32 %v1210, %v1605
        %v1607 = vpop.f32.mrb[0].mxu0
        %v1608 = vadd.f32 %v1214, %v1607
        %1609 = vmatprep.mubr.bf16.mxu0 %v1150
        %1610 = vmatmul.mubr.bf16.gmra.mrb[0].mxu0 %v1149
        %v1611 = vpop.f32.mrb[0].mxu0
        %v1612 = vadd.f32 %v1210, %v1611
        %v1613 = vpop.f32.mrb[0].mxu0
        %v1614 = vadd.f32 %v1214, %v1613
        %v1615 = vpop.f32.mrb[0].mxu0
        %v1616 = vadd.f32 %v1210, %v1615
        %v1617 = vpop.f32.mrb[0].mxu0
        %v1618 = vadd.f32 %v1214, %v1617
        %1619 = vmatprep.mubr.bf16.mxu0 %v1152
        %1620 = vmatmul.mubr.bf16.gmra.mrb[0].mxu0 %v1151
        %v1621 = vpop.f32.mrb[0].mxu0
        %v1622 = vadd.f32 %v1210, %v1621
        %v1623 = vpop.f32.mrb[0].mxu0
        %v1624 = vadd.f32 %v1214, %v1623
        %v1625 = vpop.f32.mrb[0].mxu0
        %v1626 = vadd.f32 %v1210, %v1625
        %v1627 = vpop.f32.mrb[0].mxu0
        %v1628 = vadd.f32 %v1214, %v1627
        %1629 = vmatprep.mubr.bf16.mxu0 %v1154
        %1630 = vmatmul.mubr.bf16.gmra.mrb[0].mxu0 %v1153
        %v1631 = vpop.f32.mrb[0].mxu0
        %v1632 = vadd.f32 %v1210, %v1631
        %v1633 = vpop.f32.mrb[0].mxu0
        %v1634 = vadd.f32 %v1214, %v1633
        %v1635 = vpop.f32.mrb[0].mxu0
        %v1636 = vadd.f32 %v1210, %v1635
        %v1637 = vpop.f32.mrb[0].mxu0
        %v1638 = vadd.f32 %v1214, %v1637
        %1639 = vmatprep.mubr.bf16.mxu0 %v1156
        %1640 = vmatmul.mubr.bf16.gmra.mrb[0].mxu0 %v1155
        %v1641 = vpop.f32.mrb[0].mxu0
        %v1642 = vadd.f32 %v1210, %v1641
        %v1643 = vpop.f32.mrb[0].mxu0
        %v1644 = vadd.f32 %v1214, %v1643
        %v1645 = vpop.f32.mrb[0].mxu0
        %v1646 = vadd.f32 %v1210, %v1645
        %v1647 = vpop.f32.mrb[0].mxu0
        %v1648 = vadd.f32 %v1214, %v1647
        %1649 = vmatprep.mubr.bf16.mxu0 %v1158
        %1650 = vmatmul.mubr.bf16.gmra.mrb[0].mxu0 %v1157
        %v1651 = vpop.f32.mrb[0].mxu0
        %v1652 = vadd.f32 %v1210, %v1651
        %v1653 = vpop.f32.mrb[0].mxu0
        %v1654 = vadd.f32 %v1214, %v1653
        %v1655 = vpop.f32.mrb[0].mxu0
        %v1656 = vadd.f32 %v1210, %v1655
        %v1657 = vpop.f32.mrb[0].mxu0
        %v1658 = vadd.f32 %v1214, %v1657
        %1659 = vmatprep.mubr.bf16.mxu0 %v1160
        %1660 = vmatmul.mubr.bf16.gmra.mrb[0].mxu0 %v1159
        %v1661 = vpop.f32.mrb[0].mxu0
        %v1662 = vadd.f32 %v1210, %v1661
        %v1663 = vpop.f32.mrb[0].mxu0
        %v1664 = vadd.f32 %v1214, %v1663
        %v1665 = vpop.f32.mrb[0].mxu0
        %v1666 = vadd.f32 %v1210, %v1665
        %v1667 = vpop.f32.mrb[0].mxu0
        %v1668 = vadd.f32 %v1214, %v1667
        %1669 = vmatprep.mubr.bf16.mxu0 %v1162
        %1670 = vmatmul.mubr.bf16.gmra.mrb[0].mxu0 %v1161
        %v1671 = vpop.f32.mrb[0].mxu0
        %v1672 = vadd.f32 %v1210, %v1671
        %v1673 = vpop.f32.mrb[0].mxu0
        %v1674 = vadd.f32 %v1214, %v1673
        %v1675 = vpop.f32.mrb[0].mxu0
        %v1676 = vadd.f32 %v1210, %v1675
        %v1677 = vpop.f32.mrb[0].mxu0
        %v1678 = vadd.f32 %v1214, %v1677
        %1679 = vmatprep.mubr.bf16.mxu0 %v1164
        %1680 = vmatmul.mubr.bf16.gmra.mrb[0].mxu0 %v1163
        %v1681 = vpop.f32.mrb[0].mxu0
        %v1682 = vadd.f32 %v1210, %v1681
        %v1683 = vpop.f32.mrb[0].mxu0
        %v1684 = vadd.f32 %v1214, %v1683
        %v1685 = vpop.f32.mrb[0].mxu0
        %v1686 = vadd.f32 %v1210, %v1685
        %v1687 = vpop.f32.mrb[0].mxu0
        %v1688 = vadd.f32 %v1214, %v1687
        %1689 = vmatprep.mubr.bf16.mxu0 %v1166
        %1690 = vmatmul.mubr.bf16.gmra.mrb[0].mxu0 %v1165
        %v1691 = vpop.f32.mrb[0].mxu0
        %v1692 = vadd.f32 %v1210, %v1691
        %v1693 = vpop.f32.mrb[0].mxu0
        %v1694 = vadd.f32 %v1214, %v1693
        %v1695 = vpop.f32.mrb[0].mxu0
        %v1696 = vadd.f32 %v1210, %v1695
        %v1697 = vpop.f32.mrb[0].mxu0
        %v1698 = vadd.f32 %v1214, %v1697
        %1699 = vmatprep.mubr.bf16.mxu0 %v1168
        %1700 = vmatmul.mubr.bf16.gmra.mrb[0].mxu0 %v1167
        %v1701 = vpop.f32.mrb[0].mxu0
        %v1702 = vadd.f32 %v1210, %v1701
        %v1703 = vpop.f32.mrb[0].mxu0
        %v1704 = vadd.f32 %v1214, %v1703
        %v1705 = vpop.f32.mrb[0].mxu0
        %v1706 = vadd.f32 %v1210, %v1705
        %v1707 = vpop.f32.mrb[0].mxu0
        %v1708 = vadd.f32 %v1214, %v1707
        %1709 = vmatprep.mubr.bf16.mxu0 %v1170
        %1710 = vmatmul.mubr.bf16.gmra.mrb[0].mxu0 %v1169
        %v1711 = vpop.f32.mrb[0].mxu0
        %v1712 = vadd.f32 %v1210, %v1711
        %v1713 = vpop.f32.mrb[0].mxu0
        %v1714 = vadd.f32 %v1214, %v1713
        %v1715 = vpop.f32.mrb[0].mxu0
        %v1716 = vadd.f32 %v1210, %v1715
        %v1717 = vpop.f32.mrb[0].mxu0
        %v1718 = vadd.f32 %v1214, %v1717
        %1719 = vmatprep.mubr.bf16.mxu0 %v1172
        %1720 = vmatmul.mubr.bf16.gmra.mrb[0].mxu0 %v1171
        %v1721 = vpop.f32.mrb[0].mxu0
        %v1722 = vadd.f32 %v1210, %v1721
        %v1723 = vpop.f32.mrb[0].mxu0
        %v1724 = vadd.f32 %v1214, %v1723
        %v1725 = vpop.f32.mrb[0].mxu0
        %v1726 = vpop.f32.mrb[0].mxu0
        %1727 = vdwg.mxu0
        %v1728 = vmax.f32 %v1412, 0.0
        %v1729 = vmax.f32 %v1414, 0.0
        %v1730 = vmax.f32 %v1416, 0.0
        %v1731 = vmax.f32 %v1418, 0.0
        %v1732 = vmax.f32 %v1422, 0.0
        %v1733 = vmax.f32 %v1424, 0.0
        %v1734 = vmax.f32 %v1426, 0.0
        %v1735 = vmax.f32 %v1428, 0.0
        %v1736 = vmax.f32 %v1432, 0.0
        %v1737 = vmax.f32 %v1434, 0.0
        %v1738 = vmax.f32 %v1436, 0.0
        %v1739 = vmax.f32 %v1438, 0.0
        %v1740 = vmax.f32 %v1442, 0.0
        %v1741 = vmax.f32 %v1444, 0.0
        %v1742 = vmax.f32 %v1446, 0.0
        %v1743 = vmax.f32 %v1448, 0.0
        %v1744 = vmax.f32 %v1452, 0.0
        %v1745 = vmax.f32 %v1454, 0.0
        %v1746 = vmax.f32 %v1456, 0.0
        %v1747 = vmax.f32 %v1458, 0.0
        %v1748 = vmax.f32 %v1462, 0.0
        %v1749 = vmax.f32 %v1464, 0.0
        %v1750 = vmax.f32 %v1466, 0.0
        %v1751 = vmax.f32 %v1468, 0.0
        %v1752 = vmax.f32 %v1472, 0.0
        %v1753 = vmax.f32 %v1474, 0.0
        %v1754 = vmax.f32 %v1476, 0.0
        %v1755 = vmax.f32 %v1478, 0.0
        %v1756 = vmax.f32 %v1482, 0.0
        %v1757 = vmax.f32 %v1484, 0.0
        %v1758 = vmax.f32 %v1486, 0.0
        %v1759 = vmax.f32 %v1488, 0.0
        %v1760 = vmax.f32 %v1492, 0.0
        %v1761 = vmax.f32 %v1494, 0.0
        %v1762 = vmax.f32 %v1496, 0.0
        %v1763 = vmax.f32 %v1498, 0.0
        %v1764 = vmax.f32 %v1502, 0.0
        %v1765 = vmax.f32 %v1504, 0.0
        %v1766 = vmax.f32 %v1506, 0.0
        %v1767 = vmax.f32 %v1508, 0.0
        %v1768 = vmax.f32 %v1512, 0.0
        %v1769 = vmax.f32 %v1514, 0.0
        %v1770 = vmax.f32 %v1516, 0.0
        %v1771 = vmax.f32 %v1518, 0.0
        %v1772 = vmax.f32 %v1522, 0.0
        %v1773 = vmax.f32 %v1524, 0.0
        %v1774 = vmax.f32 %v1526, 0.0
        %v1775 = vmax.f32 %v1528, 0.0
        %v1776 = vmax.f32 %v1532, 0.0
        %v1777 = vmax.f32 %v1534, 0.0
        %v1778 = vmax.f32 %v1536, 0.0
        %v1779 = vmax.f32 %v1538, 0.0
        %v1780 = vmax.f32 %v1542, 0.0
        %v1781 = vmax.f32 %v1544, 0.0
        %v1782 = vmax.f32 %v1546, 0.0
        %v1783 = vmax.f32 %v1548, 0.0
        %v1784 = vmax.f32 %v1552, 0.0
        %v1785 = vmax.f32 %v1554, 0.0
        %v1786 = vmax.f32 %v1556, 0.0
        %v1787 = vmax.f32 %v1558, 0.0
        %v1788 = vmax.f32 %v1562, 0.0
        %v1789 = vmax.f32 %v1564, 0.0
        %v1790 = vmax.f32 %v1566, 0.0
        %v1791 = vmax.f32 %v1568, 0.0
        %v1792 = vmax.f32 %v1572, 0.0
        %v1793 = vmax.f32 %v1574, 0.0
        %v1794 = vmax.f32 %v1576, 0.0
        %v1795 = vmax.f32 %v1578, 0.0
        %v1796 = vmax.f32 %v1582, 0.0
        %v1797 = vmax.f32 %v1584, 0.0
        %v1798 = vmax.f32 %v1586, 0.0
        %v1799 = vmax.f32 %v1588, 0.0
        %v1800 = vmax.f32 %v1592, 0.0
        %v1801 = vmax.f32 %v1594, 0.0
        %v1802 = vmax.f32 %v1596, 0.0
        %v1803 = vmax.f32 %v1598, 0.0
        %v1804 = vmax.f32 %v1602, 0.0
        %v1805 = vmax.f32 %v1604, 0.0
        %v1806 = vmax.f32 %v1606, 0.0
        %v1807 = vmax.f32 %v1608, 0.0
        %v1808 = vmax.f32 %v1612, 0.0
        %v1809 = vmax.f32 %v1614, 0.0
        %v1810 = vmax.f32 %v1616, 0.0
        %v1811 = vmax.f32 %v1618, 0.0
        %v1812 = vmax.f32 %v1622, 0.0
        %v1813 = vmax.f32 %v1624, 0.0
        %v1814 = vmax.f32 %v1626, 0.0
        %v1815 = vmax.f32 %v1628, 0.0
        %v1816 = vmax.f32 %v1632, 0.0
        %v1817 = vmax.f32 %v1634, 0.0
        %v1818 = vmax.f32 %v1636, 0.0
        %v1819 = vmax.f32 %v1638, 0.0
        %v1820 = vmax.f32 %v1642, 0.0
        %v1821 = vmax.f32 %v1644, 0.0
        %v1822 = vmax.f32 %v1646, 0.0
        %v1823 = vmax.f32 %v1648, 0.0
        %v1824 = vmax.f32 %v1652, 0.0
        %v1825 = vmax.f32 %v1654, 0.0
        %v1826 = vmax.f32 %v1656, 0.0
        %v1827 = vmax.f32 %v1658, 0.0
        %v1828 = vmax.f32 %v1662, 0.0
        %v1829 = vmax.f32 %v1664, 0.0
        %v1830 = vmax.f32 %v1666, 0.0
        %v1831 = vmax.f32 %v1668, 0.0
        %v1832 = vmax.f32 %v1672, 0.0
        %v1833 = vmax.f32 %v1674, 0.0
        %v1834 = vmax.f32 %v1676, 0.0
        %v1835 = vmax.f32 %v1678, 0.0
        %v1836 = vmax.f32 %v1682, 0.0
        %v1837 = vmax.f32 %v1684, 0.0
        %v1838 = vmax.f32 %v1686, 0.0
        %v1839 = vmax.f32 %v1688, 0.0
        %v1840 = vmax.f32 %v1692, 0.0
        %v1841 = vmax.f32 %v1694, 0.0
        %v1842 = vmax.f32 %v1696, 0.0
        %v1843 = vmax.f32 %v1698, 0.0
        %v1844 = vmax.f32 %v1702, 0.0
        %v1845 = vmax.f32 %v1704, 0.0
        %v1846 = vmax.f32 %v1706, 0.0
        %v1847 = vmax.f32 %v1708, 0.0
        %v1848 = vmax.f32 %v1712, 0.0
        %v1849 = vmax.f32 %v1714, 0.0
        %v1850 = vmax.f32 %v1716, 0.0
        %v1851 = vmax.f32 %v1718, 0.0
        %v1852 = vmax.f32 %v1722, 0.0
        %v1853 = vmax.f32 %v1724, 0.0
        %v1854 = vpack.c.bf16 %v1730, %v1728
        %v1855 = vpack.c.bf16 %v1731, %v1729
        %v1856 = vpack.c.bf16 %v1734, %v1732
        %v1857 = vpack.c.bf16 %v1735, %v1733
        %v1858 = vpack.c.bf16 %v1738, %v1736
        %v1859 = vpack.c.bf16 %v1739, %v1737
        %v1860 = vpack.c.bf16 %v1742, %v1740
        %v1861 = vpack.c.bf16 %v1743, %v1741
        %v1862 = vpack.c.bf16 %v1746, %v1744
        %v1863 = vpack.c.bf16 %v1747, %v1745
        %v1864 = vpack.c.bf16 %v1750, %v1748
        %v1865 = vpack.c.bf16 %v1751, %v1749
        %v1866 = vpack.c.bf16 %v1754, %v1752
        %v1867 = vpack.c.bf16 %v1755, %v1753
        %v1868 = vpack.c.bf16 %v1758, %v1756
        %v1869 = vpack.c.bf16 %v1759, %v1757
        %v1870 = vpack.c.bf16 %v1762, %v1760
        %v1871 = vpack.c.bf16 %v1763, %v1761
        %v1872 = vpack.c.bf16 %v1766, %v1764
        %v1873 = vpack.c.bf16 %v1767, %v1765
        %v1874 = vpack.c.bf16 %v1770, %v1768
        %v1875 = vpack.c.bf16 %v1771, %v1769
        %v1876 = vpack.c.bf16 %v1774, %v1772
        %v1877 = vpack.c.bf16 %v1775, %v1773
        %v1878 = vpack.c.bf16 %v1778, %v1776
        %v1879 = vpack.c.bf16 %v1779, %v1777
        %v1880 = vpack.c.bf16 %v1782, %v1780
        %v1881 = vpack.c.bf16 %v1783, %v1781
        %v1882 = vpack.c.bf16 %v1786, %v1784
        %v1883 = vpack.c.bf16 %v1787, %v1785
        %v1884 = vpack.c.bf16 %v1790, %v1788
        %v1885 = vpack.c.bf16 %v1791, %v1789
        %v1886 = vpack.c.bf16 %v1794, %v1792
        %v1887 = vpack.c.bf16 %v1795, %v1793
        %v1888 = vpack.c.bf16 %v1798, %v1796
        %v1889 = vpack.c.bf16 %v1799, %v1797
        %v1890 = vpack.c.bf16 %v1802, %v1800
        %v1891 = vpack.c.bf16 %v1803, %v1801
        %v1892 = vpack.c.bf16 %v1806, %v1804
        %v1893 = vpack.c.bf16 %v1807, %v1805
        %v1894 = vpack.c.bf16 %v1810, %v1808
        %v1895 = vpack.c.bf16 %v1811, %v1809
        %v1896 = vpack.c.bf16 %v1814, %v1812
        %v1897 = vpack.c.bf16 %v1815, %v1813
        %v1898 = vpack.c.bf16 %v1818, %v1816
        %v1899 = vpack.c.bf16 %v1819, %v1817
        %v1900 = vpack.c.bf16 %v1822, %v1820
        %v1901 = vpack.c.bf16 %v1823, %v1821
        %v1902 = vpack.c.bf16 %v1826, %v1824
        %v1903 = vpack.c.bf16 %v1827, %v1825
        %v1904 = vpack.c.bf16 %v1830, %v1828
        %v1905 = vpack.c.bf16 %v1831, %v1829
        %v1906 = vpack.c.bf16 %v1834, %v1832
        %v1907 = vpack.c.bf16 %v1835, %v1833
        %v1908 = vpack.c.bf16 %v1838, %v1836
        %v1909 = vpack.c.bf16 %v1839, %v1837
        %v1910 = vpack.c.bf16 %v1842, %v1840
        %v1911 = vpack.c.bf16 %v1843, %v1841
        %v1912 = vpack.c.bf16 %v1846, %v1844
        %v1913 = vpack.c.bf16 %v1847, %v1845
        %v1914 = vpack.c.bf16 %v1850, %v1848
        %v1915 = vpack.c.bf16 %v1851, %v1849
        %v1916 = vpack.c.bf16 %v1852, %v1852
        %v1917 = vpack.c.bf16 %v1853, %v1853
        %v1918 = vld [vmem:[%s5] sm:$0xff]
        %v1919 = vld [vmem:[%s5 + $0x8] sm:$0xff]
        %v1920 = vld [vmem:[%s5 + $0x10] sm:$0xff]
        %v1921 = vld [vmem:[%s5 + $0x18] sm:$0xff]
        %v1922 = vld [vmem:[%s5 + $0x20] sm:$0xff]
        %v1923 = vld [vmem:[%s5 + $0x28] sm:$0xff]
        %v1924 = vld [vmem:[%s5 + $0x30] sm:$0xff]
        %v1925 = vld [vmem:[%s5 + $0x38] sm:$0xff]
        %v1926 = vld [vmem:[%s5 + $0x40] sm:$0xff]
        %v1927 = vld [vmem:[%s5 + $0x48] sm:$0xff]
        %v1928 = vld [vmem:[%s5 + $0x50] sm:$0xff]
        %v1929 = vld [vmem:[%s5 + $0x58] sm:$0xff]
        %v1930 = vld [vmem:[%s5 + $0x60] sm:$0xff]
        %v1931 = vld [vmem:[%s5 + $0x68] sm:$0xff]
        %v1932 = vld [vmem:[%s5 + $0x70] sm:$0xff]
        %v1933 = vld [vmem:[%s5 + $0x78] sm:$0xff]
        %v1934 = vld [vmem:[%s5 + $0x80] sm:$0xff]
        %v1935 = vld [vmem:[%s5 + $0x88] sm:$0xff]
        %v1936 = vld [vmem:[%s5 + $0x90] sm:$0xff]
        %v1937 = vld [vmem:[%s5 + $0x98] sm:$0xff]
        %v1938 = vld [vmem:[%s5 + $0xa0] sm:$0xff]
        %v1939 = vld [vmem:[%s5 + $0xa8] sm:$0xff]
        %v1940 = vld [vmem:[%s5 + $0xb0] sm:$0xff]
        %v1941 = vld [vmem:[%s5 + $0xb8] sm:$0xff]
        %v1942 = vld [vmem:[%s5 + $0xc0] sm:$0xff]
        %v1943 = vld [vmem:[%s5 + $0xc8] sm:$0xff]
        %v1944 = vld [vmem:[%s5 + $0xd0] sm:$0xff]
        %v1945 = vld [vmem:[%s5 + $0xd8] sm:$0xff]
        %v1946 = vld [vmem:[%s5 + $0xe0] sm:$0xff]
        %v1947 = vld [vmem:[%s5 + $0xe8] sm:$0xff]
        %v1948 = vld [vmem:[%s5 + $0xf0] sm:$0xff]
        %v1949 = vld [vmem:[%s5 + $0xf8] sm:$0xff]
        %v1950 = vld [vmem:[%s6] sm:$0x3]
        %v1952 = vlaneseq
        %v1953 = vshrl.u32 %v1952, 7
        %v1954 = vsub.s32 0, %v1953
        %v1955 = vrot.slane %v1950, %v1954
        %v1956 = vlaneseq
        %v1957 = vshrl.u32 %v1956, 7
        %v1958 = vsub.s32 1, %v1957
        %v1959 = vrot.slane %v1950, %v1958
        %v1994 = vunpack.c.l.b16 %v1918
        %v1995 = vunpack.c.h.b16 %v1918
        %v1996 = vunpack.c.l.b16 %v1919
        %v1997 = vunpack.c.h.b16 %v1919
        %v1998 = vunpack.c.l.b16 %v1920
        %v1999 = vunpack.c.h.b16 %v1920
        %v2000 = vunpack.c.l.b16 %v1921
        %v2001 = vunpack.c.h.b16 %v1921
        %v2002 = vunpack.c.l.b16 %v1922
        %v2003 = vunpack.c.h.b16 %v1922
        %v2004 = vunpack.c.l.b16 %v1923
        %v2005 = vunpack.c.h.b16 %v1923
        %v2006 = vunpack.c.l.b16 %v1924
        %v2007 = vunpack.c.h.b16 %v1924
        %v2008 = vunpack.c.l.b16 %v1925
        %v2009 = vunpack.c.h.b16 %v1925
        %v2010 = vunpack.c.l.b16 %v1926
        %v2011 = vunpack.c.h.b16 %v1926
        %v2012 = vunpack.c.l.b16 %v1927
        %v2013 = vunpack.c.h.b16 %v1927
        %v2014 = vunpack.c.l.b16 %v1928
        %v2015 = vunpack.c.h.b16 %v1928
        %v2016 = vunpack.c.l.b16 %v1929
        %v2017 = vunpack.c.h.b16 %v1929
        %v2018 = vunpack.c.l.b16 %v1930
        %v2019 = vunpack.c.h.b16 %v1930
        %v2020 = vunpack.c.l.b16 %v1931
        %v2021 = vunpack.c.h.b16 %v1931
        %v2022 = vunpack.c.l.b16 %v1932
        %v2023 = vunpack.c.h.b16 %v1932
        %v2024 = vunpack.c.l.b16 %v1933
        %v2025 = vunpack.c.h.b16 %v1933
        %v2026 = vunpack.c.l.b16 %v1934
        %v2027 = vunpack.c.h.b16 %v1934
        %v2028 = vunpack.c.l.b16 %v1935
        %v2029 = vunpack.c.h.b16 %v1935
        %v2030 = vunpack.c.l.b16 %v1936
        %v2031 = vunpack.c.h.b16 %v1936
        %v2032 = vunpack.c.l.b16 %v1937
        %v2033 = vunpack.c.h.b16 %v1937
        %v2034 = vunpack.c.l.b16 %v1938
        %v2035 = vunpack.c.h.b16 %v1938
        %v2036 = vunpack.c.l.b16 %v1939
        %v2037 = vunpack.c.h.b16 %v1939
        %v2038 = vunpack.c.l.b16 %v1940
        %v2039 = vunpack.c.h.b16 %v1940
        %v2040 = vunpack.c.l.b16 %v1941
        %v2041 = vunpack.c.h.b16 %v1941
        %v2042 = vunpack.c.l.b16 %v1942
        %v2043 = vunpack.c.h.b16 %v1942
        %v2044 = vunpack.c.l.b16 %v1943
        %v2045 = vunpack.c.h.b16 %v1943
        %v2046 = vunpack.c.l.b16 %v1944
        %v2047 = vunpack.c.h.b16 %v1944
        %v2048 = vunpack.c.l.b16 %v1945
        %v2049 = vunpack.c.h.b16 %v1945
        %v2050 = vunpack.c.l.b16 %v1946
        %v2051 = vunpack.c.h.b16 %v1946
        %v2052 = vunpack.c.l.b16 %v1947
        %v2053 = vunpack.c.h.b16 %v1947
        %v2054 = vunpack.c.l.b16 %v1948
        %v2055 = vunpack.c.h.b16 %v1948
        %v2056 = vunpack.c.l.b16 %v1949
        %v2057 = vunpack.c.h.b16 %v1949
        %v2058 = vpack.c.b16 %v1996, %v1994
        %v2059 = vpack.c.b16 %v1997, %v1995
        %v2060 = vpack.c.b16 %v2000, %v1998
        %v2061 = vpack.c.b16 %v2001, %v1999
        %v2062 = vpack.c.b16 %v2004, %v2002
        %v2063 = vpack.c.b16 %v2005, %v2003
        %v2064 = vpack.c.b16 %v2008, %v2006
        %v2065 = vpack.c.b16 %v2009, %v2007
        %v2066 = vpack.c.b16 %v2012, %v2010
        %v2067 = vpack.c.b16 %v2013, %v2011
        %v2068 = vpack.c.b16 %v2016, %v2014
        %v2069 = vpack.c.b16 %v2017, %v2015
        %v2070 = vpack.c.b16 %v2020, %v2018
        %v2071 = vpack.c.b16 %v2021, %v2019
        %v2072 = vpack.c.b16 %v2024, %v2022
        %v2073 = vpack.c.b16 %v2025, %v2023
        %v2074 = vpack.c.b16 %v2028, %v2026
        %v2075 = vpack.c.b16 %v2029, %v2027
        %v2076 = vpack.c.b16 %v2032, %v2030
        %v2077 = vpack.c.b16 %v2033, %v2031
        %v2078 = vpack.c.b16 %v2036, %v2034
        %v2079 = vpack.c.b16 %v2037, %v2035
        %v2080 = vpack.c.b16 %v2040, %v2038
        %v2081 = vpack.c.b16 %v2041, %v2039
        %v2082 = vpack.c.b16 %v2044, %v2042
        %v2083 = vpack.c.b16 %v2045, %v2043
        %v2084 = vpack.c.b16 %v2048, %v2046
        %v2085 = vpack.c.b16 %v2049, %v2047
        %v2086 = vpack.c.b16 %v2052, %v2050
        %v2087 = vpack.c.b16 %v2053, %v2051
        %v2088 = vpack.c.b16 %v2056, %v2054
        %v2089 = vpack.c.b16 %v2057, %v2055
        %2122 = vmatprep.subr.bf16.mxu0 %v2059
        %2123 = vmatpush1.bf16.msra.mxu0 %v2058
        %2124 = vmatprep.subr.bf16.mxu0 %v2061
        %2125 = vmatpush1.bf16.msra.mxu0 %v2060
        %2126 = vmatprep.subr.bf16.mxu0 %v2063
        %2127 = vmatpush1.bf16.msra.mxu0 %v2062
        %2128 = vmatprep.subr.bf16.mxu0 %v2065
        %2129 = vmatpush1.bf16.msra.mxu0 %v2064
        %2130 = vmatprep.subr.bf16.mxu0 %v2067
        %2131 = vmatpush1.bf16.msra.mxu0 %v2066
        %2132 = vmatprep.subr.bf16.mxu0 %v2069
        %2133 = vmatpush1.bf16.msra.mxu0 %v2068
        %2134 = vmatprep.subr.bf16.mxu0 %v2071
        %2135 = vmatpush1.bf16.msra.mxu0 %v2070
        %2136 = vmatprep.subr.bf16.mxu0 %v2073
        %2137 = vmatpush1.bf16.msra.mxu0 %v2072
        %2138 = vmatprep.subr.bf16.mxu0 %v2075
        %2139 = vmatpush1.bf16.msra.mxu0 %v2074
        %2140 = vmatprep.subr.bf16.mxu0 %v2077
        %2141 = vmatpush1.bf16.msra.mxu0 %v2076
        %2142 = vmatprep.subr.bf16.mxu0 %v2079
        %2143 = vmatpush1.bf16.msra.mxu0 %v2078
        %2144 = vmatprep.subr.bf16.mxu0 %v2081
        %2145 = vmatpush1.bf16.msra.mxu0 %v2080
        %2146 = vmatprep.subr.bf16.mxu0 %v2083
        %2147 = vmatpush1.bf16.msra.mxu0 %v2082
        %2148 = vmatprep.subr.bf16.mxu0 %v2085
        %2149 = vmatpush1.bf16.msra.mxu0 %v2084
        %2150 = vmatprep.subr.bf16.mxu0 %v2087
        %2151 = vmatpush1.bf16.msra.mxu0 %v2086
        %2152 = vmatprep.subr.bf16.mxu0 %v2089
        %2153 = vmatpush1.bf16.msra.mxu0 %v2088
        %2154 = vmatprep.mubr.bf16.mxu0 %v1855
        %2155 = vmatmul.mubr.bf16.gmra.mrb[0].mxu0 %v1854
        %v2156 = vpop.f32.mrb[0].mxu0
        %v2157 = vadd.f32 %v1955, %v2156
        %v2158 = vpop.f32.mrb[0].mxu0
        %v2159 = vadd.f32 %v1959, %v2158
        %v2160 = vpop.f32.mrb[0].mxu0
        %v2161 = vadd.f32 %v1955, %v2160
        %v2162 = vpop.f32.mrb[0].mxu0
        %v2163 = vadd.f32 %v1959, %v2162
        %2164 = vmatprep.mubr.bf16.mxu0 %v1857
        %2165 = vmatmul.mubr.bf16.gmra.mrb[0].mxu0 %v1856
        %v2166 = vpop.f32.mrb[0].mxu0
        %v2167 = vadd.f32 %v1955, %v2166
        %v2168 = vpop.f32.mrb[0].mxu0
        %v2169 = vadd.f32 %v1959, %v2168
        %v2170 = vpop.f32.mrb[0].mxu0
        %v2171 = vadd.f32 %v1955, %v2170
        %v2172 = vpop.f32.mrb[0].mxu0
        %v2173 = vadd.f32 %v1959, %v2172
        %2174 = vmatprep.mubr.bf16.mxu0 %v1859
        %2175 = vmatmul.mubr.bf16.gmra.mrb[0].mxu0 %v1858
        %v2176 = vpop.f32.mrb[0].mxu0
        %v2177 = vadd.f32 %v1955, %v2176
        %v2178 = vpop.f32.mrb[0].mxu0
        %v2179 = vadd.f32 %v1959, %v2178
        %v2180 = vpop.f32.mrb[0].mxu0
        %v2181 = vadd.f32 %v1955, %v2180
        %v2182 = vpop.f32.mrb[0].mxu0
        %v2183 = vadd.f32 %v1959, %v2182
        %2184 = vmatprep.mubr.bf16.mxu0 %v1861
        %2185 = vmatmul.mubr.bf16.gmra.mrb[0].mxu0 %v1860
        %v2186 = vpop.f32.mrb[0].mxu0
        %v2187 = vadd.f32 %v1955, %v2186
        %v2188 = vpop.f32.mrb[0].mxu0
        %v2189 = vadd.f32 %v1959, %v2188
        %v2190 = vpop.f32.mrb[0].mxu0
        %v2191 = vadd.f32 %v1955, %v2190
        %v2192 = vpop.f32.mrb[0].mxu0
        %v2193 = vadd.f32 %v1959, %v2192
        %2194 = vmatprep.mubr.bf16.mxu0 %v1863
        %2195 = vmatmul.mubr.bf16.gmra.mrb[0].mxu0 %v1862
        %v2196 = vpop.f32.mrb[0].mxu0
        %v2197 = vadd.f32 %v1955, %v2196
        %v2198 = vpop.f32.mrb[0].mxu0
        %v2199 = vadd.f32 %v1959, %v2198
        %v2200 = vpop.f32.mrb[0].mxu0
        %v2201 = vadd.f32 %v1955, %v2200
        %v2202 = vpop.f32.mrb[0].mxu0
        %v2203 = vadd.f32 %v1959, %v2202
        %2204 = vmatprep.mubr.bf16.mxu0 %v1865
        %2205 = vmatmul.mubr.bf16.gmra.mrb[0].mxu0 %v1864
        %v2206 = vpop.f32.mrb[0].mxu0
        %v2207 = vadd.f32 %v1955, %v2206
        %v2208 = vpop.f32.mrb[0].mxu0
        %v2209 = vadd.f32 %v1959, %v2208
        %v2210 = vpop.f32.mrb[0].mxu0
        %v2211 = vadd.f32 %v1955, %v2210
        %v2212 = vpop.f32.mrb[0].mxu0
        %v2213 = vadd.f32 %v1959, %v2212
        %2214 = vmatprep.mubr.bf16.mxu0 %v1867
        %2215 = vmatmul.mubr.bf16.gmra.mrb[0].mxu0 %v1866
        %v2216 = vpop.f32.mrb[0].mxu0
        %v2217 = vadd.f32 %v1955, %v2216
        %v2218 = vpop.f32.mrb[0].mxu0
        %v2219 = vadd.f32 %v1959, %v2218
        %v2220 = vpop.f32.mrb[0].mxu0
        %v2221 = vadd.f32 %v1955, %v2220
        %v2222 = vpop.f32.mrb[0].mxu0
        %v2223 = vadd.f32 %v1959, %v2222
        %2224 = vmatprep.mubr.bf16.mxu0 %v1869
        %2225 = vmatmul.mubr.bf16.gmra.mrb[0].mxu0 %v1868
        %v2226 = vpop.f32.mrb[0].mxu0
        %v2227 = vadd.f32 %v1955, %v2226
        %v2228 = vpop.f32.mrb[0].mxu0
        %v2229 = vadd.f32 %v1959, %v2228
        %v2230 = vpop.f32.mrb[0].mxu0
        %v2231 = vadd.f32 %v1955, %v2230
        %v2232 = vpop.f32.mrb[0].mxu0
        %v2233 = vadd.f32 %v1959, %v2232
        %2234 = vmatprep.mubr.bf16.mxu0 %v1871
        %2235 = vmatmul.mubr.bf16.gmra.mrb[0].mxu0 %v1870
        %v2236 = vpop.f32.mrb[0].mxu0
        %v2237 = vadd.f32 %v1955, %v2236
        %v2238 = vpop.f32.mrb[0].mxu0
        %v2239 = vadd.f32 %v1959, %v2238
        %v2240 = vpop.f32.mrb[0].mxu0
        %v2241 = vadd.f32 %v1955, %v2240
        %v2242 = vpop.f32.mrb[0].mxu0
        %v2243 = vadd.f32 %v1959, %v2242
        %2244 = vmatprep.mubr.bf16.mxu0 %v1873
        %2245 = vmatmul.mubr.bf16.gmra.mrb[0].mxu0 %v1872
        %v2246 = vpop.f32.mrb[0].mxu0
        %v2247 = vadd.f32 %v1955, %v2246
        %v2248 = vpop.f32.mrb[0].mxu0
        %v2249 = vadd.f32 %v1959, %v2248
        %v2250 = vpop.f32.mrb[0].mxu0
        %v2251 = vadd.f32 %v1955, %v2250
        %v2252 = vpop.f32.mrb[0].mxu0
        %v2253 = vadd.f32 %v1959, %v2252
        %2254 = vmatprep.mubr.bf16.mxu0 %v1875
        %2255 = vmatmul.mubr.bf16.gmra.mrb[0].mxu0 %v1874
        %v2256 = vpop.f32.mrb[0].mxu0
        %v2257 = vadd.f32 %v1955, %v2256
        %v2258 = vpop.f32.mrb[0].mxu0
        %v2259 = vadd.f32 %v1959, %v2258
        %v2260 = vpop.f32.mrb[0].mxu0
        %v2261 = vadd.f32 %v1955, %v2260
        %v2262 = vpop.f32.mrb[0].mxu0
        %v2263 = vadd.f32 %v1959, %v2262
        %2264 = vmatprep.mubr.bf16.mxu0 %v1877
        %2265 = vmatmul.mubr.bf16.gmra.mrb[0].mxu0 %v1876
        %v2266 = vpop.f32.mrb[0].mxu0
        %v2267 = vadd.f32 %v1955, %v2266
        %v2268 = vpop.f32.mrb[0].mxu0
        %v2269 = vadd.f32 %v1959, %v2268
        %v2270 = vpop.f32.mrb[0].mxu0
        %v2271 = vadd.f32 %v1955, %v2270
        %v2272 = vpop.f32.mrb[0].mxu0
        %v2273 = vadd.f32 %v1959, %v2272
        %2274 = vmatprep.mubr.bf16.mxu0 %v1879
        %2275 = vmatmul.mubr.bf16.gmra.mrb[0].mxu0 %v1878
        %v2276 = vpop.f32.mrb[0].mxu0
        %v2277 = vadd.f32 %v1955, %v2276
        %v2278 = vpop.f32.mrb[0].mxu0
        %v2279 = vadd.f32 %v1959, %v2278
        %v2280 = vpop.f32.mrb[0].mxu0
        %v2281 = vadd.f32 %v1955, %v2280
        %v2282 = vpop.f32.mrb[0].mxu0
        %v2283 = vadd.f32 %v1959, %v2282
        %2284 = vmatprep.mubr.bf16.mxu0 %v1881
        %2285 = vmatmul.mubr.bf16.gmra.mrb[0].mxu0 %v1880
        %v2286 = vpop.f32.mrb[0].mxu0
        %v2287 = vadd.f32 %v1955, %v2286
        %v2288 = vpop.f32.mrb[0].mxu0
        %v2289 = vadd.f32 %v1959, %v2288
        %v2290 = vpop.f32.mrb[0].mxu0
        %v2291 = vadd.f32 %v1955, %v2290
        %v2292 = vpop.f32.mrb[0].mxu0
        %v2293 = vadd.f32 %v1959, %v2292
        %2294 = vmatprep.mubr.bf16.mxu0 %v1883
        %2295 = vmatmul.mubr.bf16.gmra.mrb[0].mxu0 %v1882
        %v2296 = vpop.f32.mrb[0].mxu0
        %v2297 = vadd.f32 %v1955, %v2296
        %v2298 = vpop.f32.mrb[0].mxu0
        %v2299 = vadd.f32 %v1959, %v2298
        %v2300 = vpop.f32.mrb[0].mxu0
        %v2301 = vadd.f32 %v1955, %v2300
        %v2302 = vpop.f32.mrb[0].mxu0
        %v2303 = vadd.f32 %v1959, %v2302
        %2304 = vmatprep.mubr.bf16.mxu0 %v1885
        %2305 = vmatmul.mubr.bf16.gmra.mrb[0].mxu0 %v1884
        %v2306 = vpop.f32.mrb[0].mxu0
        %v2307 = vadd.f32 %v1955, %v2306
        %v2308 = vpop.f32.mrb[0].mxu0
        %v2309 = vadd.f32 %v1959, %v2308
        %v2310 = vpop.f32.mrb[0].mxu0
        %v2311 = vadd.f32 %v1955, %v2310
        %v2312 = vpop.f32.mrb[0].mxu0
        %v2313 = vadd.f32 %v1959, %v2312
        %2314 = vmatprep.mubr.bf16.mxu0 %v1887
        %2315 = vmatmul.mubr.bf16.gmra.mrb[0].mxu0 %v1886
        %v2316 = vpop.f32.mrb[0].mxu0
        %v2317 = vadd.f32 %v1955, %v2316
        %v2318 = vpop.f32.mrb[0].mxu0
        %v2319 = vadd.f32 %v1959, %v2318
        %v2320 = vpop.f32.mrb[0].mxu0
        %v2321 = vadd.f32 %v1955, %v2320
        %v2322 = vpop.f32.mrb[0].mxu0
        %v2323 = vadd.f32 %v1959, %v2322
        %2324 = vmatprep.mubr.bf16.mxu0 %v1889
        %2325 = vmatmul.mubr.bf16.gmra.mrb[0].mxu0 %v1888
        %v2326 = vpop.f32.mrb[0].mxu0
        %v2327 = vadd.f32 %v1955, %v2326
        %v2328 = vpop.f32.mrb[0].mxu0
        %v2329 = vadd.f32 %v1959, %v2328
        %v2330 = vpop.f32.mrb[0].mxu0
        %v2331 = vadd.f32 %v1955, %v2330
        %v2332 = vpop.f32.mrb[0].mxu0
        %v2333 = vadd.f32 %v1959, %v2332
        %2334 = vmatprep.mubr.bf16.mxu0 %v1891
        %2335 = vmatmul.mubr.bf16.gmra.mrb[0].mxu0 %v1890
        %v2336 = vpop.f32.mrb[0].mxu0
        %v2337 = vadd.f32 %v1955, %v2336
        %v2338 = vpop.f32.mrb[0].mxu0
        %v2339 = vadd.f32 %v1959, %v2338
        %v2340 = vpop.f32.mrb[0].mxu0
        %v2341 = vadd.f32 %v1955, %v2340
        %v2342 = vpop.f32.mrb[0].mxu0
        %v2343 = vadd.f32 %v1959, %v2342
        %2344 = vmatprep.mubr.bf16.mxu0 %v1893
        %2345 = vmatmul.mubr.bf16.gmra.mrb[0].mxu0 %v1892
        %v2346 = vpop.f32.mrb[0].mxu0
        %v2347 = vadd.f32 %v1955, %v2346
        %v2348 = vpop.f32.mrb[0].mxu0
        %v2349 = vadd.f32 %v1959, %v2348
        %v2350 = vpop.f32.mrb[0].mxu0
        %v2351 = vadd.f32 %v1955, %v2350
        %v2352 = vpop.f32.mrb[0].mxu0
        %v2353 = vadd.f32 %v1959, %v2352
        %2354 = vmatprep.mubr.bf16.mxu0 %v1895
        %2355 = vmatmul.mubr.bf16.gmra.mrb[0].mxu0 %v1894
        %v2356 = vpop.f32.mrb[0].mxu0
        %v2357 = vadd.f32 %v1955, %v2356
        %v2358 = vpop.f32.mrb[0].mxu0
        %v2359 = vadd.f32 %v1959, %v2358
        %v2360 = vpop.f32.mrb[0].mxu0
        %v2361 = vadd.f32 %v1955, %v2360
        %v2362 = vpop.f32.mrb[0].mxu0
        %v2363 = vadd.f32 %v1959, %v2362
        %2364 = vmatprep.mubr.bf16.mxu0 %v1897
        %2365 = vmatmul.mubr.bf16.gmra.mrb[0].mxu0 %v1896
        %v2366 = vpop.f32.mrb[0].mxu0
        %v2367 = vadd.f32 %v1955, %v2366
        %v2368 = vpop.f32.mrb[0].mxu0
        %v2369 = vadd.f32 %v1959, %v2368
        %v2370 = vpop.f32.mrb[0].mxu0
        %v2371 = vadd.f32 %v1955, %v2370
        %v2372 = vpop.f32.mrb[0].mxu0
        %v2373 = vadd.f32 %v1959, %v2372
        %2374 = vmatprep.mubr.bf16.mxu0 %v1899
        %2375 = vmatmul.mubr.bf16.gmra.mrb[0].mxu0 %v1898
        %v2376 = vpop.f32.mrb[0].mxu0
        %v2377 = vadd.f32 %v1955, %v2376
        %v2378 = vpop.f32.mrb[0].mxu0
        %v2379 = vadd.f32 %v1959, %v2378
        %v2380 = vpop.f32.mrb[0].mxu0
        %v2381 = vadd.f32 %v1955, %v2380
        %v2382 = vpop.f32.mrb[0].mxu0
        %v2383 = vadd.f32 %v1959, %v2382
        %2384 = vmatprep.mubr.bf16.mxu0 %v1901
        %2385 = vmatmul.mubr.bf16.gmra.mrb[0].mxu0 %v1900
        %v2386 = vpop.f32.mrb[0].mxu0
        %v2387 = vadd.f32 %v1955, %v2386
        %v2388 = vpop.f32.mrb[0].mxu0
        %v2389 = vadd.f32 %v1959, %v2388
        %v2390 = vpop.f32.mrb[0].mxu0
        %v2391 = vadd.f32 %v1955, %v2390
        %v2392 = vpop.f32.mrb[0].mxu0
        %v2393 = vadd.f32 %v1959, %v2392
        %2394 = vmatprep.mubr.bf16.mxu0 %v1903
        %2395 = vmatmul.mubr.bf16.gmra.mrb[0].mxu0 %v1902
        %v2396 = vpop.f32.mrb[0].mxu0
        %v2397 = vadd.f32 %v1955, %v2396
        %v2398 = vpop.f32.mrb[0].mxu0
        %v2399 = vadd.f32 %v1959, %v2398
        %v2400 = vpop.f32.mrb[0].mxu0
        %v2401 = vadd.f32 %v1955, %v2400
        %v2402 = vpop.f32.mrb[0].mxu0
        %v2403 = vadd.f32 %v1959, %v2402
        %2404 = vmatprep.mubr.bf16.mxu0 %v1905
        %2405 = vmatmul.mubr.bf16.gmra.mrb[0].mxu0 %v1904
        %v2406 = vpop.f32.mrb[0].mxu0
        %v2407 = vadd.f32 %v1955, %v2406
        %v2408 = vpop.f32.mrb[0].mxu0
        %v2409 = vadd.f32 %v1959, %v2408
        %v2410 = vpop.f32.mrb[0].mxu0
        %v2411 = vadd.f32 %v1955, %v2410
        %v2412 = vpop.f32.mrb[0].mxu0
        %v2413 = vadd.f32 %v1959, %v2412
        %2414 = vmatprep.mubr.bf16.mxu0 %v1907
        %2415 = vmatmul.mubr.bf16.gmra.mrb[0].mxu0 %v1906
        %v2416 = vpop.f32.mrb[0].mxu0
        %v2417 = vadd.f32 %v1955, %v2416
        %v2418 = vpop.f32.mrb[0].mxu0
        %v2419 = vadd.f32 %v1959, %v2418
        %v2420 = vpop.f32.mrb[0].mxu0
        %v2421 = vadd.f32 %v1955, %v2420
        %v2422 = vpop.f32.mrb[0].mxu0
        %v2423 = vadd.f32 %v1959, %v2422
        %2424 = vmatprep.mubr.bf16.mxu0 %v1909
        %2425 = vmatmul.mubr.bf16.gmra.mrb[0].mxu0 %v1908
        %v2426 = vpop.f32.mrb[0].mxu0
        %v2427 = vadd.f32 %v1955, %v2426
        %v2428 = vpop.f32.mrb[0].mxu0
        %v2429 = vadd.f32 %v1959, %v2428
        %v2430 = vpop.f32.mrb[0].mxu0
        %v2431 = vadd.f32 %v1955, %v2430
        %v2432 = vpop.f32.mrb[0].mxu0
        %v2433 = vadd.f32 %v1959, %v2432
        %2434 = vmatprep.mubr.bf16.mxu0 %v1911
        %2435 = vmatmul.mubr.bf16.gmra.mrb[0].mxu0 %v1910
        %v2436 = vpop.f32.mrb[0].mxu0
        %v2437 = vadd.f32 %v1955, %v2436
        %v2438 = vpop.f32.mrb[0].mxu0
        %v2439 = vadd.f32 %v1959, %v2438
        %v2440 = vpop.f32.mrb[0].mxu0
        %v2441 = vadd.f32 %v1955, %v2440
        %v2442 = vpop.f32.mrb[0].mxu0
        %v2443 = vadd.f32 %v1959, %v2442
        %2444 = vmatprep.mubr.bf16.mxu0 %v1913
        %2445 = vmatmul.mubr.bf16.gmra.mrb[0].mxu0 %v1912
        %v2446 = vpop.f32.mrb[0].mxu0
        %v2447 = vadd.f32 %v1955, %v2446
        %v2448 = vpop.f32.mrb[0].mxu0
        %v2449 = vadd.f32 %v1959, %v2448
        %v2450 = vpop.f32.mrb[0].mxu0
        %v2451 = vadd.f32 %v1955, %v2450
        %v2452 = vpop.f32.mrb[0].mxu0
        %v2453 = vadd.f32 %v1959, %v2452
        %2454 = vmatprep.mubr.bf16.mxu0 %v1915
        %2455 = vmatmul.mubr.bf16.gmra.mrb[0].mxu0 %v1914
        %v2456 = vpop.f32.mrb[0].mxu0
        %v2457 = vadd.f32 %v1955, %v2456
        %v2458 = vpop.f32.mrb[0].mxu0
        %v2459 = vadd.f32 %v1959, %v2458
        %v2460 = vpop.f32.mrb[0].mxu0
        %v2461 = vadd.f32 %v1955, %v2460
        %v2462 = vpop.f32.mrb[0].mxu0
        %v2463 = vadd.f32 %v1959, %v2462
        %2464 = vmatprep.mubr.bf16.mxu0 %v1917
        %2465 = vmatmul.mubr.bf16.gmra.mrb[0].mxu0 %v1916
        %v2466 = vpop.f32.mrb[0].mxu0
        %v2467 = vadd.f32 %v1955, %v2466
        %v2468 = vpop.f32.mrb[0].mxu0
        %v2469 = vadd.f32 %v1959, %v2468
        %v2470 = vpop.f32.mrb[0].mxu0
        %v2471 = vpop.f32.mrb[0].mxu0
        %2472 = vdwg.mxu0
        %v2473 = vmax.f32 %v2157, 0.0
        %v2474 = vmax.f32 %v2159, 0.0
        %v2475 = vmax.f32 %v2161, 0.0
        %v2476 = vmax.f32 %v2163, 0.0
        %v2477 = vmax.f32 %v2167, 0.0
        %v2478 = vmax.f32 %v2169, 0.0
        %v2479 = vmax.f32 %v2171, 0.0
        %v2480 = vmax.f32 %v2173, 0.0
        %v2481 = vmax.f32 %v2177, 0.0
        %v2482 = vmax.f32 %v2179, 0.0
        %v2483 = vmax.f32 %v2181, 0.0
        %v2484 = vmax.f32 %v2183, 0.0
        %v2485 = vmax.f32 %v2187, 0.0
        %v2486 = vmax.f32 %v2189, 0.0
        %v2487 = vmax.f32 %v2191, 0.0
        %v2488 = vmax.f32 %v2193, 0.0
        %v2489 = vmax.f32 %v2197, 0.0
        %v2490 = vmax.f32 %v2199, 0.0
        %v2491 = vmax.f32 %v2201, 0.0
        %v2492 = vmax.f32 %v2203, 0.0
        %v2493 = vmax.f32 %v2207, 0.0
        %v2494 = vmax.f32 %v2209, 0.0
        %v2495 = vmax.f32 %v2211, 0.0
        %v2496 = vmax.f32 %v2213, 0.0
        %v2497 = vmax.f32 %v2217, 0.0
        %v2498 = vmax.f32 %v2219, 0.0
        %v2499 = vmax.f32 %v2221, 0.0
        %v2500 = vmax.f32 %v2223, 0.0
        %v2501 = vmax.f32 %v2227, 0.0
        %v2502 = vmax.f32 %v2229, 0.0
        %v2503 = vmax.f32 %v2231, 0.0
        %v2504 = vmax.f32 %v2233, 0.0
        %v2505 = vmax.f32 %v2237, 0.0
        %v2506 = vmax.f32 %v2239, 0.0
        %v2507 = vmax.f32 %v2241, 0.0
        %v2508 = vmax.f32 %v2243, 0.0
        %v2509 = vmax.f32 %v2247, 0.0
        %v2510 = vmax.f32 %v2249, 0.0
        %v2511 = vmax.f32 %v2251, 0.0
        %v2512 = vmax.f32 %v2253, 0.0
        %v2513 = vmax.f32 %v2257, 0.0
        %v2514 = vmax.f32 %v2259, 0.0
        %v2515 = vmax.f32 %v2261, 0.0
        %v2516 = vmax.f32 %v2263, 0.0
        %v2517 = vmax.f32 %v2267, 0.0
        %v2518 = vmax.f32 %v2269, 0.0
        %v2519 = vmax.f32 %v2271, 0.0
        %v2520 = vmax.f32 %v2273, 0.0
        %v2521 = vmax.f32 %v2277, 0.0
        %v2522 = vmax.f32 %v2279, 0.0
        %v2523 = vmax.f32 %v2281, 0.0
        %v2524 = vmax.f32 %v2283, 0.0
        %v2525 = vmax.f32 %v2287, 0.0
        %v2526 = vmax.f32 %v2289, 0.0
        %v2527 = vmax.f32 %v2291, 0.0
        %v2528 = vmax.f32 %v2293, 0.0
        %v2529 = vmax.f32 %v2297, 0.0
        %v2530 = vmax.f32 %v2299, 0.0
        %v2531 = vmax.f32 %v2301, 0.0
        %v2532 = vmax.f32 %v2303, 0.0
        %v2533 = vmax.f32 %v2307, 0.0
        %v2534 = vmax.f32 %v2309, 0.0
        %v2535 = vmax.f32 %v2311, 0.0
        %v2536 = vmax.f32 %v2313, 0.0
        %v2537 = vmax.f32 %v2317, 0.0
        %v2538 = vmax.f32 %v2319, 0.0
        %v2539 = vmax.f32 %v2321, 0.0
        %v2540 = vmax.f32 %v2323, 0.0
        %v2541 = vmax.f32 %v2327, 0.0
        %v2542 = vmax.f32 %v2329, 0.0
        %v2543 = vmax.f32 %v2331, 0.0
        %v2544 = vmax.f32 %v2333, 0.0
        %v2545 = vmax.f32 %v2337, 0.0
        %v2546 = vmax.f32 %v2339, 0.0
        %v2547 = vmax.f32 %v2341, 0.0
        %v2548 = vmax.f32 %v2343, 0.0
        %v2549 = vmax.f32 %v2347, 0.0
        %v2550 = vmax.f32 %v2349, 0.0
        %v2551 = vmax.f32 %v2351, 0.0
        %v2552 = vmax.f32 %v2353, 0.0
        %v2553 = vmax.f32 %v2357, 0.0
        %v2554 = vmax.f32 %v2359, 0.0
        %v2555 = vmax.f32 %v2361, 0.0
        %v2556 = vmax.f32 %v2363, 0.0
        %v2557 = vmax.f32 %v2367, 0.0
        %v2558 = vmax.f32 %v2369, 0.0
        %v2559 = vmax.f32 %v2371, 0.0
        %v2560 = vmax.f32 %v2373, 0.0
        %v2561 = vmax.f32 %v2377, 0.0
        %v2562 = vmax.f32 %v2379, 0.0
        %v2563 = vmax.f32 %v2381, 0.0
        %v2564 = vmax.f32 %v2383, 0.0
        %v2565 = vmax.f32 %v2387, 0.0
        %v2566 = vmax.f32 %v2389, 0.0
        %v2567 = vmax.f32 %v2391, 0.0
        %v2568 = vmax.f32 %v2393, 0.0
        %v2569 = vmax.f32 %v2397, 0.0
        %v2570 = vmax.f32 %v2399, 0.0
        %v2571 = vmax.f32 %v2401, 0.0
        %v2572 = vmax.f32 %v2403, 0.0
        %v2573 = vmax.f32 %v2407, 0.0
        %v2574 = vmax.f32 %v2409, 0.0
        %v2575 = vmax.f32 %v2411, 0.0
        %v2576 = vmax.f32 %v2413, 0.0
        %v2577 = vmax.f32 %v2417, 0.0
        %v2578 = vmax.f32 %v2419, 0.0
        %v2579 = vmax.f32 %v2421, 0.0
        %v2580 = vmax.f32 %v2423, 0.0
        %v2581 = vmax.f32 %v2427, 0.0
        %v2582 = vmax.f32 %v2429, 0.0
        %v2583 = vmax.f32 %v2431, 0.0
        %v2584 = vmax.f32 %v2433, 0.0
        %v2585 = vmax.f32 %v2437, 0.0
        %v2586 = vmax.f32 %v2439, 0.0
        %v2587 = vmax.f32 %v2441, 0.0
        %v2588 = vmax.f32 %v2443, 0.0
        %v2589 = vmax.f32 %v2447, 0.0
        %v2590 = vmax.f32 %v2449, 0.0
        %v2591 = vmax.f32 %v2451, 0.0
        %v2592 = vmax.f32 %v2453, 0.0
        %v2593 = vmax.f32 %v2457, 0.0
        %v2594 = vmax.f32 %v2459, 0.0
        %v2595 = vmax.f32 %v2461, 0.0
        %v2596 = vmax.f32 %v2463, 0.0
        %v2597 = vmax.f32 %v2467, 0.0
        %v2598 = vmax.f32 %v2469, 0.0
        %v2599 = vpack.c.bf16 %v2475, %v2473
        %v2600 = vpack.c.bf16 %v2476, %v2474
        %v2601 = vpack.c.bf16 %v2479, %v2477
        %v2602 = vpack.c.bf16 %v2480, %v2478
        %v2603 = vpack.c.bf16 %v2483, %v2481
        %v2604 = vpack.c.bf16 %v2484, %v2482
        %v2605 = vpack.c.bf16 %v2487, %v2485
        %v2606 = vpack.c.bf16 %v2488, %v2486
        %v2607 = vpack.c.bf16 %v2491, %v2489
        %v2608 = vpack.c.bf16 %v2492, %v2490
        %v2609 = vpack.c.bf16 %v2495, %v2493
        %v2610 = vpack.c.bf16 %v2496, %v2494
        %v2611 = vpack.c.bf16 %v2499, %v2497
        %v2612 = vpack.c.bf16 %v2500, %v2498
        %v2613 = vpack.c.bf16 %v2503, %v2501
        %v2614 = vpack.c.bf16 %v2504, %v2502
        %v2615 = vpack.c.bf16 %v2507, %v2505
        %v2616 = vpack.c.bf16 %v2508, %v2506
        %v2617 = vpack.c.bf16 %v2511, %v2509
        %v2618 = vpack.c.bf16 %v2512, %v2510
        %v2619 = vpack.c.bf16 %v2515, %v2513
        %v2620 = vpack.c.bf16 %v2516, %v2514
        %v2621 = vpack.c.bf16 %v2519, %v2517
        %v2622 = vpack.c.bf16 %v2520, %v2518
        %v2623 = vpack.c.bf16 %v2523, %v2521
        %v2624 = vpack.c.bf16 %v2524, %v2522
        %v2625 = vpack.c.bf16 %v2527, %v2525
        %v2626 = vpack.c.bf16 %v2528, %v2526
        %v2627 = vpack.c.bf16 %v2531, %v2529
        %v2628 = vpack.c.bf16 %v2532, %v2530
        %v2629 = vpack.c.bf16 %v2535, %v2533
        %v2630 = vpack.c.bf16 %v2536, %v2534
        %v2631 = vpack.c.bf16 %v2539, %v2537
        %v2632 = vpack.c.bf16 %v2540, %v2538
        %v2633 = vpack.c.bf16 %v2543, %v2541
        %v2634 = vpack.c.bf16 %v2544, %v2542
        %v2635 = vpack.c.bf16 %v2547, %v2545
        %v2636 = vpack.c.bf16 %v2548, %v2546
        %v2637 = vpack.c.bf16 %v2551, %v2549
        %v2638 = vpack.c.bf16 %v2552, %v2550
        %v2639 = vpack.c.bf16 %v2555, %v2553
        %v2640 = vpack.c.bf16 %v2556, %v2554
        %v2641 = vpack.c.bf16 %v2559, %v2557
        %v2642 = vpack.c.bf16 %v2560, %v2558
        %v2643 = vpack.c.bf16 %v2563, %v2561
        %v2644 = vpack.c.bf16 %v2564, %v2562
        %v2645 = vpack.c.bf16 %v2567, %v2565
        %v2646 = vpack.c.bf16 %v2568, %v2566
        %v2647 = vpack.c.bf16 %v2571, %v2569
        %v2648 = vpack.c.bf16 %v2572, %v2570
        %v2649 = vpack.c.bf16 %v2575, %v2573
        %v2650 = vpack.c.bf16 %v2576, %v2574
        %v2651 = vpack.c.bf16 %v2579, %v2577
        %v2652 = vpack.c.bf16 %v2580, %v2578
        %v2653 = vpack.c.bf16 %v2583, %v2581
        %v2654 = vpack.c.bf16 %v2584, %v2582
        %v2655 = vpack.c.bf16 %v2587, %v2585
        %v2656 = vpack.c.bf16 %v2588, %v2586
        %v2657 = vpack.c.bf16 %v2591, %v2589
        %v2658 = vpack.c.bf16 %v2592, %v2590
        %v2659 = vpack.c.bf16 %v2595, %v2593
        %v2660 = vpack.c.bf16 %v2596, %v2594
        %v2661 = vpack.c.bf16 %v2597, %v2597
        %v2662 = vpack.c.bf16 %v2598, %v2598
        %v2663 = vld [vmem:[%s7] sm:$0xff]
        %v2664 = vld [vmem:[%s7 + $0x8] sm:$0xff]
        %v2665 = vld [vmem:[%s7 + $0x10] sm:$0xff]
        %v2666 = vld [vmem:[%s7 + $0x18] sm:$0xff]
        %v2667 = vld [vmem:[%s7 + $0x20] sm:$0xff]
        %v2668 = vld [vmem:[%s7 + $0x28] sm:$0xff]
        %v2669 = vld [vmem:[%s7 + $0x30] sm:$0xff]
        %v2670 = vld [vmem:[%s7 + $0x38] sm:$0xff]
        %v2671 = vld [vmem:[%s7 + $0x40] sm:$0xff]
        %v2672 = vld [vmem:[%s7 + $0x48] sm:$0xff]
        %v2673 = vld [vmem:[%s7 + $0x50] sm:$0xff]
        %v2674 = vld [vmem:[%s7 + $0x58] sm:$0xff]
        %v2675 = vld [vmem:[%s7 + $0x60] sm:$0xff]
        %v2676 = vld [vmem:[%s7 + $0x68] sm:$0xff]
        %v2677 = vld [vmem:[%s7 + $0x70] sm:$0xff]
        %v2678 = vld [vmem:[%s7 + $0x78] sm:$0xff]
        %v2679 = vld [vmem:[%s7 + $0x80] sm:$0xff]
        %v2680 = vld [vmem:[%s7 + $0x88] sm:$0xff]
        %v2681 = vld [vmem:[%s7 + $0x90] sm:$0xff]
        %v2682 = vld [vmem:[%s7 + $0x98] sm:$0xff]
        %v2683 = vld [vmem:[%s7 + $0xa0] sm:$0xff]
        %v2684 = vld [vmem:[%s7 + $0xa8] sm:$0xff]
        %v2685 = vld [vmem:[%s7 + $0xb0] sm:$0xff]
        %v2686 = vld [vmem:[%s7 + $0xb8] sm:$0xff]
        %v2687 = vld [vmem:[%s7 + $0xc0] sm:$0xff]
        %v2688 = vld [vmem:[%s7 + $0xc8] sm:$0xff]
        %v2689 = vld [vmem:[%s7 + $0xd0] sm:$0xff]
        %v2690 = vld [vmem:[%s7 + $0xd8] sm:$0xff]
        %v2691 = vld [vmem:[%s7 + $0xe0] sm:$0xff]
        %v2692 = vld [vmem:[%s7 + $0xe8] sm:$0xff]
        %v2693 = vld [vmem:[%s7 + $0xf0] sm:$0xff]
        %v2694 = vld [vmem:[%s7 + $0xf8] sm:$0xff]
        %v2695 = vld [vmem:[%s8] sm:$0x3]
        %v2697 = vlaneseq
        %v2698 = vshrl.u32 %v2697, 7
        %v2699 = vsub.s32 0, %v2698
        %v2700 = vrot.slane %v2695, %v2699
        %v2701 = vlaneseq
        %v2702 = vshrl.u32 %v2701, 7
        %v2703 = vsub.s32 1, %v2702
        %v2704 = vrot.slane %v2695, %v2703
        %v2739 = vunpack.c.l.b16 %v2663
        %v2740 = vunpack.c.h.b16 %v2663
        %v2741 = vunpack.c.l.b16 %v2664
        %v2742 = vunpack.c.h.b16 %v2664
        %v2743 = vunpack.c.l.b16 %v2665
        %v2744 = vunpack.c.h.b16 %v2665
        %v2745 = vunpack.c.l.b16 %v2666
        %v2746 = vunpack.c.h.b16 %v2666
        %v2747 = vunpack.c.l.b16 %v2667
        %v2748 = vunpack.c.h.b16 %v2667
        %v2749 = vunpack.c.l.b16 %v2668
        %v2750 = vunpack.c.h.b16 %v2668
        %v2751 = vunpack.c.l.b16 %v2669
        %v2752 = vunpack.c.h.b16 %v2669
        %v2753 = vunpack.c.l.b16 %v2670
        %v2754 = vunpack.c.h.b16 %v2670
        %v2755 = vunpack.c.l.b16 %v2671
        %v2756 = vunpack.c.h.b16 %v2671
        %v2757 = vunpack.c.l.b16 %v2672
        %v2758 = vunpack.c.h.b16 %v2672
        %v2759 = vunpack.c.l.b16 %v2673
        %v2760 = vunpack.c.h.b16 %v2673
        %v2761 = vunpack.c.l.b16 %v2674
        %v2762 = vunpack.c.h.b16 %v2674
        %v2763 = vunpack.c.l.b16 %v2675
        %v2764 = vunpack.c.h.b16 %v2675
        %v2765 = vunpack.c.l.b16 %v2676
        %v2766 = vunpack.c.h.b16 %v2676
        %v2767 = vunpack.c.l.b16 %v2677
        %v2768 = vunpack.c.h.b16 %v2677
        %v2769 = vunpack.c.l.b16 %v2678
        %v2770 = vunpack.c.h.b16 %v2678
        %v2771 = vunpack.c.l.b16 %v2679
        %v2772 = vunpack.c.h.b16 %v2679
        %v2773 = vunpack.c.l.b16 %v2680
        %v2774 = vunpack.c.h.b16 %v2680
        %v2775 = vunpack.c.l.b16 %v2681
        %v2776 = vunpack.c.h.b16 %v2681
        %v2777 = vunpack.c.l.b16 %v2682
        %v2778 = vunpack.c.h.b16 %v2682
        %v2779 = vunpack.c.l.b16 %v2683
        %v2780 = vunpack.c.h.b16 %v2683
        %v2781 = vunpack.c.l.b16 %v2684
        %v2782 = vunpack.c.h.b16 %v2684
        %v2783 = vunpack.c.l.b16 %v2685
        %v2784 = vunpack.c.h.b16 %v2685
        %v2785 = vunpack.c.l.b16 %v2686
        %v2786 = vunpack.c.h.b16 %v2686
        %v2787 = vunpack.c.l.b16 %v2687
        %v2788 = vunpack.c.h.b16 %v2687
        %v2789 = vunpack.c.l.b16 %v2688
        %v2790 = vunpack.c.h.b16 %v2688
        %v2791 = vunpack.c.l.b16 %v2689
        %v2792 = vunpack.c.h.b16 %v2689
        %v2793 = vunpack.c.l.b16 %v2690
        %v2794 = vunpack.c.h.b16 %v2690
        %v2795 = vunpack.c.l.b16 %v2691
        %v2796 = vunpack.c.h.b16 %v2691
        %v2797 = vunpack.c.l.b16 %v2692
        %v2798 = vunpack.c.h.b16 %v2692
        %v2799 = vunpack.c.l.b16 %v2693
        %v2800 = vunpack.c.h.b16 %v2693
        %v2801 = vunpack.c.l.b16 %v2694
        %v2802 = vunpack.c.h.b16 %v2694
        %v2803 = vpack.c.b16 %v2741, %v2739
        %v2804 = vpack.c.b16 %v2742, %v2740
        %v2805 = vpack.c.b16 %v2745, %v2743
        %v2806 = vpack.c.b16 %v2746, %v2744
        %v2807 = vpack.c.b16 %v2749, %v2747
        %v2808 = vpack.c.b16 %v2750, %v2748
        %v2809 = vpack.c.b16 %v2753, %v2751
        %v2810 = vpack.c.b16 %v2754, %v2752
        %v2811 = vpack.c.b16 %v2757, %v2755
        %v2812 = vpack.c.b16 %v2758, %v2756
        %v2813 = vpack.c.b16 %v2761, %v2759
        %v2814 = vpack.c.b16 %v2762, %v2760
        %v2815 = vpack.c.b16 %v2765, %v2763
        %v2816 = vpack.c.b16 %v2766, %v2764
        %v2817 = vpack.c.b16 %v2769, %v2767
        %v2818 = vpack.c.b16 %v2770, %v2768
        %v2819 = vpack.c.b16 %v2773, %v2771
        %v2820 = vpack.c.b16 %v2774, %v2772
        %v2821 = vpack.c.b16 %v2777, %v2775
        %v2822 = vpack.c.b16 %v2778, %v2776
        %v2823 = vpack.c.b16 %v2781, %v2779
        %v2824 = vpack.c.b16 %v2782, %v2780
        %v2825 = vpack.c.b16 %v2785, %v2783
        %v2826 = vpack.c.b16 %v2786, %v2784
        %v2827 = vpack.c.b16 %v2789, %v2787
        %v2828 = vpack.c.b16 %v2790, %v2788
        %v2829 = vpack.c.b16 %v2793, %v2791
        %v2830 = vpack.c.b16 %v2794, %v2792
        %v2831 = vpack.c.b16 %v2797, %v2795
        %v2832 = vpack.c.b16 %v2798, %v2796
        %v2833 = vpack.c.b16 %v2801, %v2799
        %v2834 = vpack.c.b16 %v2802, %v2800
        %2867 = vmatprep.subr.bf16.mxu0 %v2804
        %2868 = vmatpush1.bf16.msra.mxu0 %v2803
        %2869 = vmatprep.subr.bf16.mxu0 %v2806
        %2870 = vmatpush1.bf16.msra.mxu0 %v2805
        %2871 = vmatprep.subr.bf16.mxu0 %v2808
        %2872 = vmatpush1.bf16.msra.mxu0 %v2807
        %2873 = vmatprep.subr.bf16.mxu0 %v2810
        %2874 = vmatpush1.bf16.msra.mxu0 %v2809
        %2875 = vmatprep.subr.bf16.mxu0 %v2812
        %2876 = vmatpush1.bf16.msra.mxu0 %v2811
        %2877 = vmatprep.subr.bf16.mxu0 %v2814
        %2878 = vmatpush1.bf16.msra.mxu0 %v2813
        %2879 = vmatprep.subr.bf16.mxu0 %v2816
        %2880 = vmatpush1.bf16.msra.mxu0 %v2815
        %2881 = vmatprep.subr.bf16.mxu0 %v2818
        %2882 = vmatpush1.bf16.msra.mxu0 %v2817
        %2883 = vmatprep.subr.bf16.mxu0 %v2820
        %2884 = vmatpush1.bf16.msra.mxu0 %v2819
        %2885 = vmatprep.subr.bf16.mxu0 %v2822
        %2886 = vmatpush1.bf16.msra.mxu0 %v2821
        %2887 = vmatprep.subr.bf16.mxu0 %v2824
        %2888 = vmatpush1.bf16.msra.mxu0 %v2823
        %2889 = vmatprep.subr.bf16.mxu0 %v2826
        %2890 = vmatpush1.bf16.msra.mxu0 %v2825
        %2891 = vmatprep.subr.bf16.mxu0 %v2828
        %2892 = vmatpush1.bf16.msra.mxu0 %v2827
        %2893 = vmatprep.subr.bf16.mxu0 %v2830
        %2894 = vmatpush1.bf16.msra.mxu0 %v2829
        %2895 = vmatprep.subr.bf16.mxu0 %v2832
        %2896 = vmatpush1.bf16.msra.mxu0 %v2831
        %2897 = vmatprep.subr.bf16.mxu0 %v2834
        %2898 = vmatpush1.bf16.msra.mxu0 %v2833
        %2899 = vmatprep.mubr.bf16.mxu0 %v2600
        %2900 = vmatmul.mubr.bf16.gmra.mrb[0].mxu0 %v2599
        %v2901 = vpop.f32.mrb[0].mxu0
        %v2902 = vadd.f32 %v2700, %v2901
        %v2903 = vpop.f32.mrb[0].mxu0
        %v2904 = vadd.f32 %v2704, %v2903
        %v2905 = vpop.f32.mrb[0].mxu0
        %v2906 = vadd.f32 %v2700, %v2905
        %v2907 = vpop.f32.mrb[0].mxu0
        %v2908 = vadd.f32 %v2704, %v2907
        %2909 = vmatprep.mubr.bf16.mxu0 %v2602
        %2910 = vmatmul.mubr.bf16.gmra.mrb[0].mxu0 %v2601
        %v2911 = vpop.f32.mrb[0].mxu0
        %v2912 = vadd.f32 %v2700, %v2911
        %v2913 = vpop.f32.mrb[0].mxu0
        %v2914 = vadd.f32 %v2704, %v2913
        %v2915 = vpop.f32.mrb[0].mxu0
        %v2916 = vadd.f32 %v2700, %v2915
        %v2917 = vpop.f32.mrb[0].mxu0
        %v2918 = vadd.f32 %v2704, %v2917
        %2919 = vmatprep.mubr.bf16.mxu0 %v2604
        %2920 = vmatmul.mubr.bf16.gmra.mrb[0].mxu0 %v2603
        %v2921 = vpop.f32.mrb[0].mxu0
        %v2922 = vadd.f32 %v2700, %v2921
        %v2923 = vpop.f32.mrb[0].mxu0
        %v2924 = vadd.f32 %v2704, %v2923
        %v2925 = vpop.f32.mrb[0].mxu0
        %v2926 = vadd.f32 %v2700, %v2925
        %v2927 = vpop.f32.mrb[0].mxu0
        %v2928 = vadd.f32 %v2704, %v2927
        %2929 = vmatprep.mubr.bf16.mxu0 %v2606
        %2930 = vmatmul.mubr.bf16.gmra.mrb[0].mxu0 %v2605
        %v2931 = vpop.f32.mrb[0].mxu0
        %v2932 = vadd.f32 %v2700, %v2931
        %v2933 = vpop.f32.mrb[0].mxu0
        %v2934 = vadd.f32 %v2704, %v2933
        %v2935 = vpop.f32.mrb[0].mxu0
        %v2936 = vadd.f32 %v2700, %v2935
        %v2937 = vpop.f32.mrb[0].mxu0
        %v2938 = vadd.f32 %v2704, %v2937
        %2939 = vmatprep.mubr.bf16.mxu0 %v2608
        %2940 = vmatmul.mubr.bf16.gmra.mrb[0].mxu0 %v2607
        %v2941 = vpop.f32.mrb[0].mxu0
        %v2942 = vadd.f32 %v2700, %v2941
        %v2943 = vpop.f32.mrb[0].mxu0
        %v2944 = vadd.f32 %v2704, %v2943
        %v2945 = vpop.f32.mrb[0].mxu0
        %v2946 = vadd.f32 %v2700, %v2945
        %v2947 = vpop.f32.mrb[0].mxu0
        %v2948 = vadd.f32 %v2704, %v2947
        %2949 = vmatprep.mubr.bf16.mxu0 %v2610
        %2950 = vmatmul.mubr.bf16.gmra.mrb[0].mxu0 %v2609
        %v2951 = vpop.f32.mrb[0].mxu0
        %v2952 = vadd.f32 %v2700, %v2951
        %v2953 = vpop.f32.mrb[0].mxu0
        %v2954 = vadd.f32 %v2704, %v2953
        %v2955 = vpop.f32.mrb[0].mxu0
        %v2956 = vadd.f32 %v2700, %v2955
        %v2957 = vpop.f32.mrb[0].mxu0
        %v2958 = vadd.f32 %v2704, %v2957
        %2959 = vmatprep.mubr.bf16.mxu0 %v2612
        %2960 = vmatmul.mubr.bf16.gmra.mrb[0].mxu0 %v2611
        %v2961 = vpop.f32.mrb[0].mxu0
        %v2962 = vadd.f32 %v2700, %v2961
        %v2963 = vpop.f32.mrb[0].mxu0
        %v2964 = vadd.f32 %v2704, %v2963
        %v2965 = vpop.f32.mrb[0].mxu0
        %v2966 = vadd.f32 %v2700, %v2965
        %v2967 = vpop.f32.mrb[0].mxu0
        %v2968 = vadd.f32 %v2704, %v2967
        %2969 = vmatprep.mubr.bf16.mxu0 %v2614
        %2970 = vmatmul.mubr.bf16.gmra.mrb[0].mxu0 %v2613
        %v2971 = vpop.f32.mrb[0].mxu0
        %v2972 = vadd.f32 %v2700, %v2971
        %v2973 = vpop.f32.mrb[0].mxu0
        %v2974 = vadd.f32 %v2704, %v2973
        %v2975 = vpop.f32.mrb[0].mxu0
        %v2976 = vadd.f32 %v2700, %v2975
        %v2977 = vpop.f32.mrb[0].mxu0
        %v2978 = vadd.f32 %v2704, %v2977
        %2979 = vmatprep.mubr.bf16.mxu0 %v2616
        %2980 = vmatmul.mubr.bf16.gmra.mrb[0].mxu0 %v2615
        %v2981 = vpop.f32.mrb[0].mxu0
        %v2982 = vadd.f32 %v2700, %v2981
        %v2983 = vpop.f32.mrb[0].mxu0
        %v2984 = vadd.f32 %v2704, %v2983
        %v2985 = vpop.f32.mrb[0].mxu0
        %v2986 = vadd.f32 %v2700, %v2985
        %v2987 = vpop.f32.mrb[0].mxu0
        %v2988 = vadd.f32 %v2704, %v2987
        %2989 = vmatprep.mubr.bf16.mxu0 %v2618
        %2990 = vmatmul.mubr.bf16.gmra.mrb[0].mxu0 %v2617
        %v2991 = vpop.f32.mrb[0].mxu0
        %v2992 = vadd.f32 %v2700, %v2991
        %v2993 = vpop.f32.mrb[0].mxu0
        %v2994 = vadd.f32 %v2704, %v2993
        %v2995 = vpop.f32.mrb[0].mxu0
        %v2996 = vadd.f32 %v2700, %v2995
        %v2997 = vpop.f32.mrb[0].mxu0
        %v2998 = vadd.f32 %v2704, %v2997
        %2999 = vmatprep.mubr.bf16.mxu0 %v2620
        %3000 = vmatmul.mubr.bf16.gmra.mrb[0].mxu0 %v2619
        %v3001 = vpop.f32.mrb[0].mxu0
        %v3002 = vadd.f32 %v2700, %v3001
        %v3003 = vpop.f32.mrb[0].mxu0
        %v3004 = vadd.f32 %v2704, %v3003
        %v3005 = vpop.f32.mrb[0].mxu0
        %v3006 = vadd.f32 %v2700, %v3005
        %v3007 = vpop.f32.mrb[0].mxu0
        %v3008 = vadd.f32 %v2704, %v3007
        %3009 = vmatprep.mubr.bf16.mxu0 %v2622
        %3010 = vmatmul.mubr.bf16.gmra.mrb[0].mxu0 %v2621
        %v3011 = vpop.f32.mrb[0].mxu0
        %v3012 = vadd.f32 %v2700, %v3011
        %v3013 = vpop.f32.mrb[0].mxu0
        %v3014 = vadd.f32 %v2704, %v3013
        %v3015 = vpop.f32.mrb[0].mxu0
        %v3016 = vadd.f32 %v2700, %v3015
        %v3017 = vpop.f32.mrb[0].mxu0
        %v3018 = vadd.f32 %v2704, %v3017
        %3019 = vmatprep.mubr.bf16.mxu0 %v2624
        %3020 = vmatmul.mubr.bf16.gmra.mrb[0].mxu0 %v2623
        %v3021 = vpop.f32.mrb[0].mxu0
        %v3022 = vadd.f32 %v2700, %v3021
        %v3023 = vpop.f32.mrb[0].mxu0
        %v3024 = vadd.f32 %v2704, %v3023
        %v3025 = vpop.f32.mrb[0].mxu0
        %v3026 = vadd.f32 %v2700, %v3025
        %v3027 = vpop.f32.mrb[0].mxu0
        %v3028 = vadd.f32 %v2704, %v3027
        %3029 = vmatprep.mubr.bf16.mxu0 %v2626
        %3030 = vmatmul.mubr.bf16.gmra.mrb[0].mxu0 %v2625
        %v3031 = vpop.f32.mrb[0].mxu0
        %v3032 = vadd.f32 %v2700, %v3031
        %v3033 = vpop.f32.mrb[0].mxu0
        %v3034 = vadd.f32 %v2704, %v3033
        %v3035 = vpop.f32.mrb[0].mxu0
        %v3036 = vadd.f32 %v2700, %v3035
        %v3037 = vpop.f32.mrb[0].mxu0
        %v3038 = vadd.f32 %v2704, %v3037
        %3039 = vmatprep.mubr.bf16.mxu0 %v2628
        %3040 = vmatmul.mubr.bf16.gmra.mrb[0].mxu0 %v2627
        %v3041 = vpop.f32.mrb[0].mxu0
        %v3042 = vadd.f32 %v2700, %v3041
        %v3043 = vpop.f32.mrb[0].mxu0
        %v3044 = vadd.f32 %v2704, %v3043
        %v3045 = vpop.f32.mrb[0].mxu0
        %v3046 = vadd.f32 %v2700, %v3045
        %v3047 = vpop.f32.mrb[0].mxu0
        %v3048 = vadd.f32 %v2704, %v3047
        %3049 = vmatprep.mubr.bf16.mxu0 %v2630
        %3050 = vmatmul.mubr.bf16.gmra.mrb[0].mxu0 %v2629
        %v3051 = vpop.f32.mrb[0].mxu0
        %v3052 = vadd.f32 %v2700, %v3051
        %v3053 = vpop.f32.mrb[0].mxu0
        %v3054 = vadd.f32 %v2704, %v3053
        %v3055 = vpop.f32.mrb[0].mxu0
        %v3056 = vadd.f32 %v2700, %v3055
        %v3057 = vpop.f32.mrb[0].mxu0
        %v3058 = vadd.f32 %v2704, %v3057
        %3059 = vmatprep.mubr.bf16.mxu0 %v2632
        %3060 = vmatmul.mubr.bf16.gmra.mrb[0].mxu0 %v2631
        %v3061 = vpop.f32.mrb[0].mxu0
        %v3062 = vadd.f32 %v2700, %v3061
        %v3063 = vpop.f32.mrb[0].mxu0
        %v3064 = vadd.f32 %v2704, %v3063
        %v3065 = vpop.f32.mrb[0].mxu0
        %v3066 = vadd.f32 %v2700, %v3065
        %v3067 = vpop.f32.mrb[0].mxu0
        %v3068 = vadd.f32 %v2704, %v3067
        %3069 = vmatprep.mubr.bf16.mxu0 %v2634
        %3070 = vmatmul.mubr.bf16.gmra.mrb[0].mxu0 %v2633
        %v3071 = vpop.f32.mrb[0].mxu0
        %v3072 = vadd.f32 %v2700, %v3071
        %v3073 = vpop.f32.mrb[0].mxu0
        %v3074 = vadd.f32 %v2704, %v3073
        %v3075 = vpop.f32.mrb[0].mxu0
        %v3076 = vadd.f32 %v2700, %v3075
        %v3077 = vpop.f32.mrb[0].mxu0
        %v3078 = vadd.f32 %v2704, %v3077
        %3079 = vmatprep.mubr.bf16.mxu0 %v2636
        %3080 = vmatmul.mubr.bf16.gmra.mrb[0].mxu0 %v2635
        %v3081 = vpop.f32.mrb[0].mxu0
        %v3082 = vadd.f32 %v2700, %v3081
        %v3083 = vpop.f32.mrb[0].mxu0
        %v3084 = vadd.f32 %v2704, %v3083
        %v3085 = vpop.f32.mrb[0].mxu0
        %v3086 = vadd.f32 %v2700, %v3085
        %v3087 = vpop.f32.mrb[0].mxu0
        %v3088 = vadd.f32 %v2704, %v3087
        %3089 = vmatprep.mubr.bf16.mxu0 %v2638
        %3090 = vmatmul.mubr.bf16.gmra.mrb[0].mxu0 %v2637
        %v3091 = vpop.f32.mrb[0].mxu0
        %v3092 = vadd.f32 %v2700, %v3091
        %v3093 = vpop.f32.mrb[0].mxu0
        %v3094 = vadd.f32 %v2704, %v3093
        %v3095 = vpop.f32.mrb[0].mxu0
        %v3096 = vadd.f32 %v2700, %v3095
        %v3097 = vpop.f32.mrb[0].mxu0
        %v3098 = vadd.f32 %v2704, %v3097
        %3099 = vmatprep.mubr.bf16.mxu0 %v2640
        %3100 = vmatmul.mubr.bf16.gmra.mrb[0].mxu0 %v2639
        %v3101 = vpop.f32.mrb[0].mxu0
        %v3102 = vadd.f32 %v2700, %v3101
        %v3103 = vpop.f32.mrb[0].mxu0
        %v3104 = vadd.f32 %v2704, %v3103
        %v3105 = vpop.f32.mrb[0].mxu0
        %v3106 = vadd.f32 %v2700, %v3105
        %v3107 = vpop.f32.mrb[0].mxu0
        %v3108 = vadd.f32 %v2704, %v3107
        %3109 = vmatprep.mubr.bf16.mxu0 %v2642
        %3110 = vmatmul.mubr.bf16.gmra.mrb[0].mxu0 %v2641
        %v3111 = vpop.f32.mrb[0].mxu0
        %v3112 = vadd.f32 %v2700, %v3111
        %v3113 = vpop.f32.mrb[0].mxu0
        %v3114 = vadd.f32 %v2704, %v3113
        %v3115 = vpop.f32.mrb[0].mxu0
        %v3116 = vadd.f32 %v2700, %v3115
        %v3117 = vpop.f32.mrb[0].mxu0
        %v3118 = vadd.f32 %v2704, %v3117
        %3119 = vmatprep.mubr.bf16.mxu0 %v2644
        %3120 = vmatmul.mubr.bf16.gmra.mrb[0].mxu0 %v2643
        %v3121 = vpop.f32.mrb[0].mxu0
        %v3122 = vadd.f32 %v2700, %v3121
        %v3123 = vpop.f32.mrb[0].mxu0
        %v3124 = vadd.f32 %v2704, %v3123
        %v3125 = vpop.f32.mrb[0].mxu0
        %v3126 = vadd.f32 %v2700, %v3125
        %v3127 = vpop.f32.mrb[0].mxu0
        %v3128 = vadd.f32 %v2704, %v3127
        %3129 = vmatprep.mubr.bf16.mxu0 %v2646
        %3130 = vmatmul.mubr.bf16.gmra.mrb[0].mxu0 %v2645
        %v3131 = vpop.f32.mrb[0].mxu0
        %v3132 = vadd.f32 %v2700, %v3131
        %v3133 = vpop.f32.mrb[0].mxu0
        %v3134 = vadd.f32 %v2704, %v3133
        %v3135 = vpop.f32.mrb[0].mxu0
        %v3136 = vadd.f32 %v2700, %v3135
        %v3137 = vpop.f32.mrb[0].mxu0
        %v3138 = vadd.f32 %v2704, %v3137
        %3139 = vmatprep.mubr.bf16.mxu0 %v2648
        %3140 = vmatmul.mubr.bf16.gmra.mrb[0].mxu0 %v2647
        %v3141 = vpop.f32.mrb[0].mxu0
        %v3142 = vadd.f32 %v2700, %v3141
        %v3143 = vpop.f32.mrb[0].mxu0
        %v3144 = vadd.f32 %v2704, %v3143
        %v3145 = vpop.f32.mrb[0].mxu0
        %v3146 = vadd.f32 %v2700, %v3145
        %v3147 = vpop.f32.mrb[0].mxu0
        %v3148 = vadd.f32 %v2704, %v3147
        %3149 = vmatprep.mubr.bf16.mxu0 %v2650
        %3150 = vmatmul.mubr.bf16.gmra.mrb[0].mxu0 %v2649
        %v3151 = vpop.f32.mrb[0].mxu0
        %v3152 = vadd.f32 %v2700, %v3151
        %v3153 = vpop.f32.mrb[0].mxu0
        %v3154 = vadd.f32 %v2704, %v3153
        %v3155 = vpop.f32.mrb[0].mxu0
        %v3156 = vadd.f32 %v2700, %v3155
        %v3157 = vpop.f32.mrb[0].mxu0
        %v3158 = vadd.f32 %v2704, %v3157
        %3159 = vmatprep.mubr.bf16.mxu0 %v2652
        %3160 = vmatmul.mubr.bf16.gmra.mrb[0].mxu0 %v2651
        %v3161 = vpop.f32.mrb[0].mxu0
        %v3162 = vadd.f32 %v2700, %v3161
        %v3163 = vpop.f32.mrb[0].mxu0
        %v3164 = vadd.f32 %v2704, %v3163
        %v3165 = vpop.f32.mrb[0].mxu0
        %v3166 = vadd.f32 %v2700, %v3165
        %v3167 = vpop.f32.mrb[0].mxu0
        %v3168 = vadd.f32 %v2704, %v3167
        %3169 = vmatprep.mubr.bf16.mxu0 %v2654
        %3170 = vmatmul.mubr.bf16.gmra.mrb[0].mxu0 %v2653
        %v3171 = vpop.f32.mrb[0].mxu0
        %v3172 = vadd.f32 %v2700, %v3171
        %v3173 = vpop.f32.mrb[0].mxu0
        %v3174 = vadd.f32 %v2704, %v3173
        %v3175 = vpop.f32.mrb[0].mxu0
        %v3176 = vadd.f32 %v2700, %v3175
        %v3177 = vpop.f32.mrb[0].mxu0
        %v3178 = vadd.f32 %v2704, %v3177
        %3179 = vmatprep.mubr.bf16.mxu0 %v2656
        %3180 = vmatmul.mubr.bf16.gmra.mrb[0].mxu0 %v2655
        %v3181 = vpop.f32.mrb[0].mxu0
        %v3182 = vadd.f32 %v2700, %v3181
        %v3183 = vpop.f32.mrb[0].mxu0
        %v3184 = vadd.f32 %v2704, %v3183
        %v3185 = vpop.f32.mrb[0].mxu0
        %v3186 = vadd.f32 %v2700, %v3185
        %v3187 = vpop.f32.mrb[0].mxu0
        %v3188 = vadd.f32 %v2704, %v3187
        %3189 = vmatprep.mubr.bf16.mxu0 %v2658
        %3190 = vmatmul.mubr.bf16.gmra.mrb[0].mxu0 %v2657
        %v3191 = vpop.f32.mrb[0].mxu0
        %v3192 = vadd.f32 %v2700, %v3191
        %v3193 = vpop.f32.mrb[0].mxu0
        %v3194 = vadd.f32 %v2704, %v3193
        %v3195 = vpop.f32.mrb[0].mxu0
        %v3196 = vadd.f32 %v2700, %v3195
        %v3197 = vpop.f32.mrb[0].mxu0
        %v3198 = vadd.f32 %v2704, %v3197
        %3199 = vmatprep.mubr.bf16.mxu0 %v2660
        %3200 = vmatmul.mubr.bf16.gmra.mrb[0].mxu0 %v2659
        %v3201 = vpop.f32.mrb[0].mxu0
        %v3202 = vadd.f32 %v2700, %v3201
        %v3203 = vpop.f32.mrb[0].mxu0
        %v3204 = vadd.f32 %v2704, %v3203
        %v3205 = vpop.f32.mrb[0].mxu0
        %v3206 = vadd.f32 %v2700, %v3205
        %v3207 = vpop.f32.mrb[0].mxu0
        %v3208 = vadd.f32 %v2704, %v3207
        %3209 = vmatprep.mubr.bf16.mxu0 %v2662
        %3210 = vmatmul.mubr.bf16.gmra.mrb[0].mxu0 %v2661
        %v3211 = vpop.f32.mrb[0].mxu0
        %v3212 = vadd.f32 %v2700, %v3211
        %v3213 = vpop.f32.mrb[0].mxu0
        %v3214 = vadd.f32 %v2704, %v3213
        %v3215 = vpop.f32.mrb[0].mxu0
        %v3216 = vpop.f32.mrb[0].mxu0
        %3217 = vdwg.mxu0
        %v3218 = vmax.f32 %v2902, 0.0
        %v3219 = vmax.f32 %v2904, 0.0
        %v3220 = vmax.f32 %v2906, 0.0
        %v3221 = vmax.f32 %v2908, 0.0
        %v3222 = vmax.f32 %v2912, 0.0
        %v3223 = vmax.f32 %v2914, 0.0
        %v3224 = vmax.f32 %v2916, 0.0
        %v3225 = vmax.f32 %v2918, 0.0
        %v3226 = vmax.f32 %v2922, 0.0
        %v3227 = vmax.f32 %v2924, 0.0
        %v3228 = vmax.f32 %v2926, 0.0
        %v3229 = vmax.f32 %v2928, 0.0
        %v3230 = vmax.f32 %v2932, 0.0
        %v3231 = vmax.f32 %v2934, 0.0
        %v3232 = vmax.f32 %v2936, 0.0
        %v3233 = vmax.f32 %v2938, 0.0
        %v3234 = vmax.f32 %v2942, 0.0
        %v3235 = vmax.f32 %v2944, 0.0
        %v3236 = vmax.f32 %v2946, 0.0
        %v3237 = vmax.f32 %v2948, 0.0
        %v3238 = vmax.f32 %v2952, 0.0
        %v3239 = vmax.f32 %v2954, 0.0
        %v3240 = vmax.f32 %v2956, 0.0
        %v3241 = vmax.f32 %v2958, 0.0
        %v3242 = vmax.f32 %v2962, 0.0
        %v3243 = vmax.f32 %v2964, 0.0
        %v3244 = vmax.f32 %v2966, 0.0
        %v3245 = vmax.f32 %v2968, 0.0
        %v3246 = vmax.f32 %v2972, 0.0
        %v3247 = vmax.f32 %v2974, 0.0
        %v3248 = vmax.f32 %v2976, 0.0
        %v3249 = vmax.f32 %v2978, 0.0
        %v3250 = vmax.f32 %v2982, 0.0
        %v3251 = vmax.f32 %v2984, 0.0
        %v3252 = vmax.f32 %v2986, 0.0
        %v3253 = vmax.f32 %v2988, 0.0
        %v3254 = vmax.f32 %v2992, 0.0
        %v3255 = vmax.f32 %v2994, 0.0
        %v3256 = vmax.f32 %v2996, 0.0
        %v3257 = vmax.f32 %v2998, 0.0
        %v3258 = vmax.f32 %v3002, 0.0
        %v3259 = vmax.f32 %v3004, 0.0
        %v3260 = vmax.f32 %v3006, 0.0
        %v3261 = vmax.f32 %v3008, 0.0
        %v3262 = vmax.f32 %v3012, 0.0
        %v3263 = vmax.f32 %v3014, 0.0
        %v3264 = vmax.f32 %v3016, 0.0
        %v3265 = vmax.f32 %v3018, 0.0
        %v3266 = vmax.f32 %v3022, 0.0
        %v3267 = vmax.f32 %v3024, 0.0
        %v3268 = vmax.f32 %v3026, 0.0
        %v3269 = vmax.f32 %v3028, 0.0
        %v3270 = vmax.f32 %v3032, 0.0
        %v3271 = vmax.f32 %v3034, 0.0
        %v3272 = vmax.f32 %v3036, 0.0
        %v3273 = vmax.f32 %v3038, 0.0
        %v3274 = vmax.f32 %v3042, 0.0
        %v3275 = vmax.f32 %v3044, 0.0
        %v3276 = vmax.f32 %v3046, 0.0
        %v3277 = vmax.f32 %v3048, 0.0
        %v3278 = vmax.f32 %v3052, 0.0
        %v3279 = vmax.f32 %v3054, 0.0
        %v3280 = vmax.f32 %v3056, 0.0
        %v3281 = vmax.f32 %v3058, 0.0
        %v3282 = vmax.f32 %v3062, 0.0
        %v3283 = vmax.f32 %v3064, 0.0
        %v3284 = vmax.f32 %v3066, 0.0
        %v3285 = vmax.f32 %v3068, 0.0
        %v3286 = vmax.f32 %v3072, 0.0
        %v3287 = vmax.f32 %v3074, 0.0
        %v3288 = vmax.f32 %v3076, 0.0
        %v3289 = vmax.f32 %v3078, 0.0
        %v3290 = vmax.f32 %v3082, 0.0
        %v3291 = vmax.f32 %v3084, 0.0
        %v3292 = vmax.f32 %v3086, 0.0
        %v3293 = vmax.f32 %v3088, 0.0
        %v3294 = vmax.f32 %v3092, 0.0
        %v3295 = vmax.f32 %v3094, 0.0
        %v3296 = vmax.f32 %v3096, 0.0
        %v3297 = vmax.f32 %v3098, 0.0
        %v3298 = vmax.f32 %v3102, 0.0
        %v3299 = vmax.f32 %v3104, 0.0
        %v3300 = vmax.f32 %v3106, 0.0
        %v3301 = vmax.f32 %v3108, 0.0
        %v3302 = vmax.f32 %v3112, 0.0
        %v3303 = vmax.f32 %v3114, 0.0
        %v3304 = vmax.f32 %v3116, 0.0
        %v3305 = vmax.f32 %v3118, 0.0
        %v3306 = vmax.f32 %v3122, 0.0
        %v3307 = vmax.f32 %v3124, 0.0
        %v3308 = vmax.f32 %v3126, 0.0
        %v3309 = vmax.f32 %v3128, 0.0
        %v3310 = vmax.f32 %v3132, 0.0
        %v3311 = vmax.f32 %v3134, 0.0
        %v3312 = vmax.f32 %v3136, 0.0
        %v3313 = vmax.f32 %v3138, 0.0
        %v3314 = vmax.f32 %v3142, 0.0
        %v3315 = vmax.f32 %v3144, 0.0
        %v3316 = vmax.f32 %v3146, 0.0
        %v3317 = vmax.f32 %v3148, 0.0
        %v3318 = vmax.f32 %v3152, 0.0
        %v3319 = vmax.f32 %v3154, 0.0
        %v3320 = vmax.f32 %v3156, 0.0
        %v3321 = vmax.f32 %v3158, 0.0
        %v3322 = vmax.f32 %v3162, 0.0
        %v3323 = vmax.f32 %v3164, 0.0
        %v3324 = vmax.f32 %v3166, 0.0
        %v3325 = vmax.f32 %v3168, 0.0
        %v3326 = vmax.f32 %v3172, 0.0
        %v3327 = vmax.f32 %v3174, 0.0
        %v3328 = vmax.f32 %v3176, 0.0
        %v3329 = vmax.f32 %v3178, 0.0
        %v3330 = vmax.f32 %v3182, 0.0
        %v3331 = vmax.f32 %v3184, 0.0
        %v3332 = vmax.f32 %v3186, 0.0
        %v3333 = vmax.f32 %v3188, 0.0
        %v3334 = vmax.f32 %v3192, 0.0
        %v3335 = vmax.f32 %v3194, 0.0
        %v3336 = vmax.f32 %v3196, 0.0
        %v3337 = vmax.f32 %v3198, 0.0
        %v3338 = vmax.f32 %v3202, 0.0
        %v3339 = vmax.f32 %v3204, 0.0
        %v3340 = vmax.f32 %v3206, 0.0
        %v3341 = vmax.f32 %v3208, 0.0
        %v3342 = vmax.f32 %v3212, 0.0
        %v3343 = vmax.f32 %v3214, 0.0
        %v3344 = vpack.c.bf16 %v3220, %v3218
        %v3345 = vpack.c.bf16 %v3221, %v3219
        %v3346 = vpack.c.bf16 %v3224, %v3222
        %v3347 = vpack.c.bf16 %v3225, %v3223
        %v3348 = vpack.c.bf16 %v3228, %v3226
        %v3349 = vpack.c.bf16 %v3229, %v3227
        %v3350 = vpack.c.bf16 %v3232, %v3230
        %v3351 = vpack.c.bf16 %v3233, %v3231
        %v3352 = vpack.c.bf16 %v3236, %v3234
        %v3353 = vpack.c.bf16 %v3237, %v3235
        %v3354 = vpack.c.bf16 %v3240, %v3238
        %v3355 = vpack.c.bf16 %v3241, %v3239
        %v3356 = vpack.c.bf16 %v3244, %v3242
        %v3357 = vpack.c.bf16 %v3245, %v3243
        %v3358 = vpack.c.bf16 %v3248, %v3246
        %v3359 = vpack.c.bf16 %v3249, %v3247
        %v3360 = vpack.c.bf16 %v3252, %v3250
        %v3361 = vpack.c.bf16 %v3253, %v3251
        %v3362 = vpack.c.bf16 %v3256, %v3254
        %v3363 = vpack.c.bf16 %v3257, %v3255
        %v3364 = vpack.c.bf16 %v3260, %v3258
        %v3365 = vpack.c.bf16 %v3261, %v3259
        %v3366 = vpack.c.bf16 %v3264, %v3262
        %v3367 = vpack.c.bf16 %v3265, %v3263
        %v3368 = vpack.c.bf16 %v3268, %v3266
        %v3369 = vpack.c.bf16 %v3269, %v3267
        %v3370 = vpack.c.bf16 %v3272, %v3270
        %v3371 = vpack.c.bf16 %v3273, %v3271
        %v3372 = vpack.c.bf16 %v3276, %v3274
        %v3373 = vpack.c.bf16 %v3277, %v3275
        %v3374 = vpack.c.bf16 %v3280, %v3278
        %v3375 = vpack.c.bf16 %v3281, %v3279
        %v3376 = vpack.c.bf16 %v3284, %v3282
        %v3377 = vpack.c.bf16 %v3285, %v3283
        %v3378 = vpack.c.bf16 %v3288, %v3286
        %v3379 = vpack.c.bf16 %v3289, %v3287
        %v3380 = vpack.c.bf16 %v3292, %v3290
        %v3381 = vpack.c.bf16 %v3293, %v3291
        %v3382 = vpack.c.bf16 %v3296, %v3294
        %v3383 = vpack.c.bf16 %v3297, %v3295
        %v3384 = vpack.c.bf16 %v3300, %v3298
        %v3385 = vpack.c.bf16 %v3301, %v3299
        %v3386 = vpack.c.bf16 %v3304, %v3302
        %v3387 = vpack.c.bf16 %v3305, %v3303
        %v3388 = vpack.c.bf16 %v3308, %v3306
        %v3389 = vpack.c.bf16 %v3309, %v3307
        %v3390 = vpack.c.bf16 %v3312, %v3310
        %v3391 = vpack.c.bf16 %v3313, %v3311
        %v3392 = vpack.c.bf16 %v3316, %v3314
        %v3393 = vpack.c.bf16 %v3317, %v3315
        %v3394 = vpack.c.bf16 %v3320, %v3318
        %v3395 = vpack.c.bf16 %v3321, %v3319
        %v3396 = vpack.c.bf16 %v3324, %v3322
        %v3397 = vpack.c.bf16 %v3325, %v3323
        %v3398 = vpack.c.bf16 %v3328, %v3326
        %v3399 = vpack.c.bf16 %v3329, %v3327
        %v3400 = vpack.c.bf16 %v3332, %v3330
        %v3401 = vpack.c.bf16 %v3333, %v3331
        %v3402 = vpack.c.bf16 %v3336, %v3334
        %v3403 = vpack.c.bf16 %v3337, %v3335
        %v3404 = vpack.c.bf16 %v3340, %v3338
        %v3405 = vpack.c.bf16 %v3341, %v3339
        %v3406 = vpack.c.bf16 %v3342, %v3342
        %v3407 = vpack.c.bf16 %v3343, %v3343
        %v3408 = vld [vmem:[%s9] sm:$0x3]
        %v3409 = vunpack.c.l.bf16 %v3408
        %v3410 = vunpack.c.l.bf16 %v3344
        %v3411 = vunpack.c.l.bf16 %v3345
        %v3412 = vunpack.c.h.bf16 %v3344
        %v3413 = vunpack.c.h.bf16 %v3345
        %v3414 = vunpack.c.l.bf16 %v3346
        %v3415 = vunpack.c.l.bf16 %v3347
        %v3416 = vunpack.c.h.bf16 %v3346
        %v3417 = vunpack.c.h.bf16 %v3347
        %v3418 = vunpack.c.l.bf16 %v3348
        %v3419 = vunpack.c.l.bf16 %v3349
        %v3420 = vunpack.c.h.bf16 %v3348
        %v3421 = vunpack.c.h.bf16 %v3349
        %v3422 = vunpack.c.l.bf16 %v3350
        %v3423 = vunpack.c.l.bf16 %v3351
        %v3424 = vunpack.c.h.bf16 %v3350
        %v3425 = vunpack.c.h.bf16 %v3351
        %v3426 = vunpack.c.l.bf16 %v3352
        %v3427 = vunpack.c.l.bf16 %v3353
        %v3428 = vunpack.c.h.bf16 %v3352
        %v3429 = vunpack.c.h.bf16 %v3353
        %v3430 = vunpack.c.l.bf16 %v3354
        %v3431 = vunpack.c.l.bf16 %v3355
        %v3432 = vunpack.c.h.bf16 %v3354
        %v3433 = vunpack.c.h.bf16 %v3355
        %v3434 = vunpack.c.l.bf16 %v3356
        %v3435 = vunpack.c.l.bf16 %v3357
        %v3436 = vunpack.c.h.bf16 %v3356
        %v3437 = vunpack.c.h.bf16 %v3357
        %v3438 = vunpack.c.l.bf16 %v3358
        %v3439 = vunpack.c.l.bf16 %v3359
        %v3440 = vunpack.c.h.bf16 %v3358
        %v3441 = vunpack.c.h.bf16 %v3359
        %v3442 = vunpack.c.l.bf16 %v3360
        %v3443 = vunpack.c.l.bf16 %v3361
        %v3444 = vunpack.c.h.bf16 %v3360
        %v3445 = vunpack.c.h.bf16 %v3361
        %v3446 = vunpack.c.l.bf16 %v3362
        %v3447 = vunpack.c.l.bf16 %v3363
        %v3448 = vunpack.c.h.bf16 %v3362
        %v3449 = vunpack.c.h.bf16 %v3363
        %v3450 = vunpack.c.l.bf16 %v3364
        %v3451 = vunpack.c.l.bf16 %v3365
        %v3452 = vunpack.c.h.bf16 %v3364
        %v3453 = vunpack.c.h.bf16 %v3365
        %v3454 = vunpack.c.l.bf16 %v3366
        %v3455 = vunpack.c.l.bf16 %v3367
        %v3456 = vunpack.c.h.bf16 %v3366
        %v3457 = vunpack.c.h.bf16 %v3367
        %v3458 = vunpack.c.l.bf16 %v3368
        %v3459 = vunpack.c.l.bf16 %v3369
        %v3460 = vunpack.c.h.bf16 %v3368
        %v3461 = vunpack.c.h.bf16 %v3369
        %v3462 = vunpack.c.l.bf16 %v3370
        %v3463 = vunpack.c.l.bf16 %v3371
        %v3464 = vunpack.c.h.bf16 %v3370
        %v3465 = vunpack.c.h.bf16 %v3371
        %v3466 = vunpack.c.l.bf16 %v3372
        %v3467 = vunpack.c.l.bf16 %v3373
        %v3468 = vunpack.c.h.bf16 %v3372
        %v3469 = vunpack.c.h.bf16 %v3373
        %v3470 = vunpack.c.l.bf16 %v3374
        %v3471 = vunpack.c.l.bf16 %v3375
        %v3472 = vunpack.c.h.bf16 %v3374
        %v3473 = vunpack.c.h.bf16 %v3375
        %v3474 = vunpack.c.l.bf16 %v3376
        %v3475 = vunpack.c.l.bf16 %v3377
        %v3476 = vunpack.c.h.bf16 %v3376
        %v3477 = vunpack.c.h.bf16 %v3377
        %v3478 = vunpack.c.l.bf16 %v3378
        %v3479 = vunpack.c.l.bf16 %v3379
        %v3480 = vunpack.c.h.bf16 %v3378
        %v3481 = vunpack.c.h.bf16 %v3379
        %v3482 = vunpack.c.l.bf16 %v3380
        %v3483 = vunpack.c.l.bf16 %v3381
        %v3484 = vunpack.c.h.bf16 %v3380
        %v3485 = vunpack.c.h.bf16 %v3381
        %v3486 = vunpack.c.l.bf16 %v3382
        %v3487 = vunpack.c.l.bf16 %v3383
        %v3488 = vunpack.c.h.bf16 %v3382
        %v3489 = vunpack.c.h.bf16 %v3383
        %v3490 = vunpack.c.l.bf16 %v3384
        %v3491 = vunpack.c.l.bf16 %v3385
        %v3492 = vunpack.c.h.bf16 %v3384
        %v3493 = vunpack.c.h.bf16 %v3385
        %v3494 = vunpack.c.l.bf16 %v3386
        %v3495 = vunpack.c.l.bf16 %v3387
        %v3496 = vunpack.c.h.bf16 %v3386
        %v3497 = vunpack.c.h.bf16 %v3387
        %v3498 = vunpack.c.l.bf16 %v3388
        %v3499 = vunpack.c.l.bf16 %v3389
        %v3500 = vunpack.c.h.bf16 %v3388
        %v3501 = vunpack.c.h.bf16 %v3389
        %v3502 = vunpack.c.l.bf16 %v3390
        %v3503 = vunpack.c.l.bf16 %v3391
        %v3504 = vunpack.c.h.bf16 %v3390
        %v3505 = vunpack.c.h.bf16 %v3391
        %v3506 = vunpack.c.l.bf16 %v3392
        %v3507 = vunpack.c.l.bf16 %v3393
        %v3508 = vunpack.c.h.bf16 %v3392
        %v3509 = vunpack.c.h.bf16 %v3393
        %v3510 = vunpack.c.l.bf16 %v3394
        %v3511 = vunpack.c.l.bf16 %v3395
        %v3512 = vunpack.c.h.bf16 %v3394
        %v3513 = vunpack.c.h.bf16 %v3395
        %v3514 = vunpack.c.l.bf16 %v3396
        %v3515 = vunpack.c.l.bf16 %v3397
        %v3516 = vunpack.c.h.bf16 %v3396
        %v3517 = vunpack.c.h.bf16 %v3397
        %v3518 = vunpack.c.l.bf16 %v3398
        %v3519 = vunpack.c.l.bf16 %v3399
        %v3520 = vunpack.c.h.bf16 %v3398
        %v3521 = vunpack.c.h.bf16 %v3399
        %v3522 = vunpack.c.l.bf16 %v3400
        %v3523 = vunpack.c.l.bf16 %v3401
        %v3524 = vunpack.c.h.bf16 %v3400
        %v3525 = vunpack.c.h.bf16 %v3401
        %v3526 = vunpack.c.l.bf16 %v3402
        %v3527 = vunpack.c.l.bf16 %v3403
        %v3528 = vunpack.c.h.bf16 %v3402
        %v3529 = vunpack.c.h.bf16 %v3403
        %v3530 = vunpack.c.l.bf16 %v3404
        %v3531 = vunpack.c.l.bf16 %v3405
        %v3532 = vunpack.c.h.bf16 %v3404
        %v3533 = vunpack.c.h.bf16 %v3405
        %v3534 = vunpack.c.l.bf16 %v3406
        %v3535 = vunpack.c.l.bf16 %v3407
        %v3537 = vlaneseq
        %v3538 = vshrl.u32 %v3537, 7
        %v3539 = vsub.s32 0, %v3538
        %v3540 = vrot.slane %v3409, %v3539
        %v3541 = vlaneseq
        %v3542 = vshrl.u32 %v3541, 7
        %v3543 = vsub.s32 2, %v3542
        %v3544 = vrot.slane %v3409, %v3543
        %v3547 = vlaneseq
        %v3548 = vshrl.u32 %v3547, 7
        %v3549 = vsub.s32 0, %v3548
        %v3550 = vrot.slane %v3540, %v3549
        %v3551 = vlaneseq
        %v3552 = vshrl.u32 %v3551, 7
        %v3553 = vsub.s32 0, %v3552
        %v3554 = vrot.slane %v3544, %v3553
        %v3555 = vmul.f32 %v3410, %v3550
        %v3556 = vmul.f32 %v3411, %v3554
        %v3557 = vmul.f32 %v3412, %v3550
        %v3558 = vmul.f32 %v3413, %v3554
        %v3559 = vmul.f32 %v3414, %v3550
        %v3560 = vmul.f32 %v3415, %v3554
        %v3561 = vmul.f32 %v3416, %v3550
        %v3562 = vmul.f32 %v3417, %v3554
        %v3563 = vmul.f32 %v3418, %v3550
        %v3564 = vmul.f32 %v3419, %v3554
        %v3565 = vmul.f32 %v3420, %v3550
        %v3566 = vmul.f32 %v3421, %v3554
        %v3567 = vmul.f32 %v3422, %v3550
        %v3568 = vmul.f32 %v3423, %v3554
        %v3569 = vmul.f32 %v3424, %v3550
        %v3570 = vmul.f32 %v3425, %v3554
        %v3571 = vmul.f32 %v3426, %v3550
        %v3572 = vmul.f32 %v3427, %v3554
        %v3573 = vmul.f32 %v3428, %v3550
        %v3574 = vmul.f32 %v3429, %v3554
        %v3575 = vmul.f32 %v3430, %v3550
        %v3576 = vmul.f32 %v3431, %v3554
        %v3577 = vmul.f32 %v3432, %v3550
        %v3578 = vmul.f32 %v3433, %v3554
        %v3579 = vmul.f32 %v3434, %v3550
        %v3580 = vmul.f32 %v3435, %v3554
        %v3581 = vmul.f32 %v3436, %v3550
        %v3582 = vmul.f32 %v3437, %v3554
        %v3583 = vmul.f32 %v3438, %v3550
        %v3584 = vmul.f32 %v3439, %v3554
        %v3585 = vmul.f32 %v3440, %v3550
        %v3586 = vmul.f32 %v3441, %v3554
        %v3587 = vmul.f32 %v3442, %v3550
        %v3588 = vmul.f32 %v3443, %v3554
        %v3589 = vmul.f32 %v3444, %v3550
        %v3590 = vmul.f32 %v3445, %v3554
        %v3591 = vmul.f32 %v3446, %v3550
        %v3592 = vmul.f32 %v3447, %v3554
        %v3593 = vmul.f32 %v3448, %v3550
        %v3594 = vmul.f32 %v3449, %v3554
        %v3595 = vmul.f32 %v3450, %v3550
        %v3596 = vmul.f32 %v3451, %v3554
        %v3597 = vmul.f32 %v3452, %v3550
        %v3598 = vmul.f32 %v3453, %v3554
        %v3599 = vmul.f32 %v3454, %v3550
        %v3600 = vmul.f32 %v3455, %v3554
        %v3601 = vmul.f32 %v3456, %v3550
        %v3602 = vmul.f32 %v3457, %v3554
        %v3603 = vmul.f32 %v3458, %v3550
        %v3604 = vmul.f32 %v3459, %v3554
        %v3605 = vmul.f32 %v3460, %v3550
        %v3606 = vmul.f32 %v3461, %v3554
        %v3607 = vmul.f32 %v3462, %v3550
        %v3608 = vmul.f32 %v3463, %v3554
        %v3609 = vmul.f32 %v3464, %v3550
        %v3610 = vmul.f32 %v3465, %v3554
        %v3611 = vmul.f32 %v3466, %v3550
        %v3612 = vmul.f32 %v3467, %v3554
        %v3613 = vmul.f32 %v3468, %v3550
        %v3614 = vmul.f32 %v3469, %v3554
        %v3615 = vmul.f32 %v3470, %v3550
        %v3616 = vmul.f32 %v3471, %v3554
        %v3617 = vmul.f32 %v3472, %v3550
        %v3618 = vmul.f32 %v3473, %v3554
        %v3619 = vmul.f32 %v3474, %v3550
        %v3620 = vmul.f32 %v3475, %v3554
        %v3621 = vmul.f32 %v3476, %v3550
        %v3622 = vmul.f32 %v3477, %v3554
        %v3623 = vmul.f32 %v3478, %v3550
        %v3624 = vmul.f32 %v3479, %v3554
        %v3625 = vmul.f32 %v3480, %v3550
        %v3626 = vmul.f32 %v3481, %v3554
        %v3627 = vmul.f32 %v3482, %v3550
        %v3628 = vmul.f32 %v3483, %v3554
        %v3629 = vmul.f32 %v3484, %v3550
        %v3630 = vmul.f32 %v3485, %v3554
        %v3631 = vmul.f32 %v3486, %v3550
        %v3632 = vmul.f32 %v3487, %v3554
        %v3633 = vmul.f32 %v3488, %v3550
        %v3634 = vmul.f32 %v3489, %v3554
        %v3635 = vmul.f32 %v3490, %v3550
        %v3636 = vmul.f32 %v3491, %v3554
        %v3637 = vmul.f32 %v3492, %v3550
        %v3638 = vmul.f32 %v3493, %v3554
        %v3639 = vmul.f32 %v3494, %v3550
        %v3640 = vmul.f32 %v3495, %v3554
        %v3641 = vmul.f32 %v3496, %v3550
        %v3642 = vmul.f32 %v3497, %v3554
        %v3643 = vmul.f32 %v3498, %v3550
        %v3644 = vmul.f32 %v3499, %v3554
        %v3645 = vmul.f32 %v3500, %v3550
        %v3646 = vmul.f32 %v3501, %v3554
        %v3647 = vmul.f32 %v3502, %v3550
        %v3648 = vmul.f32 %v3503, %v3554
        %v3649 = vmul.f32 %v3504, %v3550
        %v3650 = vmul.f32 %v3505, %v3554
        %v3651 = vmul.f32 %v3506, %v3550
        %v3652 = vmul.f32 %v3507, %v3554
        %v3653 = vmul.f32 %v3508, %v3550
        %v3654 = vmul.f32 %v3509, %v3554
        %v3655 = vmul.f32 %v3510, %v3550
        %v3656 = vmul.f32 %v3511, %v3554
        %v3657 = vmul.f32 %v3512, %v3550
        %v3658 = vmul.f32 %v3513, %v3554
        %v3659 = vmul.f32 %v3514, %v3550
        %v3660 = vmul.f32 %v3515, %v3554
        %v3661 = vmul.f32 %v3516, %v3550
        %v3662 = vmul.f32 %v3517, %v3554
        %v3663 = vmul.f32 %v3518, %v3550
        %v3664 = vmul.f32 %v3519, %v3554
        %v3665 = vmul.f32 %v3520, %v3550
        %v3666 = vmul.f32 %v3521, %v3554
        %v3667 = vmul.f32 %v3522, %v3550
        %v3668 = vmul.f32 %v3523, %v3554
        %v3669 = vmul.f32 %v3524, %v3550
        %v3670 = vmul.f32 %v3525, %v3554
        %v3671 = vmul.f32 %v3526, %v3550
        %v3672 = vmul.f32 %v3527, %v3554
        %v3673 = vmul.f32 %v3528, %v3550
        %v3674 = vmul.f32 %v3529, %v3554
        %v3675 = vmul.f32 %v3530, %v3550
        %v3676 = vmul.f32 %v3531, %v3554
        %v3677 = vmul.f32 %v3532, %v3550
        %v3678 = vmul.f32 %v3533, %v3554
        %v3679 = vmul.f32 %v3534, %v3550
        %v3680 = vmul.f32 %v3535, %v3554
        %v3681 = vadd.f32 %v3555, %v3556
        %3682 = vadd.xlane.f32.xlu0 %v3681
        %v3683 = vpop.xlane.xlu0 %3682
        %v3684 = vadd.f32 %v3557, %v3558
        %3685 = vadd.xlane.f32.xlu0 %v3684
        %v3686 = vpop.xlane.xlu0 %3685
        %v3687 = vadd.f32 %v3559, %v3560
        %3688 = vadd.xlane.f32.xlu0 %v3687
        %v3689 = vpop.xlane.xlu0 %3688
        %v3690 = vadd.f32 %v3561, %v3562
        %3691 = vadd.xlane.f32.xlu0 %v3690
        %v3692 = vpop.xlane.xlu0 %3691
        %v3693 = vadd.f32 %v3563, %v3564
        %3694 = vadd.xlane.f32.xlu0 %v3693
        %v3695 = vpop.xlane.xlu0 %3694
        %v3696 = vadd.f32 %v3565, %v3566
        %3697 = vadd.xlane.f32.xlu0 %v3696
        %v3698 = vpop.xlane.xlu0 %3697
        %v3699 = vadd.f32 %v3567, %v3568
        %3700 = vadd.xlane.f32.xlu0 %v3699
        %v3701 = vpop.xlane.xlu0 %3700
        %v3702 = vadd.f32 %v3569, %v3570
        %3703 = vadd.xlane.f32.xlu0 %v3702
        %v3704 = vpop.xlane.xlu0 %3703
        %v3705 = vadd.f32 %v3571, %v3572
        %3706 = vadd.xlane.f32.xlu0 %v3705
        %v3707 = vpop.xlane.xlu0 %3706
        %v3708 = vadd.f32 %v3573, %v3574
        %3709 = vadd.xlane.f32.xlu0 %v3708
        %v3710 = vpop.xlane.xlu0 %3709
        %v3711 = vadd.f32 %v3575, %v3576
        %3712 = vadd.xlane.f32.xlu0 %v3711
        %v3713 = vpop.xlane.xlu0 %3712
        %v3714 = vadd.f32 %v3577, %v3578
        %3715 = vadd.xlane.f32.xlu0 %v3714
        %v3716 = vpop.xlane.xlu0 %3715
        %v3717 = vadd.f32 %v3579, %v3580
        %3718 = vadd.xlane.f32.xlu0 %v3717
        %v3719 = vpop.xlane.xlu0 %3718
        %v3720 = vadd.f32 %v3581, %v3582
        %3721 = vadd.xlane.f32.xlu0 %v3720
        %v3722 = vpop.xlane.xlu0 %3721
        %v3723 = vadd.f32 %v3583, %v3584
        %3724 = vadd.xlane.f32.xlu0 %v3723
        %v3725 = vpop.xlane.xlu0 %3724
        %v3726 = vadd.f32 %v3585, %v3586
        %3727 = vadd.xlane.f32.xlu0 %v3726
        %v3728 = vpop.xlane.xlu0 %3727
        %v3729 = vadd.f32 %v3587, %v3588
        %3730 = vadd.xlane.f32.xlu0 %v3729
        %v3731 = vpop.xlane.xlu0 %3730
        %v3732 = vadd.f32 %v3589, %v3590
        %3733 = vadd.xlane.f32.xlu0 %v3732
        %v3734 = vpop.xlane.xlu0 %3733
        %v3735 = vadd.f32 %v3591, %v3592
        %3736 = vadd.xlane.f32.xlu0 %v3735
        %v3737 = vpop.xlane.xlu0 %3736
        %v3738 = vadd.f32 %v3593, %v3594
        %3739 = vadd.xlane.f32.xlu0 %v3738
        %v3740 = vpop.xlane.xlu0 %3739
        %v3741 = vadd.f32 %v3595, %v3596
        %3742 = vadd.xlane.f32.xlu0 %v3741
        %v3743 = vpop.xlane.xlu0 %3742
        %v3744 = vadd.f32 %v3597, %v3598
        %3745 = vadd.xlane.f32.xlu0 %v3744
        %v3746 = vpop.xlane.xlu0 %3745
        %v3747 = vadd.f32 %v3599, %v3600
        %3748 = vadd.xlane.f32.xlu0 %v3747
        %v3749 = vpop.xlane.xlu0 %3748
        %v3750 = vadd.f32 %v3601, %v3602
        %3751 = vadd.xlane.f32.xlu0 %v3750
        %v3752 = vpop.xlane.xlu0 %3751
        %v3753 = vadd.f32 %v3603, %v3604
        %3754 = vadd.xlane.f32.xlu0 %v3753
        %v3755 = vpop.xlane.xlu0 %3754
        %v3756 = vadd.f32 %v3605, %v3606
        %3757 = vadd.xlane.f32.xlu0 %v3756
        %v3758 = vpop.xlane.xlu0 %3757
        %v3759 = vadd.f32 %v3607, %v3608
        %3760 = vadd.xlane.f32.xlu0 %v3759
        %v3761 = vpop.xlane.xlu0 %3760
        %v3762 = vadd.f32 %v3609, %v3610
        %3763 = vadd.xlane.f32.xlu0 %v3762
        %v3764 = vpop.xlane.xlu0 %3763
        %v3765 = vadd.f32 %v3611, %v3612
        %3766 = vadd.xlane.f32.xlu0 %v3765
        %v3767 = vpop.xlane.xlu0 %3766
        %v3768 = vadd.f32 %v3613, %v3614
        %3769 = vadd.xlane.f32.xlu0 %v3768
        %v3770 = vpop.xlane.xlu0 %3769
        %v3771 = vadd.f32 %v3615, %v3616
        %3772 = vadd.xlane.f32.xlu0 %v3771
        %v3773 = vpop.xlane.xlu0 %3772
        %v3774 = vadd.f32 %v3617, %v3618
        %3775 = vadd.xlane.f32.xlu0 %v3774
        %v3776 = vpop.xlane.xlu0 %3775
        %v3777 = vadd.f32 %v3619, %v3620
        %3778 = vadd.xlane.f32.xlu0 %v3777
        %v3779 = vpop.xlane.xlu0 %3778
        %v3780 = vadd.f32 %v3621, %v3622
        %3781 = vadd.xlane.f32.xlu0 %v3780
        %v3782 = vpop.xlane.xlu0 %3781
        %v3783 = vadd.f32 %v3623, %v3624
        %3784 = vadd.xlane.f32.xlu0 %v3783
        %v3785 = vpop.xlane.xlu0 %3784
        %v3786 = vadd.f32 %v3625, %v3626
        %3787 = vadd.xlane.f32.xlu0 %v3786
        %v3788 = vpop.xlane.xlu0 %3787
        %v3789 = vadd.f32 %v3627, %v3628
        %3790 = vadd.xlane.f32.xlu0 %v3789
        %v3791 = vpop.xlane.xlu0 %3790
        %v3792 = vadd.f32 %v3629, %v3630
        %3793 = vadd.xlane.f32.xlu0 %v3792
        %v3794 = vpop.xlane.xlu0 %3793
        %v3795 = vadd.f32 %v3631, %v3632
        %3796 = vadd.xlane.f32.xlu0 %v3795
        %v3797 = vpop.xlane.xlu0 %3796
        %v3798 = vadd.f32 %v3633, %v3634
        %3799 = vadd.xlane.f32.xlu0 %v3798
        %v3800 = vpop.xlane.xlu0 %3799
        %v3801 = vadd.f32 %v3635, %v3636
        %3802 = vadd.xlane.f32.xlu0 %v3801
        %v3803 = vpop.xlane.xlu0 %3802
        %v3804 = vadd.f32 %v3637, %v3638
        %3805 = vadd.xlane.f32.xlu0 %v3804
        %v3806 = vpop.xlane.xlu0 %3805
        %v3807 = vadd.f32 %v3639, %v3640
        %3808 = vadd.xlane.f32.xlu0 %v3807
        %v3809 = vpop.xlane.xlu0 %3808
        %v3810 = vadd.f32 %v3641, %v3642
        %3811 = vadd.xlane.f32.xlu0 %v3810
        %v3812 = vpop.xlane.xlu0 %3811
        %v3813 = vadd.f32 %v3643, %v3644
        %3814 = vadd.xlane.f32.xlu0 %v3813
        %v3815 = vpop.xlane.xlu0 %3814
        %v3816 = vadd.f32 %v3645, %v3646
        %3817 = vadd.xlane.f32.xlu0 %v3816
        %v3818 = vpop.xlane.xlu0 %3817
        %v3819 = vadd.f32 %v3647, %v3648
        %3820 = vadd.xlane.f32.xlu0 %v3819
        %v3821 = vpop.xlane.xlu0 %3820
        %v3822 = vadd.f32 %v3649, %v3650
        %3823 = vadd.xlane.f32.xlu0 %v3822
        %v3824 = vpop.xlane.xlu0 %3823
        %v3825 = vadd.f32 %v3651, %v3652
        %3826 = vadd.xlane.f32.xlu0 %v3825
        %v3827 = vpop.xlane.xlu0 %3826
        %v3828 = vadd.f32 %v3653, %v3654
        %3829 = vadd.xlane.f32.xlu0 %v3828
        %v3830 = vpop.xlane.xlu0 %3829
        %v3831 = vadd.f32 %v3655, %v3656
        %3832 = vadd.xlane.f32.xlu0 %v3831
        %v3833 = vpop.xlane.xlu0 %3832
        %v3834 = vadd.f32 %v3657, %v3658
        %3835 = vadd.xlane.f32.xlu0 %v3834
        %v3836 = vpop.xlane.xlu0 %3835
        %v3837 = vadd.f32 %v3659, %v3660
        %3838 = vadd.xlane.f32.xlu0 %v3837
        %v3839 = vpop.xlane.xlu0 %3838
        %v3840 = vadd.f32 %v3661, %v3662
        %3841 = vadd.xlane.f32.xlu0 %v3840
        %v3842 = vpop.xlane.xlu0 %3841
        %v3843 = vadd.f32 %v3663, %v3664
        %3844 = vadd.xlane.f32.xlu0 %v3843
        %v3845 = vpop.xlane.xlu0 %3844
        %v3846 = vadd.f32 %v3665, %v3666
        %3847 = vadd.xlane.f32.xlu0 %v3846
        %v3848 = vpop.xlane.xlu0 %3847
        %v3849 = vadd.f32 %v3667, %v3668
        %3850 = vadd.xlane.f32.xlu0 %v3849
        %v3851 = vpop.xlane.xlu0 %3850
        %v3852 = vadd.f32 %v3669, %v3670
        %3853 = vadd.xlane.f32.xlu0 %v3852
        %v3854 = vpop.xlane.xlu0 %3853
        %v3855 = vadd.f32 %v3671, %v3672
        %3856 = vadd.xlane.f32.xlu0 %v3855
        %v3857 = vpop.xlane.xlu0 %3856
        %v3858 = vadd.f32 %v3673, %v3674
        %3859 = vadd.xlane.f32.xlu0 %v3858
        %v3860 = vpop.xlane.xlu0 %3859
        %v3861 = vadd.f32 %v3675, %v3676
        %3862 = vadd.xlane.f32.xlu0 %v3861
        %v3863 = vpop.xlane.xlu0 %3862
        %v3864 = vadd.f32 %v3677, %v3678
        %3865 = vadd.xlane.f32.xlu0 %v3864
        %v3866 = vpop.xlane.xlu0 %3865
        %v3867 = vadd.f32 %v3679, %v3680
        %3868 = vadd.xlane.f32.xlu0 %v3867
        %v3869 = vpop.xlane.xlu0 %3868
        %v3870 = vld [vmem:[#allocation2] sm:$0x1]
        %v3872 = vlaneseq
        %v3873 = vshrl.u32 %v3872, 7
        %v3874 = vsub.s32 0, %v3873
        %v3875 = vrot.slane %v3870, %v3874
        %v3877 = vadd.f32 %v3683, %v3875
        %v3878 = vadd.f32 %v3686, %v3875
        %v3879 = vadd.f32 %v3689, %v3875
        %v3880 = vadd.f32 %v3692, %v3875
        %v3881 = vadd.f32 %v3695, %v3875
        %v3882 = vadd.f32 %v3698, %v3875
        %v3883 = vadd.f32 %v3701, %v3875
        %v3884 = vadd.f32 %v3704, %v3875
        %v3885 = vadd.f32 %v3707, %v3875
        %v3886 = vadd.f32 %v3710, %v3875
        %v3887 = vadd.f32 %v3713, %v3875
        %v3888 = vadd.f32 %v3716, %v3875
        %v3889 = vadd.f32 %v3719, %v3875
        %v3890 = vadd.f32 %v3722, %v3875
        %v3891 = vadd.f32 %v3725, %v3875
        %v3892 = vadd.f32 %v3728, %v3875
        %v3893 = vadd.f32 %v3731, %v3875
        %v3894 = vadd.f32 %v3734, %v3875
        %v3895 = vadd.f32 %v3737, %v3875
        %v3896 = vadd.f32 %v3740, %v3875
        %v3897 = vadd.f32 %v3743, %v3875
        %v3898 = vadd.f32 %v3746, %v3875
        %v3899 = vadd.f32 %v3749, %v3875
        %v3900 = vadd.f32 %v3752, %v3875
        %v3901 = vadd.f32 %v3755, %v3875
        %v3902 = vadd.f32 %v3758, %v3875
        %v3903 = vadd.f32 %v3761, %v3875
        %v3904 = vadd.f32 %v3764, %v3875
        %v3905 = vadd.f32 %v3767, %v3875
        %v3906 = vadd.f32 %v3770, %v3875
        %v3907 = vadd.f32 %v3773, %v3875
        %v3908 = vadd.f32 %v3776, %v3875
        %v3909 = vadd.f32 %v3779, %v3875
        %v3910 = vadd.f32 %v3782, %v3875
        %v3911 = vadd.f32 %v3785, %v3875
        %v3912 = vadd.f32 %v3788, %v3875
        %v3913 = vadd.f32 %v3791, %v3875
        %v3914 = vadd.f32 %v3794, %v3875
        %v3915 = vadd.f32 %v3797, %v3875
        %v3916 = vadd.f32 %v3800, %v3875
        %v3917 = vadd.f32 %v3803, %v3875
        %v3918 = vadd.f32 %v3806, %v3875
        %v3919 = vadd.f32 %v3809, %v3875
        %v3920 = vadd.f32 %v3812, %v3875
        %v3921 = vadd.f32 %v3815, %v3875
        %v3922 = vadd.f32 %v3818, %v3875
        %v3923 = vadd.f32 %v3821, %v3875
        %v3924 = vadd.f32 %v3824, %v3875
        %v3925 = vadd.f32 %v3827, %v3875
        %v3926 = vadd.f32 %v3830, %v3875
        %v3927 = vadd.f32 %v3833, %v3875
        %v3928 = vadd.f32 %v3836, %v3875
        %v3929 = vadd.f32 %v3839, %v3875
        %v3930 = vadd.f32 %v3842, %v3875
        %v3931 = vadd.f32 %v3845, %v3875
        %v3932 = vadd.f32 %v3848, %v3875
        %v3933 = vadd.f32 %v3851, %v3875
        %v3934 = vadd.f32 %v3854, %v3875
        %v3935 = vadd.f32 %v3857, %v3875
        %v3936 = vadd.f32 %v3860, %v3875
        %v3937 = vadd.f32 %v3863, %v3875
        %v3938 = vadd.f32 %v3866, %v3875
        %v3939 = vadd.f32 %v3869, %v3875
        %vm3940 = vcmask 7168
        %3941 = vst.msk [vmem:[%s390] sm:$0xff] %vm3940, %v3877
        %3942 = vst.msk [vmem:[%s390 + $0x8] sm:$0xff] %vm3940, %v3878
        %3943 = vst.msk [vmem:[%s390 + $0x10] sm:$0xff] %vm3940, %v3879
        %3944 = vst.msk [vmem:[%s390 + $0x18] sm:$0xff] %vm3940, %v3880
        %3945 = vst.msk [vmem:[%s390 + $0x20] sm:$0xff] %vm3940, %v3881
        %3946 = vst.msk [vmem:[%s390 + $0x28] sm:$0xff] %vm3940, %v3882
        %3947 = vst.msk [vmem:[%s390 + $0x30] sm:$0xff] %vm3940, %v3883
        %3948 = vst.msk [vmem:[%s390 + $0x38] sm:$0xff] %vm3940, %v3884
        %3949 = vst.msk [vmem:[%s390 + $0x40] sm:$0xff] %vm3940, %v3885
        %3950 = vst.msk [vmem:[%s390 + $0x48] sm:$0xff] %vm3940, %v3886
        %3951 = vst.msk [vmem:[%s390 + $0x50] sm:$0xff] %vm3940, %v3887
        %3952 = vst.msk [vmem:[%s390 + $0x58] sm:$0xff] %vm3940, %v3888
        %3953 = vst.msk [vmem:[%s390 + $0x60] sm:$0xff] %vm3940, %v3889
        %3954 = vst.msk [vmem:[%s390 + $0x68] sm:$0xff] %vm3940, %v3890
        %3955 = vst.msk [vmem:[%s390 + $0x70] sm:$0xff] %vm3940, %v3891
        %3956 = vst.msk [vmem:[%s390 + $0x78] sm:$0xff] %vm3940, %v3892
        %3957 = vst.msk [vmem:[%s390 + $0x80] sm:$0xff] %vm3940, %v3893
        %3958 = vst.msk [vmem:[%s390 + $0x88] sm:$0xff] %vm3940, %v3894
        %3959 = vst.msk [vmem:[%s390 + $0x90] sm:$0xff] %vm3940, %v3895
        %3960 = vst.msk [vmem:[%s390 + $0x98] sm:$0xff] %vm3940, %v3896
        %3961 = vst.msk [vmem:[%s390 + $0xa0] sm:$0xff] %vm3940, %v3897
        %3962 = vst.msk [vmem:[%s390 + $0xa8] sm:$0xff] %vm3940, %v3898
        %3963 = vst.msk [vmem:[%s390 + $0xb0] sm:$0xff] %vm3940, %v3899
        %3964 = vst.msk [vmem:[%s390 + $0xb8] sm:$0xff] %vm3940, %v3900
        %3965 = vst.msk [vmem:[%s390 + $0xc0] sm:$0xff] %vm3940, %v3901
        %3966 = vst.msk [vmem:[%s390 + $0xc8] sm:$0xff] %vm3940, %v3902
        %3967 = vst.msk [vmem:[%s390 + $0xd0] sm:$0xff] %vm3940, %v3903
        %3968 = vst.msk [vmem:[%s390 + $0xd8] sm:$0xff] %vm3940, %v3904
        %3969 = vst.msk [vmem:[%s390 + $0xe0] sm:$0xff] %vm3940, %v3905
        %3970 = vst.msk [vmem:[%s390 + $0xe8] sm:$0xff] %vm3940, %v3906
        %3971 = vst.msk [vmem:[%s390 + $0xf0] sm:$0xff] %vm3940, %v3907
        %3972 = vst.msk [vmem:[%s390 + $0xf8] sm:$0xff] %vm3940, %v3908
        %3973 = vst.msk [vmem:[%s390 + $0x100] sm:$0xff] %vm3940, %v3909
        %3974 = vst.msk [vmem:[%s390 + $0x108] sm:$0xff] %vm3940, %v3910
        %3975 = vst.msk [vmem:[%s390 + $0x110] sm:$0xff] %vm3940, %v3911
        %3976 = vst.msk [vmem:[%s390 + $0x118] sm:$0xff] %vm3940, %v3912
        %3977 = vst.msk [vmem:[%s390 + $0x120] sm:$0xff] %vm3940, %v3913
        %3978 = vst.msk [vmem:[%s390 + $0x128] sm:$0xff] %vm3940, %v3914
        %3979 = vst.msk [vmem:[%s390 + $0x130] sm:$0xff] %vm3940, %v3915
        %3980 = vst.msk [vmem:[%s390 + $0x138] sm:$0xff] %vm3940, %v3916
        %3981 = vst.msk [vmem:[%s390 + $0x140] sm:$0xff] %vm3940, %v3917
        %3982 = vst.msk [vmem:[%s390 + $0x148] sm:$0xff] %vm3940, %v3918
        %3983 = vst.msk [vmem:[%s390 + $0x150] sm:$0xff] %vm3940, %v3919
        %3984 = vst.msk [vmem:[%s390 + $0x158] sm:$0xff] %vm3940, %v3920
        %3985 = vst.msk [vmem:[%s390 + $0x160] sm:$0xff] %vm3940, %v3921
        %3986 = vst.msk [vmem:[%s390 + $0x168] sm:$0xff] %vm3940, %v3922
        %3987 = vst.msk [vmem:[%s390 + $0x170] sm:$0xff] %vm3940, %v3923
        %3988 = vst.msk [vmem:[%s390 + $0x178] sm:$0xff] %vm3940, %v3924
        %3989 = vst.msk [vmem:[%s390 + $0x180] sm:$0xff] %vm3940, %v3925
        %3990 = vst.msk [vmem:[%s390 + $0x188] sm:$0xff] %vm3940, %v3926
        %3991 = vst.msk [vmem:[%s390 + $0x190] sm:$0xff] %vm3940, %v3927
        %3992 = vst.msk [vmem:[%s390 + $0x198] sm:$0xff] %vm3940, %v3928
        %3993 = vst.msk [vmem:[%s390 + $0x1a0] sm:$0xff] %vm3940, %v3929
        %3994 = vst.msk [vmem:[%s390 + $0x1a8] sm:$0xff] %vm3940, %v3930
        %3995 = vst.msk [vmem:[%s390 + $0x1b0] sm:$0xff] %vm3940, %v3931
        %3996 = vst.msk [vmem:[%s390 + $0x1b8] sm:$0xff] %vm3940, %v3932
        %3997 = vst.msk [vmem:[%s390 + $0x1c0] sm:$0xff] %vm3940, %v3933
        %3998 = vst.msk [vmem:[%s390 + $0x1c8] sm:$0xff] %vm3940, %v3934
        %3999 = vst.msk [vmem:[%s390 + $0x1d0] sm:$0xff] %vm3940, %v3935
        %4000 = vst.msk [vmem:[%s390 + $0x1d8] sm:$0xff] %vm3940, %v3936
        %4001 = vst.msk [vmem:[%s390 + $0x1e0] sm:$0xff] %vm3940, %v3937
        %4002 = vst.msk [vmem:[%s390 + $0x1e8] sm:$0xff] %vm3940, %v3938
        %4003 = vst.msk [vmem:[%s390 + $0x1f0] sm:$0xff] %vm3940, %v3939
        %s4004 = sand.u32 %s268, 1
        %s4005 = sand.u32 %s268, 1
        %s4006 = smul.addr %s4005, 504
        %s4007 = scalar_lea.vmem [#allocation3], %s4006
        // Predicated region
        $region65: #{tpu_custom_call.1} parent=63 // pred_check
          %p4008 = pneg %p278
        $region66: #{tpu_custom_call.1} parent=63 // pred_check_branch
          %4010 = sbr.rel (%p4008) target = $region68
        $region67: #{tpu_custom_call.1} parent=63 // pred_region
          %s4011 = smul.u32 63, %s24
          %s4012 = ssub.s32 125, %s4011
          %p4013 = scmp.lt.s32.totalorder %s4012, 63
          %s4014 = scalar_select %p4013, %s4012, 63
          %s4015 = smul.u32 128, %s4014
          %p4016 = scmp.ne.s32.totalorder 0, %s4015
          %s4017 = smul.addr %s4011, 8
          %s4018 = scalar_lea.vmem %s11, %s4017
          // Predicated region
          $region69: #{tpu_custom_call.1} parent=67 // pred_check
            %p4019 = pneg %p4016
          $region70: #{tpu_custom_call.1} parent=67 // pred_check_branch
            %4021 = sbr.rel (%p4019) target = $region72
          $region71: #{tpu_custom_call.1} parent=67 // pred_region
            // Predicated region
            $region73: #{tpu_custom_call.1} parent=71 // pred_check
              _
            $region74: #{tpu_custom_call.1} parent=71 // pred_check_branch
              %4023 = sbr.rel (0) target = $region76
            $region75: #{tpu_custom_call.1} parent=71 // pred_region
              // Predicated region
              $region95: #{tpu_custom_call.1} parent=75 // pred_check
                _
              $region96: #{tpu_custom_call.1} parent=75 // pred_check_branch
                %4197 = sbr.rel (0) target = $region98
              $region97: #{tpu_custom_call.1} parent=75 // pred_region
                %s4198 = sdiv.u32.pop %s4014, 63
                %s4199 = srem.u32.pop %s4014, 63
                // While loop
                $region99: #{tpu_custom_call.1} parent=97 // loop_pre_header
                  _
                $region100: #{tpu_custom_call.1} parent=97 // loop_header
                  %s4201 = sphi 0, %s4203
                  %p4202 = scmp.ge.s32.totalorder %s4201, %s4198
                  %s4206 = sphi 0, %s4337
                  %s4207 = sphi %s4007, %s4340
                  %s4208 = sphi %s4018, %s4341
                $region101: #{tpu_custom_call.1} parent=97 // loop_header_branch
                  %4205 = sbr.rel (%p4202) target = $region105
                $region102: #{tpu_custom_call.1} parent=97 // loop_body
                  %v4209 = vld [vmem:[%s4207] sm:$0xff]
                  %4210 = vst [vmem:[%s4208] sm:$0xff] %v4209
                  %v4211 = vld [vmem:[%s4207 + $0x8] sm:$0xff]
                  %4212 = vst [vmem:[%s4208 + $0x8] sm:$0xff] %v4211
                  %v4213 = vld [vmem:[%s4207 + $0x10] sm:$0xff]
                  %4214 = vst [vmem:[%s4208 + $0x10] sm:$0xff] %v4213
                  %v4215 = vld [vmem:[%s4207 + $0x18] sm:$0xff]
                  %4216 = vst [vmem:[%s4208 + $0x18] sm:$0xff] %v4215
                  %v4217 = vld [vmem:[%s4207 + $0x20] sm:$0xff]
                  %4218 = vst [vmem:[%s4208 + $0x20] sm:$0xff] %v4217
                  %v4219 = vld [vmem:[%s4207 + $0x28] sm:$0xff]
                  %4220 = vst [vmem:[%s4208 + $0x28] sm:$0xff] %v4219
                  %v4221 = vld [vmem:[%s4207 + $0x30] sm:$0xff]
                  %4222 = vst [vmem:[%s4208 + $0x30] sm:$0xff] %v4221
                  %v4223 = vld [vmem:[%s4207 + $0x38] sm:$0xff]
                  %4224 = vst [vmem:[%s4208 + $0x38] sm:$0xff] %v4223
                  %v4225 = vld [vmem:[%s4207 + $0x40] sm:$0xff]
                  %4226 = vst [vmem:[%s4208 + $0x40] sm:$0xff] %v4225
                  %v4227 = vld [vmem:[%s4207 + $0x48] sm:$0xff]
                  %4228 = vst [vmem:[%s4208 + $0x48] sm:$0xff] %v4227
                  %v4229 = vld [vmem:[%s4207 + $0x50] sm:$0xff]
                  %4230 = vst [vmem:[%s4208 + $0x50] sm:$0xff] %v4229
                  %v4231 = vld [vmem:[%s4207 + $0x58] sm:$0xff]
                  %4232 = vst [vmem:[%s4208 + $0x58] sm:$0xff] %v4231
                  %v4233 = vld [vmem:[%s4207 + $0x60] sm:$0xff]
                  %4234 = vst [vmem:[%s4208 + $0x60] sm:$0xff] %v4233
                  %v4235 = vld [vmem:[%s4207 + $0x68] sm:$0xff]
                  %4236 = vst [vmem:[%s4208 + $0x68] sm:$0xff] %v4235
                  %v4237 = vld [vmem:[%s4207 + $0x70] sm:$0xff]
                  %4238 = vst [vmem:[%s4208 + $0x70] sm:$0xff] %v4237
                  %v4239 = vld [vmem:[%s4207 + $0x78] sm:$0xff]
                  %4240 = vst [vmem:[%s4208 + $0x78] sm:$0xff] %v4239
                  %v4241 = vld [vmem:[%s4207 + $0x80] sm:$0xff]
                  %4242 = vst [vmem:[%s4208 + $0x80] sm:$0xff] %v4241
                  %v4243 = vld [vmem:[%s4207 + $0x88] sm:$0xff]
                  %4244 = vst [vmem:[%s4208 + $0x88] sm:$0xff] %v4243
                  %v4245 = vld [vmem:[%s4207 + $0x90] sm:$0xff]
                  %4246 = vst [vmem:[%s4208 + $0x90] sm:$0xff] %v4245
                  %v4247 = vld [vmem:[%s4207 + $0x98] sm:$0xff]
                  %4248 = vst [vmem:[%s4208 + $0x98] sm:$0xff] %v4247
                  %v4249 = vld [vmem:[%s4207 + $0xa0] sm:$0xff]
                  %4250 = vst [vmem:[%s4208 + $0xa0] sm:$0xff] %v4249
                  %v4251 = vld [vmem:[%s4207 + $0xa8] sm:$0xff]
                  %4252 = vst [vmem:[%s4208 + $0xa8] sm:$0xff] %v4251
                  %v4253 = vld [vmem:[%s4207 + $0xb0] sm:$0xff]
                  %4254 = vst [vmem:[%s4208 + $0xb0] sm:$0xff] %v4253
                  %v4255 = vld [vmem:[%s4207 + $0xb8] sm:$0xff]
                  %4256 = vst [vmem:[%s4208 + $0xb8] sm:$0xff] %v4255
                  %v4257 = vld [vmem:[%s4207 + $0xc0] sm:$0xff]
                  %4258 = vst [vmem:[%s4208 + $0xc0] sm:$0xff] %v4257
                  %v4259 = vld [vmem:[%s4207 + $0xc8] sm:$0xff]
                  %4260 = vst [vmem:[%s4208 + $0xc8] sm:$0xff] %v4259
                  %v4261 = vld [vmem:[%s4207 + $0xd0] sm:$0xff]
                  %4262 = vst [vmem:[%s4208 + $0xd0] sm:$0xff] %v4261
                  %v4263 = vld [vmem:[%s4207 + $0xd8] sm:$0xff]
                  %4264 = vst [vmem:[%s4208 + $0xd8] sm:$0xff] %v4263
                  %v4265 = vld [vmem:[%s4207 + $0xe0] sm:$0xff]
                  %4266 = vst [vmem:[%s4208 + $0xe0] sm:$0xff] %v4265
                  %v4267 = vld [vmem:[%s4207 + $0xe8] sm:$0xff]
                  %4268 = vst [vmem:[%s4208 + $0xe8] sm:$0xff] %v4267
                  %v4269 = vld [vmem:[%s4207 + $0xf0] sm:$0xff]
                  %4270 = vst [vmem:[%s4208 + $0xf0] sm:$0xff] %v4269
                  %v4271 = vld [vmem:[%s4207 + $0xf8] sm:$0xff]
                  %4272 = vst [vmem:[%s4208 + $0xf8] sm:$0xff] %v4271
                  %v4273 = vld [vmem:[%s4207 + $0x100] sm:$0xff]
                  %4274 = vst [vmem:[%s4208 + $0x100] sm:$0xff] %v4273
                  %v4275 = vld [vmem:[%s4207 + $0x108] sm:$0xff]
                  %4276 = vst [vmem:[%s4208 + $0x108] sm:$0xff] %v4275
                  %v4277 = vld [vmem:[%s4207 + $0x110] sm:$0xff]
                  %4278 = vst [vmem:[%s4208 + $0x110] sm:$0xff] %v4277
                  %v4279 = vld [vmem:[%s4207 + $0x118] sm:$0xff]
                  %4280 = vst [vmem:[%s4208 + $0x118] sm:$0xff] %v4279
                  %v4281 = vld [vmem:[%s4207 + $0x120] sm:$0xff]
                  %4282 = vst [vmem:[%s4208 + $0x120] sm:$0xff] %v4281
                  %v4283 = vld [vmem:[%s4207 + $0x128] sm:$0xff]
                  %4284 = vst [vmem:[%s4208 + $0x128] sm:$0xff] %v4283
                  %v4285 = vld [vmem:[%s4207 + $0x130] sm:$0xff]
                  %4286 = vst [vmem:[%s4208 + $0x130] sm:$0xff] %v4285
                  %v4287 = vld [vmem:[%s4207 + $0x138] sm:$0xff]
                  %4288 = vst [vmem:[%s4208 + $0x138] sm:$0xff] %v4287
                  %v4289 = vld [vmem:[%s4207 + $0x140] sm:$0xff]
                  %4290 = vst [vmem:[%s4208 + $0x140] sm:$0xff] %v4289
                  %v4291 = vld [vmem:[%s4207 + $0x148] sm:$0xff]
                  %4292 = vst [vmem:[%s4208 + $0x148] sm:$0xff] %v4291
                  %v4293 = vld [vmem:[%s4207 + $0x150] sm:$0xff]
                  %4294 = vst [vmem:[%s4208 + $0x150] sm:$0xff] %v4293
                  %v4295 = vld [vmem:[%s4207 + $0x158] sm:$0xff]
                  %4296 = vst [vmem:[%s4208 + $0x158] sm:$0xff] %v4295
                  %v4297 = vld [vmem:[%s4207 + $0x160] sm:$0xff]
                  %4298 = vst [vmem:[%s4208 + $0x160] sm:$0xff] %v4297
                  %v4299 = vld [vmem:[%s4207 + $0x168] sm:$0xff]
                  %4300 = vst [vmem:[%s4208 + $0x168] sm:$0xff] %v4299
                  %v4301 = vld [vmem:[%s4207 + $0x170] sm:$0xff]
                  %4302 = vst [vmem:[%s4208 + $0x170] sm:$0xff] %v4301
                  %v4303 = vld [vmem:[%s4207 + $0x178] sm:$0xff]
                  %4304 = vst [vmem:[%s4208 + $0x178] sm:$0xff] %v4303
                  %v4305 = vld [vmem:[%s4207 + $0x180] sm:$0xff]
                  %4306 = vst [vmem:[%s4208 + $0x180] sm:$0xff] %v4305
                  %v4307 = vld [vmem:[%s4207 + $0x188] sm:$0xff]
                  %4308 = vst [vmem:[%s4208 + $0x188] sm:$0xff] %v4307
                  %v4309 = vld [vmem:[%s4207 + $0x190] sm:$0xff]
                  %4310 = vst [vmem:[%s4208 + $0x190] sm:$0xff] %v4309
                  %v4311 = vld [vmem:[%s4207 + $0x198] sm:$0xff]
                  %4312 = vst [vmem:[%s4208 + $0x198] sm:$0xff] %v4311
                  %v4313 = vld [vmem:[%s4207 + $0x1a0] sm:$0xff]
                  %4314 = vst [vmem:[%s4208 + $0x1a0] sm:$0xff] %v4313
                  %v4315 = vld [vmem:[%s4207 + $0x1a8] sm:$0xff]
                  %4316 = vst [vmem:[%s4208 + $0x1a8] sm:$0xff] %v4315
                  %v4317 = vld [vmem:[%s4207 + $0x1b0] sm:$0xff]
                  %4318 = vst [vmem:[%s4208 + $0x1b0] sm:$0xff] %v4317
                  %v4319 = vld [vmem:[%s4207 + $0x1b8] sm:$0xff]
                  %4320 = vst [vmem:[%s4208 + $0x1b8] sm:$0xff] %v4319
                  %v4321 = vld [vmem:[%s4207 + $0x1c0] sm:$0xff]
                  %4322 = vst [vmem:[%s4208 + $0x1c0] sm:$0xff] %v4321
                  %v4323 = vld [vmem:[%s4207 + $0x1c8] sm:$0xff]
                  %4324 = vst [vmem:[%s4208 + $0x1c8] sm:$0xff] %v4323
                  %v4325 = vld [vmem:[%s4207 + $0x1d0] sm:$0xff]
                  %4326 = vst [vmem:[%s4208 + $0x1d0] sm:$0xff] %v4325
                  %v4327 = vld [vmem:[%s4207 + $0x1d8] sm:$0xff]
                  %4328 = vst [vmem:[%s4208 + $0x1d8] sm:$0xff] %v4327
                  %v4329 = vld [vmem:[%s4207 + $0x1e0] sm:$0xff]
                  %4330 = vst [vmem:[%s4208 + $0x1e0] sm:$0xff] %v4329
                  %v4331 = vld [vmem:[%s4207 + $0x1e8] sm:$0xff]
                  %4332 = vst [vmem:[%s4208 + $0x1e8] sm:$0xff] %v4331
                  %v4333 = vld [vmem:[%s4207 + $0x1f0] sm:$0xff]
                  %4334 = vst [vmem:[%s4208 + $0x1f0] sm:$0xff] %v4333
                  %s4335 = sadd.s32 1, %s4206
                  %p4336 = scmp.ge.s32.totalorder %s4335, %s4198
                  %s4337 = scalar_select %p4336, 0, %s4335
                  %s4338 = smul.u32 %s4337, 504
                  %s4339 = smul.u32 %s4337, 504
                  %s4340 = scalar_lea.vmem %s4007, %s4338 [#allocation3]
                  %s4341 = scalar_lea.vmem %s4018, %s4339
                $region103: #{tpu_custom_call.1} parent=97 // loop_footer
                  %s4203 = sadd.s32 %s4201, 1
                $region104: #{tpu_custom_call.1} parent=97 // loop_footer_branch
                  %4200 = sbr.rel target = $region100
                $region105: #{tpu_custom_call.1} parent=97 // loop_exit
                  _
                %s4342 = sdiv.u32.pop %s4014, 63
                %s4343 = srem.u32.pop %s4014, 63
                %s4344 = smul.u32 %s4342, 63
                %s4345 = smul.u32 8, %s4344
                %s4346 = scalar_lea.vmem %s4007, %s4345 [#allocation3]
                %s4347 = smul.u32 8, %s4344
                %s4348 = scalar_lea.vmem %s4018, %s4347
                // While loop
                $region106: #{tpu_custom_call.1} parent=97 // loop_pre_header
                  _
                $region107: #{tpu_custom_call.1} parent=97 // loop_header
                  %s4350 = sphi 0, %s4352
                  %p4351 = scmp.ge.s32.totalorder %s4350, %s4343
                  %s4355 = sphi 0, %s4362
                  %s4356 = sphi %s4346, %s4365
                  %s4357 = sphi %s4348, %s4366
                $region108: #{tpu_custom_call.1} parent=97 // loop_header_branch
                  %4354 = sbr.rel (%p4351) target = $region112
                $region109: #{tpu_custom_call.1} parent=97 // loop_body
                  %v4358 = vld [vmem:[%s4356] sm:$0xff]
                  %4359 = vst [vmem:[%s4357] sm:$0xff] %v4358
                  %s4360 = sadd.s32 1, %s4355
                  %p4361 = scmp.ge.s32.totalorder %s4360, %s4343
                  %s4362 = scalar_select %p4361, 0, %s4360
                  %s4363 = smul.u32 %s4362, 8
                  %s4364 = smul.u32 %s4362, 8
                  %s4365 = scalar_lea.vmem %s4346, %s4363 [#allocation3]
                  %s4366 = scalar_lea.vmem %s4348, %s4364
                $region110: #{tpu_custom_call.1} parent=97 // loop_footer
                  %s4352 = sadd.s32 %s4350, 1
                $region111: #{tpu_custom_call.1} parent=97 // loop_footer_branch
                  %4349 = sbr.rel target = $region107
                $region112: #{tpu_custom_call.1} parent=97 // loop_exit
                  _
              $region98: #{tpu_custom_call.1} parent=75 // pred_fallthru
                _
              // Predicated region
              $region113: #{tpu_custom_call.1} parent=75 // pred_check
                _
              $region114: #{tpu_custom_call.1} parent=75 // pred_check_branch
                %4368 = sbr.rel target = $region116
              $region115: #{tpu_custom_call.1} parent=75 // pred_region
                _
              $region116: #{tpu_custom_call.1} parent=75 // pred_fallthru
                _
            $region76: #{tpu_custom_call.1} parent=71 // pred_fallthru
              _
            // Predicated region
            $region77: #{tpu_custom_call.1} parent=71 // pred_check
              _
            $region78: #{tpu_custom_call.1} parent=71 // pred_check_branch
              %4025 = sbr.rel target = $region80
            $region79: #{tpu_custom_call.1} parent=71 // pred_region
              %s4027 = sdiv.u32.pop %s4014, 63
              %s4028 = srem.u32.pop %s4014, 63
              // While loop
              $region81: #{tpu_custom_call.1} parent=79 // loop_pre_header
                _
              $region82: #{tpu_custom_call.1} parent=79 // loop_header
                %s4030 = sphi 0, %s4032
                %p4031 = scmp.ge.s32.totalorder %s4030, %s4027
                %s4035 = sphi 0, %s4166
                %s4036 = sphi %s4007, %s4169
                %s4037 = sphi %s4018, %s4170
              $region83: #{tpu_custom_call.1} parent=79 // loop_header_branch
                %4034 = sbr.rel (%p4031) target = $region87
              $region84: #{tpu_custom_call.1} parent=79 // loop_body
                %v4038 = vld [vmem:[%s4036] sm:$0xff]
                %4039 = vst [vmem:[%s4037] sm:$0xff] %v4038
                %v4040 = vld [vmem:[%s4036 + $0x8] sm:$0xff]
                %4041 = vst [vmem:[%s4037 + $0x8] sm:$0xff] %v4040
                %v4042 = vld [vmem:[%s4036 + $0x10] sm:$0xff]
                %4043 = vst [vmem:[%s4037 + $0x10] sm:$0xff] %v4042
                %v4044 = vld [vmem:[%s4036 + $0x18] sm:$0xff]
                %4045 = vst [vmem:[%s4037 + $0x18] sm:$0xff] %v4044
                %v4046 = vld [vmem:[%s4036 + $0x20] sm:$0xff]
                %4047 = vst [vmem:[%s4037 + $0x20] sm:$0xff] %v4046
                %v4048 = vld [vmem:[%s4036 + $0x28] sm:$0xff]
                %4049 = vst [vmem:[%s4037 + $0x28] sm:$0xff] %v4048
                %v4050 = vld [vmem:[%s4036 + $0x30] sm:$0xff]
                %4051 = vst [vmem:[%s4037 + $0x30] sm:$0xff] %v4050
                %v4052 = vld [vmem:[%s4036 + $0x38] sm:$0xff]
                %4053 = vst [vmem:[%s4037 + $0x38] sm:$0xff] %v4052
                %v4054 = vld [vmem:[%s4036 + $0x40] sm:$0xff]
                %4055 = vst [vmem:[%s4037 + $0x40] sm:$0xff] %v4054
                %v4056 = vld [vmem:[%s4036 + $0x48] sm:$0xff]
                %4057 = vst [vmem:[%s4037 + $0x48] sm:$0xff] %v4056
                %v4058 = vld [vmem:[%s4036 + $0x50] sm:$0xff]
                %4059 = vst [vmem:[%s4037 + $0x50] sm:$0xff] %v4058
                %v4060 = vld [vmem:[%s4036 + $0x58] sm:$0xff]
                %4061 = vst [vmem:[%s4037 + $0x58] sm:$0xff] %v4060
                %v4062 = vld [vmem:[%s4036 + $0x60] sm:$0xff]
                %4063 = vst [vmem:[%s4037 + $0x60] sm:$0xff] %v4062
                %v4064 = vld [vmem:[%s4036 + $0x68] sm:$0xff]
                %4065 = vst [vmem:[%s4037 + $0x68] sm:$0xff] %v4064
                %v4066 = vld [vmem:[%s4036 + $0x70] sm:$0xff]
                %4067 = vst [vmem:[%s4037 + $0x70] sm:$0xff] %v4066
                %v4068 = vld [vmem:[%s4036 + $0x78] sm:$0xff]
                %4069 = vst [vmem:[%s4037 + $0x78] sm:$0xff] %v4068
                %v4070 = vld [vmem:[%s4036 + $0x80] sm:$0xff]
                %4071 = vst [vmem:[%s4037 + $0x80] sm:$0xff] %v4070
                %v4072 = vld [vmem:[%s4036 + $0x88] sm:$0xff]
                %4073 = vst [vmem:[%s4037 + $0x88] sm:$0xff] %v4072
                %v4074 = vld [vmem:[%s4036 + $0x90] sm:$0xff]
                %4075 = vst [vmem:[%s4037 + $0x90] sm:$0xff] %v4074
                %v4076 = vld [vmem:[%s4036 + $0x98] sm:$0xff]
                %4077 = vst [vmem:[%s4037 + $0x98] sm:$0xff] %v4076
                %v4078 = vld [vmem:[%s4036 + $0xa0] sm:$0xff]
                %4079 = vst [vmem:[%s4037 + $0xa0] sm:$0xff] %v4078
                %v4080 = vld [vmem:[%s4036 + $0xa8] sm:$0xff]
                %4081 = vst [vmem:[%s4037 + $0xa8] sm:$0xff] %v4080
                %v4082 = vld [vmem:[%s4036 + $0xb0] sm:$0xff]
                %4083 = vst [vmem:[%s4037 + $0xb0] sm:$0xff] %v4082
                %v4084 = vld [vmem:[%s4036 + $0xb8] sm:$0xff]
                %4085 = vst [vmem:[%s4037 + $0xb8] sm:$0xff] %v4084
                %v4086 = vld [vmem:[%s4036 + $0xc0] sm:$0xff]
                %4087 = vst [vmem:[%s4037 + $0xc0] sm:$0xff] %v4086
                %v4088 = vld [vmem:[%s4036 + $0xc8] sm:$0xff]
                %4089 = vst [vmem:[%s4037 + $0xc8] sm:$0xff] %v4088
                %v4090 = vld [vmem:[%s4036 + $0xd0] sm:$0xff]
                %4091 = vst [vmem:[%s4037 + $0xd0] sm:$0xff] %v4090
                %v4092 = vld [vmem:[%s4036 + $0xd8] sm:$0xff]
                %4093 = vst [vmem:[%s4037 + $0xd8] sm:$0xff] %v4092
                %v4094 = vld [vmem:[%s4036 + $0xe0] sm:$0xff]
                %4095 = vst [vmem:[%s4037 + $0xe0] sm:$0xff] %v4094
                %v4096 = vld [vmem:[%s4036 + $0xe8] sm:$0xff]
                %4097 = vst [vmem:[%s4037 + $0xe8] sm:$0xff] %v4096
                %v4098 = vld [vmem:[%s4036 + $0xf0] sm:$0xff]
                %4099 = vst [vmem:[%s4037 + $0xf0] sm:$0xff] %v4098
                %v4100 = vld [vmem:[%s4036 + $0xf8] sm:$0xff]
                %4101 = vst [vmem:[%s4037 + $0xf8] sm:$0xff] %v4100
                %v4102 = vld [vmem:[%s4036 + $0x100] sm:$0xff]
                %4103 = vst [vmem:[%s4037 + $0x100] sm:$0xff] %v4102
                %v4104 = vld [vmem:[%s4036 + $0x108] sm:$0xff]
                %4105 = vst [vmem:[%s4037 + $0x108] sm:$0xff] %v4104
                %v4106 = vld [vmem:[%s4036 + $0x110] sm:$0xff]
                %4107 = vst [vmem:[%s4037 + $0x110] sm:$0xff] %v4106
                %v4108 = vld [vmem:[%s4036 + $0x118] sm:$0xff]
                %4109 = vst [vmem:[%s4037 + $0x118] sm:$0xff] %v4108
                %v4110 = vld [vmem:[%s4036 + $0x120] sm:$0xff]
                %4111 = vst [vmem:[%s4037 + $0x120] sm:$0xff] %v4110
                %v4112 = vld [vmem:[%s4036 + $0x128] sm:$0xff]
                %4113 = vst [vmem:[%s4037 + $0x128] sm:$0xff] %v4112
                %v4114 = vld [vmem:[%s4036 + $0x130] sm:$0xff]
                %4115 = vst [vmem:[%s4037 + $0x130] sm:$0xff] %v4114
                %v4116 = vld [vmem:[%s4036 + $0x138] sm:$0xff]
                %4117 = vst [vmem:[%s4037 + $0x138] sm:$0xff] %v4116
                %v4118 = vld [vmem:[%s4036 + $0x140] sm:$0xff]
                %4119 = vst [vmem:[%s4037 + $0x140] sm:$0xff] %v4118
                %v4120 = vld [vmem:[%s4036 + $0x148] sm:$0xff]
                %4121 = vst [vmem:[%s4037 + $0x148] sm:$0xff] %v4120
                %v4122 = vld [vmem:[%s4036 + $0x150] sm:$0xff]
                %4123 = vst [vmem:[%s4037 + $0x150] sm:$0xff] %v4122
                %v4124 = vld [vmem:[%s4036 + $0x158] sm:$0xff]
                %4125 = vst [vmem:[%s4037 + $0x158] sm:$0xff] %v4124
                %v4126 = vld [vmem:[%s4036 + $0x160] sm:$0xff]
                %4127 = vst [vmem:[%s4037 + $0x160] sm:$0xff] %v4126
                %v4128 = vld [vmem:[%s4036 + $0x168] sm:$0xff]
                %4129 = vst [vmem:[%s4037 + $0x168] sm:$0xff] %v4128
                %v4130 = vld [vmem:[%s4036 + $0x170] sm:$0xff]
                %4131 = vst [vmem:[%s4037 + $0x170] sm:$0xff] %v4130
                %v4132 = vld [vmem:[%s4036 + $0x178] sm:$0xff]
                %4133 = vst [vmem:[%s4037 + $0x178] sm:$0xff] %v4132
                %v4134 = vld [vmem:[%s4036 + $0x180] sm:$0xff]
                %4135 = vst [vmem:[%s4037 + $0x180] sm:$0xff] %v4134
                %v4136 = vld [vmem:[%s4036 + $0x188] sm:$0xff]
                %4137 = vst [vmem:[%s4037 + $0x188] sm:$0xff] %v4136
                %v4138 = vld [vmem:[%s4036 + $0x190] sm:$0xff]
                %4139 = vst [vmem:[%s4037 + $0x190] sm:$0xff] %v4138
                %v4140 = vld [vmem:[%s4036 + $0x198] sm:$0xff]
                %4141 = vst [vmem:[%s4037 + $0x198] sm:$0xff] %v4140
                %v4142 = vld [vmem:[%s4036 + $0x1a0] sm:$0xff]
                %4143 = vst [vmem:[%s4037 + $0x1a0] sm:$0xff] %v4142
                %v4144 = vld [vmem:[%s4036 + $0x1a8] sm:$0xff]
                %4145 = vst [vmem:[%s4037 + $0x1a8] sm:$0xff] %v4144
                %v4146 = vld [vmem:[%s4036 + $0x1b0] sm:$0xff]
                %4147 = vst [vmem:[%s4037 + $0x1b0] sm:$0xff] %v4146
                %v4148 = vld [vmem:[%s4036 + $0x1b8] sm:$0xff]
                %4149 = vst [vmem:[%s4037 + $0x1b8] sm:$0xff] %v4148
                %v4150 = vld [vmem:[%s4036 + $0x1c0] sm:$0xff]
                %4151 = vst [vmem:[%s4037 + $0x1c0] sm:$0xff] %v4150
                %v4152 = vld [vmem:[%s4036 + $0x1c8] sm:$0xff]
                %4153 = vst [vmem:[%s4037 + $0x1c8] sm:$0xff] %v4152
                %v4154 = vld [vmem:[%s4036 + $0x1d0] sm:$0xff]
                %4155 = vst [vmem:[%s4037 + $0x1d0] sm:$0xff] %v4154
                %v4156 = vld [vmem:[%s4036 + $0x1d8] sm:$0xff]
                %4157 = vst [vmem:[%s4037 + $0x1d8] sm:$0xff] %v4156
                %v4158 = vld [vmem:[%s4036 + $0x1e0] sm:$0xff]
                %4159 = vst [vmem:[%s4037 + $0x1e0] sm:$0xff] %v4158
                %v4160 = vld [vmem:[%s4036 + $0x1e8] sm:$0xff]
                %4161 = vst [vmem:[%s4037 + $0x1e8] sm:$0xff] %v4160
                %v4162 = vld [vmem:[%s4036 + $0x1f0] sm:$0xff]
                %4163 = vst [vmem:[%s4037 + $0x1f0] sm:$0xff] %v4162
                %s4164 = sadd.s32 1, %s4035
                %p4165 = scmp.ge.s32.totalorder %s4164, %s4027
                %s4166 = scalar_select %p4165, 0, %s4164
                %s4167 = smul.u32 %s4166, 504
                %s4168 = smul.u32 %s4166, 504
                %s4169 = scalar_lea.vmem %s4007, %s4167 [#allocation3]
                %s4170 = scalar_lea.vmem %s4018, %s4168
              $region85: #{tpu_custom_call.1} parent=79 // loop_footer
                %s4032 = sadd.s32 %s4030, 1
              $region86: #{tpu_custom_call.1} parent=79 // loop_footer_branch
                %4029 = sbr.rel target = $region82
              $region87: #{tpu_custom_call.1} parent=79 // loop_exit
                _
              %s4171 = sdiv.u32.pop %s4014, 63
              %s4172 = srem.u32.pop %s4014, 63
              %s4173 = smul.u32 %s4171, 63
              %s4174 = smul.u32 8, %s4173
              %s4175 = scalar_lea.vmem %s4007, %s4174 [#allocation3]
              %s4176 = smul.u32 8, %s4173
              %s4177 = scalar_lea.vmem %s4018, %s4176
              // While loop
              $region88: #{tpu_custom_call.1} parent=79 // loop_pre_header
                _
              $region89: #{tpu_custom_call.1} parent=79 // loop_header
                %s4179 = sphi 0, %s4181
                %p4180 = scmp.ge.s32.totalorder %s4179, %s4172
                %s4184 = sphi 0, %s4191
                %s4185 = sphi %s4175, %s4194
                %s4186 = sphi %s4177, %s4195
              $region90: #{tpu_custom_call.1} parent=79 // loop_header_branch
                %4183 = sbr.rel (%p4180) target = $region94
              $region91: #{tpu_custom_call.1} parent=79 // loop_body
                %v4187 = vld [vmem:[%s4185] sm:$0xff]
                %4188 = vst [vmem:[%s4186] sm:$0xff] %v4187
                %s4189 = sadd.s32 1, %s4184
                %p4190 = scmp.ge.s32.totalorder %s4189, %s4172
                %s4191 = scalar_select %p4190, 0, %s4189
                %s4192 = smul.u32 %s4191, 8
                %s4193 = smul.u32 %s4191, 8
                %s4194 = scalar_lea.vmem %s4175, %s4192 [#allocation3]
                %s4195 = scalar_lea.vmem %s4177, %s4193
              $region92: #{tpu_custom_call.1} parent=79 // loop_footer
                %s4181 = sadd.s32 %s4179, 1
              $region93: #{tpu_custom_call.1} parent=79 // loop_footer_branch
                %4178 = sbr.rel target = $region89
              $region94: #{tpu_custom_call.1} parent=79 // loop_exit
                _
            $region80: #{tpu_custom_call.1} parent=71 // pred_fallthru
              _
          $region72: #{tpu_custom_call.1} parent=67 // pred_fallthru
            _
          %4369 = vnop
        $region68: #{tpu_custom_call.1} parent=63 // pred_fallthru
          _
      $region64: #{tpu_custom_call.1} parent=5 // pred_fallthru
        _
      %p4370 = scmp.le.s32.totalorder 2, %s19
      // Predicated region
      $region117: #{tpu_custom_call.1} parent=5 // pred_check
        %p4371 = pneg %p4370
      $region118: #{tpu_custom_call.1} parent=5 // pred_check_branch
        %4373 = sbr.rel (%p4371) target = $region120
      $region119: #{tpu_custom_call.1} parent=5 // pred_region
        %s4374 = ssub.s32 %s19, 2
        // Predicated region
        $region121: #{tpu_custom_call.1} parent=119 // pred_check
          %p4375 = pneg %p284
        $region122: #{tpu_custom_call.1} parent=119 // pred_check_branch
          %4377 = sbr.rel (%p4375) target = $region124
        $region123: #{tpu_custom_call.1} parent=119 // pred_region
          %s4378 = sand.u32 %s269, 1
          %s4379 = sand.u32 %s269, 1
          %s4380 = smul.addr %s4379, 504
          %s4381 = scalar_lea.vmem [#allocation3], %s4380
        $region124: #{tpu_custom_call.1} parent=119 // pred_fallthru
          _
      $region120: #{tpu_custom_call.1} parent=5 // pred_fallthru
        _
    $region6: #{tpu_custom_call.1} parent=1 // loop_footer
      %s23 = sadd.s32 1, %s19
    $region7: #{tpu_custom_call.1} parent=1 // loop_footer_branch
      %18 = sbr.rel target = $region3
    $region8: #{tpu_custom_call.1} parent=1 // loop_exit
      _

</llo_original>
